<compile_context>
chip_gen: v5e
topology: v5e:2x2
jax: 0.10.0
libtpu: 0.0.40
codegen_flags: <defaults>
</compile_context>

<pallas_src>
import functools

import jax
import jax.numpy as jnp
from jax.experimental import pallas as pl
from jax.experimental.pallas import tpu as pltpu


# --------------------------------------------------------------------------
# Fused BasicBlockNoLens kernel
#   conv3x3(BN folded) + ReLU -> conv3x3(BN folded) (+ 1x1-conv downsample
#   residual) + ReLU, all intermediates in VMEM scratch.
# --------------------------------------------------------------------------
def _basic_block_kernel(*refs, H, W, Ho, Wo, stride, has_ds):
    if has_ds:
        (x_ref, w1_ref, b1_ref, w2_ref, b2_ref, dsw_ref, dsb_ref,
         o_ref, p1_ref, p2_ref) = refs
    else:
        x_ref, w1_ref, b1_ref, w2_ref, b2_ref, o_ref, p1_ref, p2_ref = refs
        dsw_ref = dsb_ref = None

    Cin = x_ref.shape[-1]
    Cmid = o_ref.shape[-1]

    x = x_ref[0]                                  # (H, W, Cin) bf16

    # ---- conv1: 3x3, pad=1, stride=s, BN scale folded into w1, + shift, ReLU
    p1_ref[...] = jnp.zeros(p1_ref.shape, p1_ref.dtype)
    p1_ref[1:H + 1, 1:W + 1, :] = x
    xp1 = p1_ref[...]                             # (H+2, W+2, Cin)
    cols1 = jnp.concatenate(
        [xp1[kh:kh + stride * (Ho - 1) + 1:stride,
             kw:kw + stride * (Wo - 1) + 1:stride, :].reshape(Ho * Wo, Cin)
         for kh in range(3) for kw in range(3)], axis=1)   # (Ho*Wo, 9*Cin)
    h1 = jnp.dot(cols1, w1_ref[...], preferred_element_type=jnp.float32)
    h1 = jnp.maximum(h1 + b1_ref[...], 0.0)       # (Ho*Wo, Cmid) f32

    # ---- conv2: 3x3, pad=1, stride=1, BN scale folded into w2, + shift
    p2_ref[...] = jnp.zeros(p2_ref.shape, p2_ref.dtype)
    p2_ref[1:Ho + 1, 1:Wo + 1, :] = h1.reshape(Ho, Wo, Cmid).astype(p2_ref.dtype)
    xp2 = p2_ref[...]                             # (Ho+2, Wo+2, Cmid)
    cols2 = jnp.concatenate(
        [xp2[kh:kh + Ho, kw:kw + Wo, :].reshape(Ho * Wo, Cmid)
         for kh in range(3) for kw in range(3)], axis=1)   # (Ho*Wo, 9*Cmid)
    h2 = jnp.dot(cols2, w2_ref[...], preferred_element_type=jnp.float32)
    h2 = h2 + b2_ref[...]

    # ---- residual path (1x1 conv + BN downsample, or identity)
    xs = x[::stride, ::stride, :].reshape(Ho * Wo, Cin)
    if has_ds:
        res = jnp.dot(xs, dsw_ref[...], preferred_element_type=jnp.float32)
        res = res + dsb_ref[...]
    else:
        res = xs.astype(jnp.float32)

    out = jnp.maximum(h2 + res, 0.0)
    o_ref[0] = out.reshape(Ho, Wo, Cmid).astype(o_ref.dtype)


def basic_block_fused(x, p, *, stride, has_ds):
    """x: (N, H, W, Cin) bf16. Returns (N, Ho, Wo, planes) bf16."""
    N, H, W, Cin = x.shape
    Cmid = p["conv1_w"].shape[-1]
    Ho = (H + 2 - 3) // stride + 1
    Wo = (W + 2 - 3) // stride + 1

    # Fold BN scales into the conv weights (host side, free).
    w1 = (p["conv1_w"] * p["bn1_scale"]).reshape(9 * Cin, Cmid).astype(jnp.bfloat16)
    b1 = p["bn1_shift"].reshape(1, Cmid).astype(jnp.float32)
    w2 = (p["conv2_w"] * p["bn2_scale"]).reshape(9 * Cmid, Cmid).astype(jnp.bfloat16)
    b2 = p["bn2_shift"].reshape(1, Cmid).astype(jnp.float32)

    args = [x, w1, b1, w2, b2]
    in_specs = [
        pl.BlockSpec((1, H, W, Cin), lambda n: (n, 0, 0, 0)),
        pl.BlockSpec((9 * Cin, Cmid), lambda n: (0, 0)),
        pl.BlockSpec((1, Cmid), lambda n: (0, 0)),
        pl.BlockSpec((9 * Cmid, Cmid), lambda n: (0, 0)),
        pl.BlockSpec((1, Cmid), lambda n: (0, 0)),
    ]
    if has_ds:
        dsw = (p["ds_w"] * p["ds_scale"][None, :]).astype(jnp.bfloat16)
        dsb = p["ds_shift"].reshape(1, Cmid).astype(jnp.float32)
        args += [dsw, dsb]
        in_specs += [pl.BlockSpec((Cin, Cmid), lambda n: (0, 0)),
                     pl.BlockSpec((1, Cmid), lambda n: (0, 0))]

    kernel = functools.partial(_basic_block_kernel, H=H, W=W, Ho=Ho, Wo=Wo,
                               stride=stride, has_ds=has_ds)
    return pl.pallas_call(
        kernel,
        out_shape=jax.ShapeDtypeStruct((N, Ho, Wo, Cmid), jnp.bfloat16),
        grid=(N,),
        in_specs=in_specs,
        out_specs=pl.BlockSpec((1, Ho, Wo, Cmid), lambda n: (n, 0, 0, 0)),
        scratch_shapes=[pltpu.VMEM((H + 2, W + 2, Cin), jnp.bfloat16),
                        pltpu.VMEM((Ho + 2, Wo + 2, Cmid), jnp.bfloat16)],
        compiler_params=pltpu.CompilerParams(dimension_semantics=("parallel",)),
    )(*args)


# --------------------------------------------------------------------------
# Fused SDLR kernel (DCN-v1 style deformable 3x3 conv)
#   offset conv -> bilinear sampling -> 9*Cin->Cout contraction, all in VMEM.
# --------------------------------------------------------------------------
def _sdlr_kernel(x_ref, base_ref, offw_ref, offb_ref, dcw_ref, dcb_ref,
                 o_ref, pad_ref, *, H, W):
    Cin = x_ref.shape[-1]
    Cout = o_ref.shape[-1]
    HW = H * W

    x = x_ref[0]                                   # (H, W, Cin) bf16

    # ---- offset-prediction 3x3 conv (pad=1), single im2col matmul
    pad_ref[...] = jnp.zeros(pad_ref.shape, pad_ref.dtype)
    pad_ref[1:H + 1, 1:W + 1, :] = x
    xp = pad_ref[...]                              # (H+2, W+2, Cin)
    cols = jnp.concatenate(
        [xp[kh:kh + H, kw:kw + W, :].reshape(HW, Cin)
         for kh in range(3) for kw in range(3)], axis=1)   # (HW, 9*Cin)
    offs = jnp.dot(cols, offw_ref[...], preferred_element_type=jnp.float32)
    offs = offs + offb_ref[...]                    # (HW, 18): per-tap (dy, dx)

    # ---- deformable sampling + (9*Cin -> Cout) contraction
    x_f = x.reshape(HW, Cin).astype(jnp.float32)   # (HW, Cin)
    base_i = base_ref[:, 0:1]                      # (HW, 1) f32 row index
    base_j = base_ref[:, 1:2]                      # (HW, 1) f32 col index
    qidx = jax.lax.broadcasted_iota(jnp.int32, (HW, HW), 1)

    acc = jnp.zeros((HW, Cout), jnp.float32)
    for t in range(9):
        dy = offs[:, 2 * t:2 * t + 1]
        dx = offs[:, 2 * t + 1:2 * t + 2]
        py = base_i + (t // 3 - 1) + dy
        px = base_j + (t % 3 - 1) + dx
        y0 = jnp.floor(py)
        x0 = jnp.floor(px)
        wy1 = py - y0
        wx1 = px - x0
        corners = ((y0, x0, (1.0 - wy1) * (1.0 - wx1)),
                   (y0, x0 + 1.0, (1.0 - wy1) * wx1),
                   (y0 + 1.0, x0, wy1 * (1.0 - wx1)),
                   (y0 + 1.0, x0 + 1.0, wy1 * wx1))
        # Bilinear sampling matrix (zero padding outside the image).
        samp = jnp.zeros((HW, HW), jnp.float32)
        for yy, xx, wc in corners:
            valid = ((yy >= 0.0) & (yy < H) & (xx >= 0.0) & (xx < W))
            valid = valid.astype(jnp.float32)
            yc = jnp.clip(yy, 0.0, H - 1.0)
            xc = jnp.clip(xx, 0.0, W - 1.0)
            idx = (yc * W + xc).astype(jnp.int32)             # (HW, 1)
            onehot = (qidx == idx).astype(jnp.float32)        # (HW, HW)
            samp = samp + (wc * valid) * onehot
        sampled = jnp.dot(samp, x_f, preferred_element_type=jnp.float32)
        acc = acc + jnp.dot(sampled, dcw_ref[t],
                            preferred_element_type=jnp.float32)

    out = acc + dcb_ref[...]
    o_ref[0] = out.reshape(H, W, Cout).astype(o_ref.dtype)


def sdlr_fused(x, p):
    """neko_sdlr_wrapper / neko_spatial_transform_deform_conv_3x3_lr."""
    N, H, W, Cin = x.shape
    Cout = p["dc_b"].shape[0]
    HW = H * W

    off_w = p["off_w"].reshape(9 * Cin, 18).astype(jnp.bfloat16)
    off_b = p["off_b"].reshape(1, 18).astype(jnp.float32)
    dc_w = p["dc_w"].reshape(9, Cin, Cout).astype(jnp.float32)
    dc_b = p["dc_b"].reshape(1, Cout).astype(jnp.float32)

    ii, jj = jnp.meshgrid(jnp.arange(H, dtype=jnp.float32),
                          jnp.arange(W, dtype=jnp.float32), indexing="ij")
    base_ij = jnp.stack([ii.reshape(-1), jj.reshape(-1)], axis=1)  # (HW, 2)

    kernel = functools.partial(_sdlr_kernel, H=H, W=W)
    return pl.pallas_call(
        kernel,
        out_shape=jax.ShapeDtypeStruct((N, H, W, Cout), jnp.bfloat16),
        grid=(N,),
        in_specs=[
            pl.BlockSpec((1, H, W, Cin), lambda n: (n, 0, 0, 0)),
            pl.BlockSpec((HW, 2), lambda n: (0, 0)),
            pl.BlockSpec((9 * Cin, 18), lambda n: (0, 0)),
            pl.BlockSpec((1, 18), lambda n: (0, 0)),
            pl.BlockSpec((9, Cin, Cout), lambda n: (0, 0, 0)),
            pl.BlockSpec((1, Cout), lambda n: (0, 0)),
        ],
        out_specs=pl.BlockSpec((1, H, W, Cout), lambda n: (n, 0, 0, 0)),
        scratch_shapes=[pltpu.VMEM((H + 2, W + 2, Cin), jnp.bfloat16)],
        compiler_params=pltpu.CompilerParams(dimension_semantics=("parallel",)),
    )(x, base_ij, off_w, off_b, dc_w, dc_b)


# --------------------------------------------------------------------------
# Module forward (thin glue over the two fused Pallas kernels)
# --------------------------------------------------------------------------
def basic_block_nolens(x, p, *, stride, has_downsample):
    return basic_block_fused(x, p, stride=stride, has_ds=has_downsample), None


def sdlr_block(x, p):
    return sdlr_fused(x, p), None


def neko_reslayer_sdlr_forward(x, params):
    fields = []
    feat = x.astype(jnp.bfloat16)
    feat, f = basic_block_nolens(feat, params["blkinit"],
                                 stride=params["stride"],
                                 has_downsample=params["has_ds"])
    if f is not None:
        fields.append(f)
    feat, f = sdlr_block(feat, params["STDL"])
    if f is not None:
        fields.append(f)
    for bp in params["extra_blocks"]:
        feat, f = basic_block_nolens(feat, bp, stride=1, has_downsample=False)
        if f is not None:
            fields.append(f)
    return feat.astype(jnp.float32), fields


# --------------------------------------------------------------------------
# Deterministic parameter init (synthetic, BN folded to per-channel affine)
# --------------------------------------------------------------------------
def init_params(key, in_planes, planes, blocks=1, stride=1):
    ks = list(jax.random.split(key, 12 + 6 * max(blocks - 1, 0)))
    p = {"stride": stride, "has_ds": (stride != 1) or (in_planes != planes)}

    def nrm(k, shape, s=0.1):
        return s * jax.random.normal(k, shape, jnp.float32)

    blk = {
        "conv1_w": nrm(ks[0], (9, in_planes, planes)),
        "bn1_scale": 1.0 + nrm(ks[1], (planes,), 0.05),
        "bn1_shift": nrm(ks[2], (planes,), 0.05),
        "conv2_w": nrm(ks[3], (9, planes, planes)),
        "bn2_scale": 1.0 + nrm(ks[4], (planes,), 0.05),
        "bn2_shift": nrm(ks[5], (planes,), 0.05),
    }
    if p["has_ds"]:
        blk["ds_w"] = nrm(ks[6], (in_planes, planes))
        blk["ds_scale"] = 1.0 + nrm(ks[7], (planes,), 0.05)
        blk["ds_shift"] = nrm(ks[8], (planes,), 0.05)
    p["blkinit"] = blk

    ofc = planes
    p["STDL"] = {
        "off_w": nrm(ks[9], (9, ofc, 18), 0.01),
        "off_b": jnp.zeros((18,), jnp.float32),
        "dc_w": nrm(ks[10], (9 * ofc, ofc)),
        "dc_b": nrm(ks[11], (ofc,), 0.05),
    }

    extra = []
    for i in range(1, blocks):
        base = 12 + 6 * (i - 1)
        extra.append({
            "conv1_w": nrm(ks[base + 0], (9, planes, planes)),
            "bn1_scale": 1.0 + nrm(ks[base + 1], (planes,), 0.05),
            "bn1_shift": nrm(ks[base + 2], (planes,), 0.05),
            "conv2_w": nrm(ks[base + 3], (9, planes, planes)),
            "bn2_scale": 1.0 + nrm(ks[base + 4], (planes,), 0.05),
            "bn2_shift": nrm(ks[base + 5], (planes,), 0.05),
        })
    p["extra_blocks"] = extra
    return p


# --------------------------------------------------------------------------
if __name__ == "__main__":
    key = jax.random.PRNGKey(0)
    kx, kp = jax.random.split(key)

    N, Cin, H, W = 2, 4, 16, 16
    planes = 8

    # PyTorch-convention NCHW input -> NHWC for the kernels.
    x_nchw = jax.random.normal(kx, (N, Cin, H, W), jnp.float32)
    x = jnp.transpose(x_nchw, (0, 2, 3, 1))

    params = init_params(kp, Cin, planes, blocks=1, stride=1)

    feat_nhwc, fields = neko_reslayer_sdlr_forward(x, params)
    feat = jnp.transpose(feat_nhwc, (0, 3, 1, 2))   # back to NCHW
    jax.block_until_ready(feat)

    assert feat.shape == (N, planes, H, W), feat.shape
    assert feat.dtype == jnp.float32
    assert fields == []                              # all sub-blocks return None fields
    assert bool(jnp.all(jnp.isfinite(feat)))

    print("KERNEL_OK")
</pallas_src>

<mosaic_0001>
module attributes {stable_mosaic.version = 11 : i64} {
  func.func @_basic_block_kernel(%arg0: i32, %arg1: memref<1x16x16x4xbf16, #tpu.memory_space<vmem>>, %arg2: memref<36x8xbf16, #tpu.memory_space<vmem>>, %arg3: memref<1x8xf32, #tpu.memory_space<vmem>>, %arg4: memref<72x8xbf16, #tpu.memory_space<vmem>>, %arg5: memref<1x8xf32, #tpu.memory_space<vmem>>, %arg6: memref<4x8xbf16, #tpu.memory_space<vmem>>, %arg7: memref<1x8xf32, #tpu.memory_space<vmem>>, %arg8: memref<1x16x16x8xbf16, #tpu.memory_space<vmem>>, %arg9: memref<18x18x4xbf16, #tpu.memory_space<vmem>>, %arg10: memref<18x18x8xbf16, #tpu.memory_space<vmem>>) attributes {dimension_semantics = [#tpu.dimension_semantics<parallel>], iteration_bounds = array<i64: 2>, scalar_prefetch = 0 : i64, scratch_operands = 2 : i64, tpu.core_type = #tpu.core_type<tc>, window_params = [{transform_indices = @transform_0, window_bounds = array<i64: 1, 16, 16, 4>}, {pipeline_mode = #tpu.pipeline_mode<synchronous>, transform_indices = @transform_1, window_bounds = array<i64: 36, 8>}, {pipeline_mode = #tpu.pipeline_mode<synchronous>, transform_indices = @transform_2, window_bounds = array<i64: 1, 8>}, {pipeline_mode = #tpu.pipeline_mode<synchronous>, transform_indices = @transform_3, window_bounds = array<i64: 72, 8>}, {pipeline_mode = #tpu.pipeline_mode<synchronous>, transform_indices = @transform_4, window_bounds = array<i64: 1, 8>}, {pipeline_mode = #tpu.pipeline_mode<synchronous>, transform_indices = @transform_5, window_bounds = array<i64: 4, 8>}, {pipeline_mode = #tpu.pipeline_mode<synchronous>, transform_indices = @transform_6, window_bounds = array<i64: 1, 8>}, {transform_indices = @transform_7, window_bounds = array<i64: 1, 16, 16, 8>}]} {
    %c0 = arith.constant 0 : index
    %c0_0 = arith.constant 0 : index
    %c0_1 = arith.constant 0 : index
    %c0_2 = arith.constant 0 : index
    %0 = vector.load %arg1[%c0, %c0_0, %c0_1, %c0_2] : memref<1x16x16x4xbf16, #tpu.memory_space<vmem>>, vector<1x16x16x4xbf16>
    %1 = vector.shape_cast %0 : vector<1x16x16x4xbf16> to vector<16x16x4xbf16>
    %cst = arith.constant 0.000000e+00 : bf16
    %2 = vector.broadcast %cst : bf16 to vector<18x18x4xbf16>
    %c0_3 = arith.constant 0 : index
    %c0_4 = arith.constant 0 : index
    %c0_5 = arith.constant 0 : index
    %3 = vector.load %arg9[%c0_3, %c0_4, %c0_5] : memref<18x18x4xbf16, #tpu.memory_space<vmem>>, vector<18x18x4xbf16>
    tpu.vector_store %arg9[%c0_3, %c0_4, %c0_5], %2 {strides = array<i32>} : memref<18x18x4xbf16, #tpu.memory_space<vmem>>, vector<18x18x4xbf16>,
    %c1 = arith.constant 1 : index
    %c1_6 = arith.constant 1 : index
    %c0_7 = arith.constant 0 : index
    %4 = vector.load %arg9[%c1, %c1_6, %c0_7] : memref<18x18x4xbf16, #tpu.memory_space<vmem>>, vector<16x16x4xbf16>
    tpu.vector_store %arg9[%c1, %c1_6, %c0_7], %1 {strides = array<i32>} : memref<18x18x4xbf16, #tpu.memory_space<vmem>>, vector<16x16x4xbf16>,
    %c0_8 = arith.constant 0 : index
    %c0_9 = arith.constant 0 : index
    %c0_10 = arith.constant 0 : index
    %5 = vector.load %arg9[%c0_8, %c0_9, %c0_10] : memref<18x18x4xbf16, #tpu.memory_space<vmem>>, vector<18x18x4xbf16>
    %6 = vector.extract_strided_slice %5 {offsets = [0, 0, 0], sizes = [16, 16, 4], strides = [1, 1, 1]} : vector<18x18x4xbf16> to vector<16x16x4xbf16>
    %7 = vector.shape_cast %6 : vector<16x16x4xbf16> to vector<256x4xbf16>
    %8 = vector.extract_strided_slice %5 {offsets = [0, 1, 0], sizes = [16, 16, 4], strides = [1, 1, 1]} : vector<18x18x4xbf16> to vector<16x16x4xbf16>
    %9 = vector.shape_cast %8 : vector<16x16x4xbf16> to vector<256x4xbf16>
    %10 = vector.extract_strided_slice %5 {offsets = [0, 2, 0], sizes = [16, 16, 4], strides = [1, 1, 1]} : vector<18x18x4xbf16> to vector<16x16x4xbf16>
    %11 = vector.shape_cast %10 : vector<16x16x4xbf16> to vector<256x4xbf16>
    %12 = vector.extract_strided_slice %5 {offsets = [1, 0, 0], sizes = [16, 16, 4], strides = [1, 1, 1]} : vector<18x18x4xbf16> to vector<16x16x4xbf16>
    %13 = vector.shape_cast %12 : vector<16x16x4xbf16> to vector<256x4xbf16>
    %14 = vector.extract_strided_slice %5 {offsets = [1, 1, 0], sizes = [16, 16, 4], strides = [1, 1, 1]} : vector<18x18x4xbf16> to vector<16x16x4xbf16>
    %15 = vector.shape_cast %14 : vector<16x16x4xbf16> to vector<256x4xbf16>
    %16 = vector.extract_strided_slice %5 {offsets = [1, 2, 0], sizes = [16, 16, 4], strides = [1, 1, 1]} : vector<18x18x4xbf16> to vector<16x16x4xbf16>
    %17 = vector.shape_cast %16 : vector<16x16x4xbf16> to vector<256x4xbf16>
    %18 = vector.extract_strided_slice %5 {offsets = [2, 0, 0], sizes = [16, 16, 4], strides = [1, 1, 1]} : vector<18x18x4xbf16> to vector<16x16x4xbf16>
    %19 = vector.shape_cast %18 : vector<16x16x4xbf16> to vector<256x4xbf16>
    %20 = vector.extract_strided_slice %5 {offsets = [2, 1, 0], sizes = [16, 16, 4], strides = [1, 1, 1]} : vector<18x18x4xbf16> to vector<16x16x4xbf16>
    %21 = vector.shape_cast %20 : vector<16x16x4xbf16> to vector<256x4xbf16>
    %22 = vector.extract_strided_slice %5 {offsets = [2, 2, 0], sizes = [16, 16, 4], strides = [1, 1, 1]} : vector<18x18x4xbf16> to vector<16x16x4xbf16>
    %23 = vector.shape_cast %22 : vector<16x16x4xbf16> to vector<256x4xbf16>
    %24 = tpu.concatenate %7, %9, %11, %13, %15, %17, %19, %21, %23 in 1 : vector<256x4xbf16>, vector<256x4xbf16>, vector<256x4xbf16>, vector<256x4xbf16>, vector<256x4xbf16>, vector<256x4xbf16>, vector<256x4xbf16>, vector<256x4xbf16>, vector<256x4xbf16> -> vector<256x36xbf16>
    %c0_11 = arith.constant 0 : index
    %c0_12 = arith.constant 0 : index
    %25 = vector.load %arg2[%c0_11, %c0_12] : memref<36x8xbf16, #tpu.memory_space<vmem>>, vector<36x8xbf16>
    %cst_13 = arith.constant dense<0.000000e+00> : vector<256x8xf32>
    %26 = tpu.matmul %24, %25, %cst_13 {dimension_numbers = #tpu.dot_dimension_numbers<[1], [0], [0], [1], [0, 0, 1, 1], [], []>} : vector<256x36xbf16>, vector<36x8xbf16>, vector<256x8xf32> -> vector<256x8xf32>
    %c0_14 = arith.constant 0 : index
    %c0_15 = arith.constant 0 : index
    %27 = vector.load %arg3[%c0_14, %c0_15] : memref<1x8xf32, #tpu.memory_space<vmem>>, vector<1x8xf32>
    %28 = vector.broadcast %27 : vector<1x8xf32> to vector<256x8xf32>
    %29 = arith.addf %26, %28 : vector<256x8xf32>
    %cst_16 = arith.constant 0.000000e+00 : f32
    %30 = vector.broadcast %cst_16 : f32 to vector<256x8xf32>
    %31 = arith.maximumf %29, %30 : vector<256x8xf32>
    %cst_17 = arith.constant 0.000000e+00 : bf16
    %32 = vector.broadcast %cst_17 : bf16 to vector<18x18x8xbf16>
    %c0_18 = arith.constant 0 : index
    %c0_19 = arith.constant 0 : index
    %c0_20 = arith.constant 0 : index
    %33 = vector.load %arg10[%c0_18, %c0_19, %c0_20] : memref<18x18x8xbf16, #tpu.memory_space<vmem>>, vector<18x18x8xbf16>
    tpu.vector_store %arg10[%c0_18, %c0_19, %c0_20], %32 {strides = array<i32>} : memref<18x18x8xbf16, #tpu.memory_space<vmem>>, vector<18x18x8xbf16>,
    %34 = vector.shape_cast %31 : vector<256x8xf32> to vector<16x16x8xf32>
    %35 = arith.truncf %34 : vector<16x16x8xf32> to vector<16x16x8xbf16>
    %c1_21 = arith.constant 1 : index
    %c1_22 = arith.constant 1 : index
    %c0_23 = arith.constant 0 : index
    %36 = vector.load %arg10[%c1_21, %c1_22, %c0_23] : memref<18x18x8xbf16, #tpu.memory_space<vmem>>, vector<16x16x8xbf16>
    tpu.vector_store %arg10[%c1_21, %c1_22, %c0_23], %35 {strides = array<i32>} : memref<18x18x8xbf16, #tpu.memory_space<vmem>>, vector<16x16x8xbf16>,
    %c0_24 = arith.constant 0 : index
    %c0_25 = arith.constant 0 : index
    %c0_26 = arith.constant 0 : index
    %37 = vector.load %arg10[%c0_24, %c0_25, %c0_26] : memref<18x18x8xbf16, #tpu.memory_space<vmem>>, vector<18x18x8xbf16>
    %38 = vector.extract_strided_slice %37 {offsets = [0, 0, 0], sizes = [16, 16, 8], strides = [1, 1, 1]} : vector<18x18x8xbf16> to vector<16x16x8xbf16>
    %39 = vector.shape_cast %38 : vector<16x16x8xbf16> to vector<256x8xbf16>
    %40 = vector.extract_strided_slice %37 {offsets = [0, 1, 0], sizes = [16, 16, 8], strides = [1, 1, 1]} : vector<18x18x8xbf16> to vector<16x16x8xbf16>
    %41 = vector.shape_cast %40 : vector<16x16x8xbf16> to vector<256x8xbf16>
    %42 = vector.extract_strided_slice %37 {offsets = [0, 2, 0], sizes = [16, 16, 8], strides = [1, 1, 1]} : vector<18x18x8xbf16> to vector<16x16x8xbf16>
    %43 = vector.shape_cast %42 : vector<16x16x8xbf16> to vector<256x8xbf16>
    %44 = vector.extract_strided_slice %37 {offsets = [1, 0, 0], sizes = [16, 16, 8], strides = [1, 1, 1]} : vector<18x18x8xbf16> to vector<16x16x8xbf16>
    %45 = vector.shape_cast %44 : vector<16x16x8xbf16> to vector<256x8xbf16>
    %46 = vector.extract_strided_slice %37 {offsets = [1, 1, 0], sizes = [16, 16, 8], strides = [1, 1, 1]} : vector<18x18x8xbf16> to vector<16x16x8xbf16>
    %47 = vector.shape_cast %46 : vector<16x16x8xbf16> to vector<256x8xbf16>
    %48 = vector.extract_strided_slice %37 {offsets = [1, 2, 0], sizes = [16, 16, 8], strides = [1, 1, 1]} : vector<18x18x8xbf16> to vector<16x16x8xbf16>
    %49 = vector.shape_cast %48 : vector<16x16x8xbf16> to vector<256x8xbf16>
    %50 = vector.extract_strided_slice %37 {offsets = [2, 0, 0], sizes = [16, 16, 8], strides = [1, 1, 1]} : vector<18x18x8xbf16> to vector<16x16x8xbf16>
    %51 = vector.shape_cast %50 : vector<16x16x8xbf16> to vector<256x8xbf16>
    %52 = vector.extract_strided_slice %37 {offsets = [2, 1, 0], sizes = [16, 16, 8], strides = [1, 1, 1]} : vector<18x18x8xbf16> to vector<16x16x8xbf16>
    %53 = vector.shape_cast %52 : vector<16x16x8xbf16> to vector<256x8xbf16>
    %54 = vector.extract_strided_slice %37 {offsets = [2, 2, 0], sizes = [16, 16, 8], strides = [1, 1, 1]} : vector<18x18x8xbf16> to vector<16x16x8xbf16>
    %55 = vector.shape_cast %54 : vector<16x16x8xbf16> to vector<256x8xbf16>
    %56 = tpu.concatenate %39, %41, %43, %45, %47, %49, %51, %53, %55 in 1 : vector<256x8xbf16>, vector<256x8xbf16>, vector<256x8xbf16>, vector<256x8xbf16>, vector<256x8xbf16>, vector<256x8xbf16>, vector<256x8xbf16>, vector<256x8xbf16>, vector<256x8xbf16> -> vector<256x72xbf16>
    %c0_27 = arith.constant 0 : index
    %c0_28 = arith.constant 0 : index
    %57 = vector.load %arg4[%c0_27, %c0_28] : memref<72x8xbf16, #tpu.memory_space<vmem>>, vector<72x8xbf16>
    %cst_29 = arith.constant dense<0.000000e+00> : vector<256x8xf32>
    %58 = tpu.matmul %56, %57, %cst_29 {dimension_numbers = #tpu.dot_dimension_numbers<[1], [0], [0], [1], [0, 0, 1, 1], [], []>} : vector<256x72xbf16>, vector<72x8xbf16>, vector<256x8xf32> -> vector<256x8xf32>
    %c0_30 = arith.constant 0 : index
    %c0_31 = arith.constant 0 : index
    %59 = vector.load %arg5[%c0_30, %c0_31] : memref<1x8xf32, #tpu.memory_space<vmem>>, vector<1x8xf32>
    %60 = vector.broadcast %59 : vector<1x8xf32> to vector<256x8xf32>
    %61 = arith.addf %58, %60 : vector<256x8xf32>
    %62 = vector.shape_cast %1 : vector<16x16x4xbf16> to vector<256x4xbf16>
    %c0_32 = arith.constant 0 : index
    %c0_33 = arith.constant 0 : index
    %63 = vector.load %arg6[%c0_32, %c0_33] : memref<4x8xbf16, #tpu.memory_space<vmem>>, vector<4x8xbf16>
    %cst_34 = arith.constant dense<0.000000e+00> : vector<256x8xf32>
    %64 = tpu.matmul %62, %63, %cst_34 {dimension_numbers = #tpu.dot_dimension_numbers<[1], [0], [0], [1], [0, 0, 1, 1], [], []>} : vector<256x4xbf16>, vector<4x8xbf16>, vector<256x8xf32> -> vector<256x8xf32>
    %c0_35 = arith.constant 0 : index
    %c0_36 = arith.constant 0 : index
    %65 = vector.load %arg7[%c0_35, %c0_36] : memref<1x8xf32, #tpu.memory_space<vmem>>, vector<1x8xf32>
    %66 = vector.broadcast %65 : vector<1x8xf32> to vector<256x8xf32>
    %67 = arith.addf %64, %66 : vector<256x8xf32>
    %68 = arith.addf %61, %67 : vector<256x8xf32>
    %cst_37 = arith.constant 0.000000e+00 : f32
    %69 = vector.broadcast %cst_37 : f32 to vector<256x8xf32>
    %70 = arith.maximumf %68, %69 : vector<256x8xf32>
    %71 = vector.shape_cast %70 : vector<256x8xf32> to vector<16x16x8xf32>
    %72 = arith.truncf %71 : vector<16x16x8xf32> to vector<16x16x8xbf16>
    %c0_38 = arith.constant 0 : index
    %c0_39 = arith.constant 0 : index
    %c0_40 = arith.constant 0 : index
    %c0_41 = arith.constant 0 : index
    %73 = vector.load %arg8[%c0_38, %c0_39, %c0_40, %c0_41] : memref<1x16x16x8xbf16, #tpu.memory_space<vmem>>, vector<1x16x16x8xbf16>
    %74 = vector.shape_cast %73 : vector<1x16x16x8xbf16> to vector<16x16x8xbf16>
    %75 = vector.shape_cast %72 : vector<16x16x8xbf16> to vector<1x16x16x8xbf16>
    tpu.vector_store %arg8[%c0_38, %c0_39, %c0_40, %c0_41], %75 {strides = array<i32>} : memref<1x16x16x8xbf16, #tpu.memory_space<vmem>>, vector<1x16x16x8xbf16>,
    return
  }
  func.func @transform_0(%arg0: i32) -> (i32, i32, i32, i32) {
    %c0_i32 = arith.constant 0 : i32
    %c0_i32_0 = arith.constant 0 : i32
    %c0_i32_1 = arith.constant 0 : i32
    %c0_i32_2 = arith.constant 0 : i32
    return %arg0, %c0_i32, %c0_i32_0, %c0_i32_1 : i32, i32, i32, i32
  }
  func.func @transform_1(%arg0: i32) -> (i32, i32) {
    %c0_i32 = arith.constant 0 : i32
    %c0_i32_0 = arith.constant 0 : i32
    %c0_i32_1 = arith.constant 0 : i32
    return %c0_i32, %c0_i32_0 : i32, i32
  }
  func.func @transform_2(%arg0: i32) -> (i32, i32) {
    %c0_i32 = arith.constant 0 : i32
    %c0_i32_0 = arith.constant 0 : i32
    %c0_i32_1 = arith.constant 0 : i32
    return %c0_i32, %c0_i32_0 : i32, i32
  }
  func.func @transform_3(%arg0: i32) -> (i32, i32) {
    %c0_i32 = arith.constant 0 : i32
    %c0_i32_0 = arith.constant 0 : i32
    %c0_i32_1 = arith.constant 0 : i32
    return %c0_i32, %c0_i32_0 : i32, i32
  }
  func.func @transform_4(%arg0: i32) -> (i32, i32) {
    %c0_i32 = arith.constant 0 : i32
    %c0_i32_0 = arith.constant 0 : i32
    %c0_i32_1 = arith.constant 0 : i32
    return %c0_i32, %c0_i32_0 : i32, i32
  }
  func.func @transform_5(%arg0: i32) -> (i32, i32) {
    %c0_i32 = arith.constant 0 : i32
    %c0_i32_0 = arith.constant 0 : i32
    %c0_i32_1 = arith.constant 0 : i32
    return %c0_i32, %c0_i32_0 : i32, i32
  }
  func.func @transform_6(%arg0: i32) -> (i32, i32) {
    %c0_i32 = arith.constant 0 : i32
    %c0_i32_0 = arith.constant 0 : i32
    %c0_i32_1 = arith.constant 0 : i32
    return %c0_i32, %c0_i32_0 : i32, i32
  }
  func.func @transform_7(%arg0: i32) -> (i32, i32, i32, i32) {
    %c0_i32 = arith.constant 0 : i32
    %c0_i32_0 = arith.constant 0 : i32
    %c0_i32_1 = arith.constant 0 : i32
    %c0_i32_2 = arith.constant 0 : i32
    return %arg0, %c0_i32, %c0_i32_0, %c0_i32_1 : i32, i32, i32, i32
  }
}

</mosaic_0001>

<llo_original>
// kernel: tpu_custom_call.1
$region0: #{tpu_custom_call.1}
  #allocation0 [shape = 'u32[]', space=smem, size = 0x4, offset = 0x4, fixed_abs, tag = 'smem constant byte address 0x4 - core index']
  #allocation1 [shape = 'u32[72,128]{1,0:T(1,128)}', space=vmem, size = 0x9000, scoped, tag = 'internal scratch']
  #allocation2 [shape = 'bf16[18,18,4]{2,1,0:T(8,128)(2,1)}', space=vmem, size = 0x1b000, scoped, tag = 'scratch operand']
  #allocation3 [shape = 'bf16[18,18,8]{2,1,0:T(8,128)(2,1)}', space=vmem, size = 0x1b000, scoped, tag = 'scratch operand']
  %s0 = inlined_call_operand.vmem [shape: bf16[2,16,16,4], index: 0, kind: input, shape index: {}]
  %s1 = inlined_call_operand.vmem [shape: bf16[36,8], index: 1, kind: input, shape index: {}]
  %s2 = inlined_call_operand.vmem [shape: f32[1,8], index: 2, kind: input, shape index: {}]
  %s3 = inlined_call_operand.vmem [shape: bf16[72,8], index: 3, kind: input, shape index: {}]
  %s4 = inlined_call_operand.vmem [shape: f32[1,8], index: 4, kind: input, shape index: {}]
  %s5 = inlined_call_operand.vmem [shape: bf16[4,8], index: 5, kind: input, shape index: {}]
  %s6 = inlined_call_operand.vmem [shape: f32[1,8], index: 6, kind: input, shape index: {}]
  %s7 = inlined_call_operand.vmem [shape: bf16[2,16,16,8], index: 7, kind: output, shape index: {}]
  %s8 = sld [smem:[#allocation0]]
  $region61: #{tpu_custom_call.1} parent=0
    _
  %s10 = ssub.s32 1, %s8
  %s11 = scalar_select 0, %s10, %s8
  loop: start=0, step=1, limit=4
  $region2: #{tpu_custom_call.1} parent=0 // loop_pre_header
    _
  $region3: #{tpu_custom_call.1} parent=0 // loop_header
    %s13 = sphi 0, %s17
    %p14 = scmp.ge.s32.totalorder %s13, 4
    %s23 = sphi 0, %s25
    %s26 = sphi 0, %s23
    %s27 = sphi 0, %s26
    %s43 = sphi 0, %s27
    %s47 = sphi 0, %s47
    %s49 = sphi 0, %s47
    %s50 = sphi 0, %s49
    %s64 = sphi 0, %s50
    %s68 = sphi 0, %s68
    %s70 = sphi 0, %s68
    %s71 = sphi 0, %s70
    %s85 = sphi 0, %s71
    %s89 = sphi 0, %s89
    %s91 = sphi 0, %s89
    %s92 = sphi 0, %s91
    %s106 = sphi 0, %s92
    %s110 = sphi 0, %s110
    %s112 = sphi 0, %s110
    %s113 = sphi 0, %s112
    %s127 = sphi 0, %s113
    %s131 = sphi 0, %s131
    %s133 = sphi 0, %s131
    %s134 = sphi 0, %s133
    %s148 = sphi 0, %s134
    %s152 = sphi 0, %s152
    %s154 = sphi 0, %s152
    %s155 = sphi 0, %s154
    %s169 = sphi 0, %s155
    %s175 = sphi 0, %s177
    %s178 = sphi 0, %s175
    %s179 = sphi 0, %s178
    %s195 = sphi 0, %s179
  $region4: #{tpu_custom_call.1} parent=0 // loop_header_branch
    %16 = sbr.rel (%p14) target = $region8
  $region5: #{tpu_custom_call.1} parent=0 // loop_body
    %s18 = ssub.s32 %s13, 1
    %s19 = ssub.s32 %s13, 2
    %s20 = sadd.s32 %s13, 1
    %s21 = ssub.s32 %s13, %s20
    %p22 = scmp.eq.s32.totalorder %s21, 0
    %s24 = sadd.s32 %s23, 1
    %s25 = scalar_select %p22, %s23, %s24
    %p28 = pneg %p22
    %p29 = scmp.eq.s32.totalorder %s13, 1
    %p30 = por %p28, %p29
    %p31 = scmp.ne.s32.totalorder %s23, %s26
    %p32 = scmp.eq.s32.totalorder %s13, 0
    %p33 = por %p31, %p32
    %p34 = scmp.ne.s32.totalorder %s23, %s26
    %p35 = scmp.eq.s32.totalorder %s18, 1
    %p36 = por %p34, %p35
    %p37 = scmp.ne.s32.totalorder %s26, %s27
    %p38 = scmp.eq.s32.totalorder %s18, 0
    %p39 = por %p37, %p38
    %p40 = scmp.ne.s32.totalorder %s26, %s27
    %p41 = scmp.eq.s32.totalorder %s19, 1
    %p42 = por %p40, %p41
    %p44 = scmp.ne.s32.totalorder %s27, %s43
    %p45 = scmp.eq.s32.totalorder %s19, 0
    %p46 = por %p44, %p45
    %s48 = sadd.s32 %s47, 1
    %p51 = scmp.eq.s32.totalorder %s13, 1
    %p52 = scmp.ne.s32.totalorder %s47, %s49
    %p53 = scmp.eq.s32.totalorder %s13, 0
    %p54 = por %p52, %p53
    %p55 = scmp.ne.s32.totalorder %s47, %s49
    %p56 = scmp.eq.s32.totalorder %s18, 1
    %p57 = por %p55, %p56
    %p58 = scmp.ne.s32.totalorder %s49, %s50
    %p59 = scmp.eq.s32.totalorder %s18, 0
    %p60 = por %p58, %p59
    %p61 = scmp.ne.s32.totalorder %s49, %s50
    %p62 = scmp.eq.s32.totalorder %s19, 1
    %p63 = por %p61, %p62
    %p65 = scmp.ne.s32.totalorder %s50, %s64
    %p66 = scmp.eq.s32.totalorder %s19, 0
    %p67 = por %p65, %p66
    %s69 = sadd.s32 %s68, 1
    %p72 = scmp.eq.s32.totalorder %s13, 1
    %p73 = scmp.ne.s32.totalorder %s68, %s70
    %p74 = scmp.eq.s32.totalorder %s13, 0
    %p75 = por %p73, %p74
    %p76 = scmp.ne.s32.totalorder %s68, %s70
    %p77 = scmp.eq.s32.totalorder %s18, 1
    %p78 = por %p76, %p77
    %p79 = scmp.ne.s32.totalorder %s70, %s71
    %p80 = scmp.eq.s32.totalorder %s18, 0
    %p81 = por %p79, %p80
    %p82 = scmp.ne.s32.totalorder %s70, %s71
    %p83 = scmp.eq.s32.totalorder %s19, 1
    %p84 = por %p82, %p83
    %p86 = scmp.ne.s32.totalorder %s71, %s85
    %p87 = scmp.eq.s32.totalorder %s19, 0
    %p88 = por %p86, %p87
    %s90 = sadd.s32 %s89, 1
    %p93 = scmp.eq.s32.totalorder %s13, 1
    %p94 = scmp.ne.s32.totalorder %s89, %s91
    %p95 = scmp.eq.s32.totalorder %s13, 0
    %p96 = por %p94, %p95
    %p97 = scmp.ne.s32.totalorder %s89, %s91
    %p98 = scmp.eq.s32.totalorder %s18, 1
    %p99 = por %p97, %p98
    %p100 = scmp.ne.s32.totalorder %s91, %s92
    %p101 = scmp.eq.s32.totalorder %s18, 0
    %p102 = por %p100, %p101
    %p103 = scmp.ne.s32.totalorder %s91, %s92
    %p104 = scmp.eq.s32.totalorder %s19, 1
    %p105 = por %p103, %p104
    %p107 = scmp.ne.s32.totalorder %s92, %s106
    %p108 = scmp.eq.s32.totalorder %s19, 0
    %p109 = por %p107, %p108
    %s111 = sadd.s32 %s110, 1
    %p114 = scmp.eq.s32.totalorder %s13, 1
    %p115 = scmp.ne.s32.totalorder %s110, %s112
    %p116 = scmp.eq.s32.totalorder %s13, 0
    %p117 = por %p115, %p116
    %p118 = scmp.ne.s32.totalorder %s110, %s112
    %p119 = scmp.eq.s32.totalorder %s18, 1
    %p120 = por %p118, %p119
    %p121 = scmp.ne.s32.totalorder %s112, %s113
    %p122 = scmp.eq.s32.totalorder %s18, 0
    %p123 = por %p121, %p122
    %p124 = scmp.ne.s32.totalorder %s112, %s113
    %p125 = scmp.eq.s32.totalorder %s19, 1
    %p126 = por %p124, %p125
    %p128 = scmp.ne.s32.totalorder %s113, %s127
    %p129 = scmp.eq.s32.totalorder %s19, 0
    %p130 = por %p128, %p129
    %s132 = sadd.s32 %s131, 1
    %p135 = scmp.eq.s32.totalorder %s13, 1
    %p136 = scmp.ne.s32.totalorder %s131, %s133
    %p137 = scmp.eq.s32.totalorder %s13, 0
    %p138 = por %p136, %p137
    %p139 = scmp.ne.s32.totalorder %s131, %s133
    %p140 = scmp.eq.s32.totalorder %s18, 1
    %p141 = por %p139, %p140
    %p142 = scmp.ne.s32.totalorder %s133, %s134
    %p143 = scmp.eq.s32.totalorder %s18, 0
    %p144 = por %p142, %p143
    %p145 = scmp.ne.s32.totalorder %s133, %s134
    %p146 = scmp.eq.s32.totalorder %s19, 1
    %p147 = por %p145, %p146
    %p149 = scmp.ne.s32.totalorder %s134, %s148
    %p150 = scmp.eq.s32.totalorder %s19, 0
    %p151 = por %p149, %p150
    %s153 = sadd.s32 %s152, 1
    %p156 = scmp.eq.s32.totalorder %s13, 1
    %p157 = scmp.ne.s32.totalorder %s152, %s154
    %p158 = scmp.eq.s32.totalorder %s13, 0
    %p159 = por %p157, %p158
    %p160 = scmp.ne.s32.totalorder %s152, %s154
    %p161 = scmp.eq.s32.totalorder %s18, 1
    %p162 = por %p160, %p161
    %p163 = scmp.ne.s32.totalorder %s154, %s155
    %p164 = scmp.eq.s32.totalorder %s18, 0
    %p165 = por %p163, %p164
    %p166 = scmp.ne.s32.totalorder %s154, %s155
    %p167 = scmp.eq.s32.totalorder %s19, 1
    %p168 = por %p166, %p167
    %p170 = scmp.ne.s32.totalorder %s155, %s169
    %p171 = scmp.eq.s32.totalorder %s19, 0
    %p172 = por %p170, %p171
    %s173 = ssub.s32 %s13, %s20
    %p174 = scmp.eq.s32.totalorder %s173, 0
    %s176 = sadd.s32 %s175, 1
    %s177 = scalar_select %p174, %s175, %s176
    %p180 = pneg %p174
    %p181 = scmp.eq.s32.totalorder %s13, 1
    %p182 = por %p180, %p181
    %p183 = scmp.ne.s32.totalorder %s175, %s178
    %p184 = scmp.eq.s32.totalorder %s13, 0
    %p185 = por %p183, %p184
    %p186 = scmp.ne.s32.totalorder %s175, %s178
    %p187 = scmp.eq.s32.totalorder %s18, 1
    %p188 = por %p186, %p187
    %p189 = scmp.ne.s32.totalorder %s178, %s179
    %p190 = scmp.eq.s32.totalorder %s18, 0
    %p191 = por %p189, %p190
    %p192 = scmp.ne.s32.totalorder %s178, %s179
    %p193 = scmp.eq.s32.totalorder %s19, 1
    %p194 = por %p192, %p193
    %p196 = scmp.ne.s32.totalorder %s179, %s195
    %p197 = scmp.eq.s32.totalorder %s19, 0
    %p198 = por %p196, %p197
    %p199 = scmp.le.s32.totalorder 1, %s13
    %p200 = scmp.lt.s32.totalorder %s13, 3
    %p201 = pnand %p199, %p200
    %p202 = pneg %p201
    // Predicated region
    $region9: #{tpu_custom_call.1} parent=5 // pred_check
      _
    $region10: #{tpu_custom_call.1} parent=5 // pred_check_branch
      %204 = sbr.rel (%p201) target = $region12
    $region11: #{tpu_custom_call.1} parent=5 // pred_region
      %s205 = ssub.s32 %s13, 1
      // Predicated region
      $region13: #{tpu_custom_call.1} parent=11 // pred_check
        %p206 = pneg %p60
      $region14: #{tpu_custom_call.1} parent=11 // pred_check_branch
        %208 = sbr.rel (%p206) target = $region16
      $region15: #{tpu_custom_call.1} parent=11 // pred_region
        _
      $region16: #{tpu_custom_call.1} parent=11 // pred_fallthru
        _
      // Predicated region
      $region17: #{tpu_custom_call.1} parent=11 // pred_check
        %p209 = pneg %p81
      $region18: #{tpu_custom_call.1} parent=11 // pred_check_branch
        %211 = sbr.rel (%p209) target = $region20
      $region19: #{tpu_custom_call.1} parent=11 // pred_region
        _
      $region20: #{tpu_custom_call.1} parent=11 // pred_fallthru
        _
      // Predicated region
      $region21: #{tpu_custom_call.1} parent=11 // pred_check
        %p212 = pneg %p102
      $region22: #{tpu_custom_call.1} parent=11 // pred_check_branch
        %214 = sbr.rel (%p212) target = $region24
      $region23: #{tpu_custom_call.1} parent=11 // pred_region
        _
      $region24: #{tpu_custom_call.1} parent=11 // pred_fallthru
        _
      // Predicated region
      $region25: #{tpu_custom_call.1} parent=11 // pred_check
        %p215 = pneg %p123
      $region26: #{tpu_custom_call.1} parent=11 // pred_check_branch
        %217 = sbr.rel (%p215) target = $region28
      $region27: #{tpu_custom_call.1} parent=11 // pred_region
        _
      $region28: #{tpu_custom_call.1} parent=11 // pred_fallthru
        _
      // Predicated region
      $region29: #{tpu_custom_call.1} parent=11 // pred_check
        %p218 = pneg %p144
      $region30: #{tpu_custom_call.1} parent=11 // pred_check_branch
        %220 = sbr.rel (%p218) target = $region32
      $region31: #{tpu_custom_call.1} parent=11 // pred_region
        _
      $region32: #{tpu_custom_call.1} parent=11 // pred_fallthru
        _
      // Predicated region
      $region33: #{tpu_custom_call.1} parent=11 // pred_check
        %p221 = pneg %p165
      $region34: #{tpu_custom_call.1} parent=11 // pred_check_branch
        %223 = sbr.rel (%p221) target = $region36
      $region35: #{tpu_custom_call.1} parent=11 // pred_region
        _
      $region36: #{tpu_custom_call.1} parent=11 // pred_fallthru
        _
    $region12: #{tpu_custom_call.1} parent=5 // pred_fallthru
      _
    %p224 = scmp.lt.s32.totalorder %s13, 2
    // Predicated region
    $region37: #{tpu_custom_call.1} parent=5 // pred_check
      %p225 = pneg %p224
    $region38: #{tpu_custom_call.1} parent=5 // pred_check_branch
      %227 = sbr.rel (%p225) target = $region40
    $region39: #{tpu_custom_call.1} parent=5 // pred_region
      // Predicated region
      $region41: #{tpu_custom_call.1} parent=39 // pred_check
        %p228 = pneg %p33
      $region42: #{tpu_custom_call.1} parent=39 // pred_check_branch
        %230 = sbr.rel (%p228) target = $region44
      $region43: #{tpu_custom_call.1} parent=39 // pred_region
        %p231 = scmp.lt.s32.totalorder %s13, 1
        %s232 = scalar_select %p231, %s13, 1
        %s233 = smul.addr %s232, 32
        %s234 = smul.addr %s233, 4
        %s235 = scalar_lea.vmem %s0, %s234
      $region44: #{tpu_custom_call.1} parent=39 // pred_fallthru
        _
    $region40: #{tpu_custom_call.1} parent=5 // pred_fallthru
      _
    %p236 = scmp.le.s32.totalorder 1, %s13
    %p237 = scmp.lt.s32.totalorder %s13, 3
    %p238 = pnand %p236, %p237
    %p239 = pneg %p238
    // Predicated region
    $region45: #{tpu_custom_call.1} parent=5 // pred_check
      _
    $region46: #{tpu_custom_call.1} parent=5 // pred_check_branch
      %241 = sbr.rel (%p238) target = $region48
    $region47: #{tpu_custom_call.1} parent=5 // pred_region
      %s242 = ssub.s32 %s13, 1
      %p243 = scmp.lt.s32.totalorder %s18, 1
      %s244 = scalar_select %p243, %s18, 1
      %s245 = smul.addr %s244, 32
      %s246 = smul.addr %s245, 4
      %s247 = scalar_lea.vmem %s0, %s246
      %p248 = pneg %p39
      %p249 = pneg %p36
      %p250 = pneg %p60
      %p251 = pneg %p57
      %p252 = pneg %p81
      %p253 = pneg %p78
      %p254 = pneg %p102
      %p255 = pneg %p99
      %p256 = pneg %p123
      %p257 = pneg %p120
      %p258 = pneg %p144
      %p259 = pneg %p141
      %p260 = pneg %p165
      %p261 = pneg %p162
      %p262 = pneg %p191
      %p263 = pneg %p188
      %p264 = scmp.lt.s32.totalorder %s18, 1
      %s265 = scalar_select %p264, %s18, 1
      %s266 = smul.addr %s265, 32
      %s267 = smul.addr %s266, 4
      %s268 = scalar_lea.vmem %s7, %s267
      %p269 = scmp.lt.s32.totalorder %s18, 1
      %s270 = scalar_select %p269, %s18, 1
      %s271 = smul.addr %s270, 32
      %s272 = smul.addr %s271, 4
      %s273 = scalar_lea.vmem %s0, %s272
      %p274 = scmp.lt.s32.totalorder %s18, 1
      %s275 = scalar_select %p274, %s18, 1
      %s276 = smul.addr %s275, 32
      %s277 = smul.addr %s276, 4
      %s278 = scalar_lea.vmem %s7, %s277
      %v280 = vld [vmem:[%s273] sm:$0xf]
      %v281 = vld [vmem:[%s273 + $0x4] sm:$0xf]
      %v282 = vld [vmem:[%s273 + $0x8] sm:$0xf]
      %v283 = vld [vmem:[%s273 + $0xc] sm:$0xf]
      %v284 = vld [vmem:[%s273 + $0x10] sm:$0xf]
      %v285 = vld [vmem:[%s273 + $0x14] sm:$0xf]
      %v286 = vld [vmem:[%s273 + $0x18] sm:$0xf]
      %v287 = vld [vmem:[%s273 + $0x1c] sm:$0xf]
      %v288 = vld [vmem:[%s273 + $0x20] sm:$0xf]
      %v289 = vld [vmem:[%s273 + $0x24] sm:$0xf]
      %v290 = vld [vmem:[%s273 + $0x28] sm:$0xf]
      %v291 = vld [vmem:[%s273 + $0x2c] sm:$0xf]
      %v292 = vld [vmem:[%s273 + $0x30] sm:$0xf]
      %v293 = vld [vmem:[%s273 + $0x34] sm:$0xf]
      %v294 = vld [vmem:[%s273 + $0x38] sm:$0xf]
      %v295 = vld [vmem:[%s273 + $0x3c] sm:$0xf]
      %v296 = vld [vmem:[%s273 + $0x40] sm:$0xf]
      %v297 = vld [vmem:[%s273 + $0x44] sm:$0xf]
      %v298 = vld [vmem:[%s273 + $0x48] sm:$0xf]
      %v299 = vld [vmem:[%s273 + $0x4c] sm:$0xf]
      %v300 = vld [vmem:[%s273 + $0x50] sm:$0xf]
      %v301 = vld [vmem:[%s273 + $0x54] sm:$0xf]
      %v302 = vld [vmem:[%s273 + $0x58] sm:$0xf]
      %v303 = vld [vmem:[%s273 + $0x5c] sm:$0xf]
      %v304 = vld [vmem:[%s273 + $0x60] sm:$0xf]
      %v305 = vld [vmem:[%s273 + $0x64] sm:$0xf]
      %v306 = vld [vmem:[%s273 + $0x68] sm:$0xf]
      %v307 = vld [vmem:[%s273 + $0x6c] sm:$0xf]
      %v308 = vld [vmem:[%s273 + $0x70] sm:$0xf]
      %v309 = vld [vmem:[%s273 + $0x74] sm:$0xf]
      %v310 = vld [vmem:[%s273 + $0x78] sm:$0xf]
      %v311 = vld [vmem:[%s273 + $0x7c] sm:$0xf]
      %vm312 = vcmask 27648
      %313 = vst.msk [vmem:[#allocation2] sm:$0xf] %vm312, 0
      %314 = vst.msk [vmem:[#allocation2 + $0x4] sm:$0xf] %vm312, 0
      %vm315 = vcmask 24576
      %316 = vst.msk [vmem:[#allocation2 + $0x8] sm:$0x1] %vm315, 0
      %317 = vst.msk [vmem:[#allocation2 + $0xc] sm:$0xf] %vm312, 0
      %318 = vst.msk [vmem:[#allocation2 + $0x10] sm:$0xf] %vm312, 0
      %319 = vst.msk [vmem:[#allocation2 + $0x14] sm:$0x1] %vm315, 0
      %320 = vst.msk [vmem:[#allocation2 + $0x18] sm:$0xf] %vm312, 0
      %321 = vst.msk [vmem:[#allocation2 + $0x1c] sm:$0xf] %vm312, 0
      %322 = vst.msk [vmem:[#allocation2 + $0x20] sm:$0x1] %vm315, 0
      %323 = vst.msk [vmem:[#allocation2 + $0x24] sm:$0xf] %vm312, 0
      %324 = vst.msk [vmem:[#allocation2 + $0x28] sm:$0xf] %vm312, 0
      %325 = vst.msk [vmem:[#allocation2 + $0x2c] sm:$0x1] %vm315, 0
      %326 = vst.msk [vmem:[#allocation2 + $0x30] sm:$0xf] %vm312, 0
      %327 = vst.msk [vmem:[#allocation2 + $0x34] sm:$0xf] %vm312, 0
      %328 = vst.msk [vmem:[#allocation2 + $0x38] sm:$0x1] %vm315, 0
      %329 = vst.msk [vmem:[#allocation2 + $0x3c] sm:$0xf] %vm312, 0
      %330 = vst.msk [vmem:[#allocation2 + $0x40] sm:$0xf] %vm312, 0
      %331 = vst.msk [vmem:[#allocation2 + $0x44] sm:$0x1] %vm315, 0
      %332 = vst.msk [vmem:[#allocation2 + $0x48] sm:$0xf] %vm312, 0
      %333 = vst.msk [vmem:[#allocation2 + $0x4c] sm:$0xf] %vm312, 0
      %334 = vst.msk [vmem:[#allocation2 + $0x50] sm:$0x1] %vm315, 0
      %335 = vst.msk [vmem:[#allocation2 + $0x54] sm:$0xf] %vm312, 0
      %336 = vst.msk [vmem:[#allocation2 + $0x58] sm:$0xf] %vm312, 0
      %337 = vst.msk [vmem:[#allocation2 + $0x5c] sm:$0x1] %vm315, 0
      %338 = vst.msk [vmem:[#allocation2 + $0x60] sm:$0xf] %vm312, 0
      %339 = vst.msk [vmem:[#allocation2 + $0x64] sm:$0xf] %vm312, 0
      %340 = vst.msk [vmem:[#allocation2 + $0x68] sm:$0x1] %vm315, 0
      %341 = vst.msk [vmem:[#allocation2 + $0x6c] sm:$0xf] %vm312, 0
      %342 = vst.msk [vmem:[#allocation2 + $0x70] sm:$0xf] %vm312, 0
      %343 = vst.msk [vmem:[#allocation2 + $0x74] sm:$0x1] %vm315, 0
      %344 = vst.msk [vmem:[#allocation2 + $0x78] sm:$0xf] %vm312, 0
      %345 = vst.msk [vmem:[#allocation2 + $0x7c] sm:$0xf] %vm312, 0
      %346 = vst.msk [vmem:[#allocation2 + $0x80] sm:$0x1] %vm315, 0
      %347 = vst.msk [vmem:[#allocation2 + $0x84] sm:$0xf] %vm312, 0
      %348 = vst.msk [vmem:[#allocation2 + $0x88] sm:$0xf] %vm312, 0
      %349 = vst.msk [vmem:[#allocation2 + $0x8c] sm:$0x1] %vm315, 0
      %350 = vst.msk [vmem:[#allocation2 + $0x90] sm:$0xf] %vm312, 0
      %351 = vst.msk [vmem:[#allocation2 + $0x94] sm:$0xf] %vm312, 0
      %352 = vst.msk [vmem:[#allocation2 + $0x98] sm:$0x1] %vm315, 0
      %353 = vst.msk [vmem:[#allocation2 + $0x9c] sm:$0xf] %vm312, 0
      %354 = vst.msk [vmem:[#allocation2 + $0xa0] sm:$0xf] %vm312, 0
      %355 = vst.msk [vmem:[#allocation2 + $0xa4] sm:$0x1] %vm315, 0
      %356 = vst.msk [vmem:[#allocation2 + $0xa8] sm:$0xf] %vm312, 0
      %357 = vst.msk [vmem:[#allocation2 + $0xac] sm:$0xf] %vm312, 0
      %358 = vst.msk [vmem:[#allocation2 + $0xb0] sm:$0x1] %vm315, 0
      %359 = vst.msk [vmem:[#allocation2 + $0xb4] sm:$0xf] %vm312, 0
      %360 = vst.msk [vmem:[#allocation2 + $0xb8] sm:$0xf] %vm312, 0
      %361 = vst.msk [vmem:[#allocation2 + $0xbc] sm:$0x1] %vm315, 0
      %362 = vst.msk [vmem:[#allocation2 + $0xc0] sm:$0xf] %vm312, 0
      %363 = vst.msk [vmem:[#allocation2 + $0xc4] sm:$0xf] %vm312, 0
      %364 = vst.msk [vmem:[#allocation2 + $0xc8] sm:$0x1] %vm315, 0
      %365 = vst.msk [vmem:[#allocation2 + $0xcc] sm:$0xf] %vm312, 0
      %366 = vst.msk [vmem:[#allocation2 + $0xd0] sm:$0xf] %vm312, 0
      %367 = vst.msk [vmem:[#allocation2 + $0xd4] sm:$0x1] %vm315, 0
      %vm368 = vsmask.f32 256
      %vm369 = vsmask.f32 4368
      %vm370 = vmor %vm368, %vm369
      %v372 = vshrl.u32 %v280, 16
      %v374 = vrot.slane %v372, 7
      %v375 = vshll.u32 %v280, 16
      %v377 = vor.u32 %v374, %v375
      %v378 = vrot.slane %v374, 4
      %v380 = vshrl.u32 %v281, 16
      %v382 = vrot.slane %v380, 7
      %v383 = vshll.u32 %v281, 16
      %v385 = vor.u32 %v382, %v383
      %v386 = vsel %vm370, %v378, %v385
      %v387 = vrot.slane %v382, 4
      %v389 = vshrl.u32 %v282, 16
      %v391 = vrot.slane %v389, 7
      %v392 = vshll.u32 %v282, 16
      %v394 = vor.u32 %v391, %v392
      %v395 = vrot.slane %v391, 4
      %v397 = vshrl.u32 %v283, 16
      %v399 = vrot.slane %v397, 7
      %v400 = vshll.u32 %v283, 16
      %v402 = vor.u32 %v399, %v400
      %v403 = vsel %vm370, %v395, %v402
      %v404 = vrot.slane %v399, 4
      %v406 = vshrl.u32 %v284, 16
      %v408 = vrot.slane %v406, 7
      %v409 = vshll.u32 %v284, 16
      %v411 = vor.u32 %v408, %v409
      %v412 = vrot.slane %v408, 4
      %v414 = vshrl.u32 %v285, 16
      %v416 = vrot.slane %v414, 7
      %v417 = vshll.u32 %v285, 16
      %v419 = vor.u32 %v416, %v417
      %v420 = vsel %vm370, %v412, %v419
      %v421 = vrot.slane %v416, 4
      %v423 = vshrl.u32 %v286, 16
      %v425 = vrot.slane %v423, 7
      %v426 = vshll.u32 %v286, 16
      %v428 = vor.u32 %v425, %v426
      %v429 = vrot.slane %v425, 4
      %v431 = vshrl.u32 %v287, 16
      %v433 = vrot.slane %v431, 7
      %v434 = vshll.u32 %v287, 16
      %v436 = vor.u32 %v433, %v434
      %v437 = vsel %vm370, %v429, %v436
      %v438 = vrot.slane %v433, 4
      %v440 = vshrl.u32 %v288, 16
      %v442 = vrot.slane %v440, 7
      %v443 = vshll.u32 %v288, 16
      %v445 = vor.u32 %v442, %v443
      %v446 = vrot.slane %v442, 4
      %v448 = vshrl.u32 %v289, 16
      %v450 = vrot.slane %v448, 7
      %v451 = vshll.u32 %v289, 16
      %v453 = vor.u32 %v450, %v451
      %v454 = vsel %vm370, %v446, %v453
      %v455 = vrot.slane %v450, 4
      %v457 = vshrl.u32 %v290, 16
      %v459 = vrot.slane %v457, 7
      %v460 = vshll.u32 %v290, 16
      %v462 = vor.u32 %v459, %v460
      %v463 = vrot.slane %v459, 4
      %v465 = vshrl.u32 %v291, 16
      %v467 = vrot.slane %v465, 7
      %v468 = vshll.u32 %v291, 16
      %v470 = vor.u32 %v467, %v468
      %v471 = vsel %vm370, %v463, %v470
      %v472 = vrot.slane %v467, 4
      %v474 = vshrl.u32 %v292, 16
      %v476 = vrot.slane %v474, 7
      %v477 = vshll.u32 %v292, 16
      %v479 = vor.u32 %v476, %v477
      %v480 = vrot.slane %v476, 4
      %v482 = vshrl.u32 %v293, 16
      %v484 = vrot.slane %v482, 7
      %v485 = vshll.u32 %v293, 16
      %v487 = vor.u32 %v484, %v485
      %v488 = vsel %vm370, %v480, %v487
      %v489 = vrot.slane %v484, 4
      %v491 = vshrl.u32 %v294, 16
      %v493 = vrot.slane %v491, 7
      %v494 = vshll.u32 %v294, 16
      %v496 = vor.u32 %v493, %v494
      %v497 = vrot.slane %v493, 4
      %v499 = vshrl.u32 %v295, 16
      %v501 = vrot.slane %v499, 7
      %v502 = vshll.u32 %v295, 16
      %v504 = vor.u32 %v501, %v502
      %v505 = vsel %vm370, %v497, %v504
      %v506 = vrot.slane %v501, 4
      %v508 = vshrl.u32 %v296, 16
      %v510 = vrot.slane %v508, 7
      %v511 = vshll.u32 %v296, 16
      %v513 = vor.u32 %v510, %v511
      %v514 = vrot.slane %v510, 4
      %v516 = vshrl.u32 %v297, 16
      %v518 = vrot.slane %v516, 7
      %v519 = vshll.u32 %v297, 16
      %v521 = vor.u32 %v518, %v519
      %v522 = vsel %vm370, %v514, %v521
      %v523 = vrot.slane %v518, 4
      %v525 = vshrl.u32 %v298, 16
      %v527 = vrot.slane %v525, 7
      %v528 = vshll.u32 %v298, 16
      %v530 = vor.u32 %v527, %v528
      %v531 = vrot.slane %v527, 4
      %v533 = vshrl.u32 %v299, 16
      %v535 = vrot.slane %v533, 7
      %v536 = vshll.u32 %v299, 16
      %v538 = vor.u32 %v535, %v536
      %v539 = vsel %vm370, %v531, %v538
      %v540 = vrot.slane %v535, 4
      %v542 = vshrl.u32 %v300, 16
      %v544 = vrot.slane %v542, 7
      %v545 = vshll.u32 %v300, 16
      %v547 = vor.u32 %v544, %v545
      %v548 = vrot.slane %v544, 4
      %v550 = vshrl.u32 %v301, 16
      %v552 = vrot.slane %v550, 7
      %v553 = vshll.u32 %v301, 16
      %v555 = vor.u32 %v552, %v553
      %v556 = vsel %vm370, %v548, %v555
      %v557 = vrot.slane %v552, 4
      %v559 = vshrl.u32 %v302, 16
      %v561 = vrot.slane %v559, 7
      %v562 = vshll.u32 %v302, 16
      %v564 = vor.u32 %v561, %v562
      %v565 = vrot.slane %v561, 4
      %v567 = vshrl.u32 %v303, 16
      %v569 = vrot.slane %v567, 7
      %v570 = vshll.u32 %v303, 16
      %v572 = vor.u32 %v569, %v570
      %v573 = vsel %vm370, %v565, %v572
      %v574 = vrot.slane %v569, 4
      %v576 = vshrl.u32 %v304, 16
      %v578 = vrot.slane %v576, 7
      %v579 = vshll.u32 %v304, 16
      %v581 = vor.u32 %v578, %v579
      %v582 = vrot.slane %v578, 4
      %v584 = vshrl.u32 %v305, 16
      %v586 = vrot.slane %v584, 7
      %v587 = vshll.u32 %v305, 16
      %v589 = vor.u32 %v586, %v587
      %v590 = vsel %vm370, %v582, %v589
      %v591 = vrot.slane %v586, 4
      %v593 = vshrl.u32 %v306, 16
      %v595 = vrot.slane %v593, 7
      %v596 = vshll.u32 %v306, 16
      %v598 = vor.u32 %v595, %v596
      %v599 = vrot.slane %v595, 4
      %v601 = vshrl.u32 %v307, 16
      %v603 = vrot.slane %v601, 7
      %v604 = vshll.u32 %v307, 16
      %v606 = vor.u32 %v603, %v604
      %v607 = vsel %vm370, %v599, %v606
      %v608 = vrot.slane %v603, 4
      %v610 = vshrl.u32 %v308, 16
      %v612 = vrot.slane %v610, 7
      %v613 = vshll.u32 %v308, 16
      %v615 = vor.u32 %v612, %v613
      %v616 = vrot.slane %v612, 4
      %v618 = vshrl.u32 %v309, 16
      %v620 = vrot.slane %v618, 7
      %v621 = vshll.u32 %v309, 16
      %v623 = vor.u32 %v620, %v621
      %v624 = vsel %vm370, %v616, %v623
      %v625 = vrot.slane %v620, 4
      %v627 = vshrl.u32 %v310, 16
      %v629 = vrot.slane %v627, 7
      %v630 = vshll.u32 %v310, 16
      %v632 = vor.u32 %v629, %v630
      %v633 = vrot.slane %v629, 4
      %v635 = vshrl.u32 %v311, 16
      %v637 = vrot.slane %v635, 7
      %v638 = vshll.u32 %v311, 16
      %v640 = vor.u32 %v637, %v638
      %v641 = vsel %vm370, %v633, %v640
      %v642 = vrot.slane %v637, 4
      %s691 = scalar_lea.vmem [#allocation2], 12
      %vm692 = vcmask 27648
      %vm693 = vsmask.f32 7938
      %vm694 = vmand %vm692, %vm693
      %v695 = vld [vmem:[%s691] sm:$0xf]
      %v696 = vsel %vm694, %v377, %v695
      %697 = vst [vmem:[%s691] sm:$0xf] %v696
      %698 = vst.msk [vmem:[%s691 + $0x4] sm:$0xf] %vm312, %v386
      %vm699 = vcmask 24576
      %vm700 = vmand %vm699, %vm368
      %v701 = vld [vmem:[%s691 + $0x8] sm:$0x1]
      %v702 = vsel %vm700, %v387, %v701
      %703 = vst [vmem:[%s691 + $0x8] sm:$0x1] %v702
      %v704 = vld [vmem:[%s691 + $0xc] sm:$0xf]
      %v705 = vsel %vm694, %v394, %v704
      %706 = vst [vmem:[%s691 + $0xc] sm:$0xf] %v705
      %707 = vst.msk [vmem:[%s691 + $0x10] sm:$0xf] %vm312, %v403
      %v708 = vld [vmem:[%s691 + $0x14] sm:$0x1]
      %v709 = vsel %vm700, %v404, %v708
      %710 = vst [vmem:[%s691 + $0x14] sm:$0x1] %v709
      %v711 = vld [vmem:[%s691 + $0x18] sm:$0xf]
      %v712 = vsel %vm694, %v411, %v711
      %713 = vst [vmem:[%s691 + $0x18] sm:$0xf] %v712
      %714 = vst.msk [vmem:[%s691 + $0x1c] sm:$0xf] %vm312, %v420
      %v715 = vld [vmem:[%s691 + $0x20] sm:$0x1]
      %v716 = vsel %vm700, %v421, %v715
      %717 = vst [vmem:[%s691 + $0x20] sm:$0x1] %v716
      %v718 = vld [vmem:[%s691 + $0x24] sm:$0xf]
      %v719 = vsel %vm694, %v428, %v718
      %720 = vst [vmem:[%s691 + $0x24] sm:$0xf] %v719
      %721 = vst.msk [vmem:[%s691 + $0x28] sm:$0xf] %vm312, %v437
      %v722 = vld [vmem:[%s691 + $0x2c] sm:$0x1]
      %v723 = vsel %vm700, %v438, %v722
      %724 = vst [vmem:[%s691 + $0x2c] sm:$0x1] %v723
      %v725 = vld [vmem:[%s691 + $0x30] sm:$0xf]
      %v726 = vsel %vm694, %v445, %v725
      %727 = vst [vmem:[%s691 + $0x30] sm:$0xf] %v726
      %728 = vst.msk [vmem:[%s691 + $0x34] sm:$0xf] %vm312, %v454
      %v729 = vld [vmem:[%s691 + $0x38] sm:$0x1]
      %v730 = vsel %vm700, %v455, %v729
      %731 = vst [vmem:[%s691 + $0x38] sm:$0x1] %v730
      %v732 = vld [vmem:[%s691 + $0x3c] sm:$0xf]
      %v733 = vsel %vm694, %v462, %v732
      %734 = vst [vmem:[%s691 + $0x3c] sm:$0xf] %v733
      %735 = vst.msk [vmem:[%s691 + $0x40] sm:$0xf] %vm312, %v471
      %v736 = vld [vmem:[%s691 + $0x44] sm:$0x1]
      %v737 = vsel %vm700, %v472, %v736
      %738 = vst [vmem:[%s691 + $0x44] sm:$0x1] %v737
      %v739 = vld [vmem:[%s691 + $0x48] sm:$0xf]
      %v740 = vsel %vm694, %v479, %v739
      %741 = vst [vmem:[%s691 + $0x48] sm:$0xf] %v740
      %742 = vst.msk [vmem:[%s691 + $0x4c] sm:$0xf] %vm312, %v488
      %v743 = vld [vmem:[%s691 + $0x50] sm:$0x1]
      %v744 = vsel %vm700, %v489, %v743
      %745 = vst [vmem:[%s691 + $0x50] sm:$0x1] %v744
      %v746 = vld [vmem:[%s691 + $0x54] sm:$0xf]
      %v747 = vsel %vm694, %v496, %v746
      %748 = vst [vmem:[%s691 + $0x54] sm:$0xf] %v747
      %749 = vst.msk [vmem:[%s691 + $0x58] sm:$0xf] %vm312, %v505
      %v750 = vld [vmem:[%s691 + $0x5c] sm:$0x1]
      %v751 = vsel %vm700, %v506, %v750
      %752 = vst [vmem:[%s691 + $0x5c] sm:$0x1] %v751
      %v753 = vld [vmem:[%s691 + $0x60] sm:$0xf]
      %v754 = vsel %vm694, %v513, %v753
      %755 = vst [vmem:[%s691 + $0x60] sm:$0xf] %v754
      %756 = vst.msk [vmem:[%s691 + $0x64] sm:$0xf] %vm312, %v522
      %v757 = vld [vmem:[%s691 + $0x68] sm:$0x1]
      %v758 = vsel %vm700, %v523, %v757
      %759 = vst [vmem:[%s691 + $0x68] sm:$0x1] %v758
      %v760 = vld [vmem:[%s691 + $0x6c] sm:$0xf]
      %v761 = vsel %vm694, %v530, %v760
      %762 = vst [vmem:[%s691 + $0x6c] sm:$0xf] %v761
      %763 = vst.msk [vmem:[%s691 + $0x70] sm:$0xf] %vm312, %v539
      %v764 = vld [vmem:[%s691 + $0x74] sm:$0x1]
      %v765 = vsel %vm700, %v540, %v764
      %766 = vst [vmem:[%s691 + $0x74] sm:$0x1] %v765
      %v767 = vld [vmem:[%s691 + $0x78] sm:$0xf]
      %v768 = vsel %vm694, %v547, %v767
      %769 = vst [vmem:[%s691 + $0x78] sm:$0xf] %v768
      %770 = vst.msk [vmem:[%s691 + $0x7c] sm:$0xf] %vm312, %v556
      %v771 = vld [vmem:[%s691 + $0x80] sm:$0x1]
      %v772 = vsel %vm700, %v557, %v771
      %773 = vst [vmem:[%s691 + $0x80] sm:$0x1] %v772
      %v774 = vld [vmem:[%s691 + $0x84] sm:$0xf]
      %v775 = vsel %vm694, %v564, %v774
      %776 = vst [vmem:[%s691 + $0x84] sm:$0xf] %v775
      %777 = vst.msk [vmem:[%s691 + $0x88] sm:$0xf] %vm312, %v573
      %v778 = vld [vmem:[%s691 + $0x8c] sm:$0x1]
      %v779 = vsel %vm700, %v574, %v778
      %780 = vst [vmem:[%s691 + $0x8c] sm:$0x1] %v779
      %v781 = vld [vmem:[%s691 + $0x90] sm:$0xf]
      %v782 = vsel %vm694, %v581, %v781
      %783 = vst [vmem:[%s691 + $0x90] sm:$0xf] %v782
      %784 = vst.msk [vmem:[%s691 + $0x94] sm:$0xf] %vm312, %v590
      %v785 = vld [vmem:[%s691 + $0x98] sm:$0x1]
      %v786 = vsel %vm700, %v591, %v785
      %787 = vst [vmem:[%s691 + $0x98] sm:$0x1] %v786
      %v788 = vld [vmem:[%s691 + $0x9c] sm:$0xf]
      %v789 = vsel %vm694, %v598, %v788
      %790 = vst [vmem:[%s691 + $0x9c] sm:$0xf] %v789
      %791 = vst.msk [vmem:[%s691 + $0xa0] sm:$0xf] %vm312, %v607
      %v792 = vld [vmem:[%s691 + $0xa4] sm:$0x1]
      %v793 = vsel %vm700, %v608, %v792
      %794 = vst [vmem:[%s691 + $0xa4] sm:$0x1] %v793
      %v795 = vld [vmem:[%s691 + $0xa8] sm:$0xf]
      %v796 = vsel %vm694, %v615, %v795
      %797 = vst [vmem:[%s691 + $0xa8] sm:$0xf] %v796
      %798 = vst.msk [vmem:[%s691 + $0xac] sm:$0xf] %vm312, %v624
      %v799 = vld [vmem:[%s691 + $0xb0] sm:$0x1]
      %v800 = vsel %vm700, %v625, %v799
      %801 = vst [vmem:[%s691 + $0xb0] sm:$0x1] %v800
      %v802 = vld [vmem:[%s691 + $0xb4] sm:$0xf]
      %v803 = vsel %vm694, %v632, %v802
      %804 = vst [vmem:[%s691 + $0xb4] sm:$0xf] %v803
      %805 = vst.msk [vmem:[%s691 + $0xb8] sm:$0xf] %vm312, %v641
      %v806 = vld [vmem:[%s691 + $0xbc] sm:$0x1]
      %v807 = vsel %vm700, %v642, %v806
      %808 = vst [vmem:[%s691 + $0xbc] sm:$0x1] %v807
      %v809 = vld [vmem:[#allocation2] sm:$0xf]
      %v810 = vld [vmem:[#allocation2 + $0x4] sm:$0xf]
      %v811 = vld [vmem:[#allocation2 + $0x8] sm:$0x1]
      %v812 = vld [vmem:[#allocation2 + $0xc] sm:$0xf]
      %v813 = vld [vmem:[#allocation2 + $0x10] sm:$0xf]
      %v814 = vld [vmem:[#allocation2 + $0x14] sm:$0x1]
      %v815 = vld [vmem:[#allocation2 + $0x18] sm:$0xf]
      %v816 = vld [vmem:[#allocation2 + $0x1c] sm:$0xf]
      %v817 = vld [vmem:[#allocation2 + $0x20] sm:$0x1]
      %v818 = vld [vmem:[#allocation2 + $0x24] sm:$0xf]
      %v819 = vld [vmem:[#allocation2 + $0x28] sm:$0xf]
      %v820 = vld [vmem:[#allocation2 + $0x2c] sm:$0x1]
      %v821 = vld [vmem:[#allocation2 + $0x30] sm:$0xf]
      %v822 = vld [vmem:[#allocation2 + $0x34] sm:$0xf]
      %v823 = vld [vmem:[#allocation2 + $0x38] sm:$0x1]
      %v824 = vld [vmem:[#allocation2 + $0x3c] sm:$0xf]
      %v825 = vld [vmem:[#allocation2 + $0x40] sm:$0xf]
      %v826 = vld [vmem:[#allocation2 + $0x44] sm:$0x1]
      %v827 = vld [vmem:[#allocation2 + $0x48] sm:$0xf]
      %v828 = vld [vmem:[#allocation2 + $0x4c] sm:$0xf]
      %v829 = vld [vmem:[#allocation2 + $0x50] sm:$0x1]
      %v830 = vld [vmem:[#allocation2 + $0x54] sm:$0xf]
      %v831 = vld [vmem:[#allocation2 + $0x58] sm:$0xf]
      %v832 = vld [vmem:[#allocation2 + $0x5c] sm:$0x1]
      %v833 = vld [vmem:[#allocation2 + $0x60] sm:$0xf]
      %v834 = vld [vmem:[#allocation2 + $0x64] sm:$0xf]
      %v835 = vld [vmem:[#allocation2 + $0x68] sm:$0x1]
      %v836 = vld [vmem:[#allocation2 + $0x6c] sm:$0xf]
      %v837 = vld [vmem:[#allocation2 + $0x70] sm:$0xf]
      %v838 = vld [vmem:[#allocation2 + $0x74] sm:$0x1]
      %v839 = vld [vmem:[#allocation2 + $0x78] sm:$0xf]
      %v840 = vld [vmem:[#allocation2 + $0x7c] sm:$0xf]
      %v841 = vld [vmem:[#allocation2 + $0x80] sm:$0x1]
      %v842 = vld [vmem:[#allocation2 + $0x84] sm:$0xf]
      %v843 = vld [vmem:[#allocation2 + $0x88] sm:$0xf]
      %v844 = vld [vmem:[#allocation2 + $0x8c] sm:$0x1]
      %v845 = vld [vmem:[#allocation2 + $0x90] sm:$0xf]
      %v846 = vld [vmem:[#allocation2 + $0x94] sm:$0xf]
      %v847 = vld [vmem:[#allocation2 + $0x98] sm:$0x1]
      %v848 = vld [vmem:[#allocation2 + $0x9c] sm:$0xf]
      %v849 = vld [vmem:[#allocation2 + $0xa0] sm:$0xf]
      %v850 = vld [vmem:[#allocation2 + $0xa4] sm:$0x1]
      %v851 = vld [vmem:[#allocation2 + $0xa8] sm:$0xf]
      %v852 = vld [vmem:[#allocation2 + $0xac] sm:$0xf]
      %v853 = vld [vmem:[#allocation2 + $0xb0] sm:$0x1]
      %v854 = vld [vmem:[#allocation2 + $0xb4] sm:$0xf]
      %v855 = vld [vmem:[#allocation2 + $0xb8] sm:$0xf]
      %v856 = vld [vmem:[#allocation2 + $0xbc] sm:$0x1]
      %v857 = vld [vmem:[#allocation2 + $0xc0] sm:$0xf]
      %v858 = vld [vmem:[#allocation2 + $0xc4] sm:$0xf]
      %v859 = vld [vmem:[#allocation2 + $0xc8] sm:$0x1]
      %v860 = vld [vmem:[#allocation2 + $0xcc] sm:$0xf]
      %v861 = vld [vmem:[#allocation2 + $0xd0] sm:$0xf]
      %v862 = vld [vmem:[#allocation2 + $0xd4] sm:$0x1]
      %vm863 = vsmask.f32 3328
      %vm864 = vsmask.f32 7440
      %vm865 = vmor %vm863, %vm864
      %v867 = vshrl.u32 %v809, 16
      %v869 = vrot.slane %v867, 4
      %v870 = vshll.u32 %v809, 16
      %v872 = vrot.slane %v870, 5
      %v873 = vor.u32 %v869, %v872
      %v874 = vrot.slane %v873, 4
      %v876 = vshll.u32 %v810, 16
      %v878 = vrot.slane %v876, 5
      %v879 = vsel %vm865, %v874, %v878
      %v880 = vshrl.u32 %v810, 16
      %v882 = vrot.slane %v880, 4
      %v883 = vor.u32 %v882, %v878
      %v884 = vrot.slane %v883, 4
      %v886 = vshll.u32 %v811, 16
      %v888 = vrot.slane %v886, 5
      %v889 = vsel %vm865, %v884, %v888
      %v891 = vshrl.u32 %v812, 16
      %v893 = vrot.slane %v891, 4
      %v894 = vshll.u32 %v812, 16
      %v896 = vrot.slane %v894, 5
      %v897 = vor.u32 %v893, %v896
      %v898 = vrot.slane %v897, 4
      %v900 = vshll.u32 %v813, 16
      %v902 = vrot.slane %v900, 5
      %v903 = vsel %vm865, %v898, %v902
      %v904 = vshrl.u32 %v813, 16
      %v906 = vrot.slane %v904, 4
      %v907 = vor.u32 %v906, %v902
      %v908 = vrot.slane %v907, 4
      %v910 = vshll.u32 %v814, 16
      %v912 = vrot.slane %v910, 5
      %v913 = vsel %vm865, %v908, %v912
      %v915 = vshrl.u32 %v815, 16
      %v917 = vrot.slane %v915, 4
      %v918 = vshll.u32 %v815, 16
      %v920 = vrot.slane %v918, 5
      %v921 = vor.u32 %v917, %v920
      %v922 = vrot.slane %v921, 4
      %v924 = vshll.u32 %v816, 16
      %v926 = vrot.slane %v924, 5
      %v927 = vsel %vm865, %v922, %v926
      %v928 = vshrl.u32 %v816, 16
      %v930 = vrot.slane %v928, 4
      %v931 = vor.u32 %v930, %v926
      %v932 = vrot.slane %v931, 4
      %v934 = vshll.u32 %v817, 16
      %v936 = vrot.slane %v934, 5
      %v937 = vsel %vm865, %v932, %v936
      %v939 = vshrl.u32 %v818, 16
      %v941 = vrot.slane %v939, 4
      %v942 = vshll.u32 %v818, 16
      %v944 = vrot.slane %v942, 5
      %v945 = vor.u32 %v941, %v944
      %v946 = vrot.slane %v945, 4
      %v948 = vshll.u32 %v819, 16
      %v950 = vrot.slane %v948, 5
      %v951 = vsel %vm865, %v946, %v950
      %v952 = vshrl.u32 %v819, 16
      %v954 = vrot.slane %v952, 4
      %v955 = vor.u32 %v954, %v950
      %v956 = vrot.slane %v955, 4
      %v958 = vshll.u32 %v820, 16
      %v960 = vrot.slane %v958, 5
      %v961 = vsel %vm865, %v956, %v960
      %v963 = vshrl.u32 %v821, 16
      %v965 = vrot.slane %v963, 4
      %v966 = vshll.u32 %v821, 16
      %v968 = vrot.slane %v966, 5
      %v969 = vor.u32 %v965, %v968
      %v970 = vrot.slane %v969, 4
      %v972 = vshll.u32 %v822, 16
      %v974 = vrot.slane %v972, 5
      %v975 = vsel %vm865, %v970, %v974
      %v976 = vshrl.u32 %v822, 16
      %v978 = vrot.slane %v976, 4
      %v979 = vor.u32 %v978, %v974
      %v980 = vrot.slane %v979, 4
      %v982 = vshll.u32 %v823, 16
      %v984 = vrot.slane %v982, 5
      %v985 = vsel %vm865, %v980, %v984
      %v987 = vshrl.u32 %v824, 16
      %v989 = vrot.slane %v987, 4
      %v990 = vshll.u32 %v824, 16
      %v992 = vrot.slane %v990, 5
      %v993 = vor.u32 %v989, %v992
      %v994 = vrot.slane %v993, 4
      %v996 = vshll.u32 %v825, 16
      %v998 = vrot.slane %v996, 5
      %v999 = vsel %vm865, %v994, %v998
      %v1000 = vshrl.u32 %v825, 16
      %v1002 = vrot.slane %v1000, 4
      %v1003 = vor.u32 %v1002, %v998
      %v1004 = vrot.slane %v1003, 4
      %v1006 = vshll.u32 %v826, 16
      %v1008 = vrot.slane %v1006, 5
      %v1009 = vsel %vm865, %v1004, %v1008
      %v1011 = vshrl.u32 %v827, 16
      %v1013 = vrot.slane %v1011, 4
      %v1014 = vshll.u32 %v827, 16
      %v1016 = vrot.slane %v1014, 5
      %v1017 = vor.u32 %v1013, %v1016
      %v1018 = vrot.slane %v1017, 4
      %v1020 = vshll.u32 %v828, 16
      %v1022 = vrot.slane %v1020, 5
      %v1023 = vsel %vm865, %v1018, %v1022
      %v1024 = vshrl.u32 %v828, 16
      %v1026 = vrot.slane %v1024, 4
      %v1027 = vor.u32 %v1026, %v1022
      %v1028 = vrot.slane %v1027, 4
      %v1030 = vshll.u32 %v829, 16
      %v1032 = vrot.slane %v1030, 5
      %v1033 = vsel %vm865, %v1028, %v1032
      %v1035 = vshrl.u32 %v830, 16
      %v1037 = vrot.slane %v1035, 4
      %v1038 = vshll.u32 %v830, 16
      %v1040 = vrot.slane %v1038, 5
      %v1041 = vor.u32 %v1037, %v1040
      %v1042 = vrot.slane %v1041, 4
      %v1044 = vshll.u32 %v831, 16
      %v1046 = vrot.slane %v1044, 5
      %v1047 = vsel %vm865, %v1042, %v1046
      %v1048 = vshrl.u32 %v831, 16
      %v1050 = vrot.slane %v1048, 4
      %v1051 = vor.u32 %v1050, %v1046
      %v1052 = vrot.slane %v1051, 4
      %v1054 = vshll.u32 %v832, 16
      %v1056 = vrot.slane %v1054, 5
      %v1057 = vsel %vm865, %v1052, %v1056
      %v1059 = vshrl.u32 %v833, 16
      %v1061 = vrot.slane %v1059, 4
      %v1062 = vshll.u32 %v833, 16
      %v1064 = vrot.slane %v1062, 5
      %v1065 = vor.u32 %v1061, %v1064
      %v1066 = vrot.slane %v1065, 4
      %v1068 = vshll.u32 %v834, 16
      %v1070 = vrot.slane %v1068, 5
      %v1071 = vsel %vm865, %v1066, %v1070
      %v1072 = vshrl.u32 %v834, 16
      %v1074 = vrot.slane %v1072, 4
      %v1075 = vor.u32 %v1074, %v1070
      %v1076 = vrot.slane %v1075, 4
      %v1078 = vshll.u32 %v835, 16
      %v1080 = vrot.slane %v1078, 5
      %v1081 = vsel %vm865, %v1076, %v1080
      %v1083 = vshrl.u32 %v836, 16
      %v1085 = vrot.slane %v1083, 4
      %v1086 = vshll.u32 %v836, 16
      %v1088 = vrot.slane %v1086, 5
      %v1089 = vor.u32 %v1085, %v1088
      %v1090 = vrot.slane %v1089, 4
      %v1092 = vshll.u32 %v837, 16
      %v1094 = vrot.slane %v1092, 5
      %v1095 = vsel %vm865, %v1090, %v1094
      %v1096 = vshrl.u32 %v837, 16
      %v1098 = vrot.slane %v1096, 4
      %v1099 = vor.u32 %v1098, %v1094
      %v1100 = vrot.slane %v1099, 4
      %v1102 = vshll.u32 %v838, 16
      %v1104 = vrot.slane %v1102, 5
      %v1105 = vsel %vm865, %v1100, %v1104
      %v1107 = vshrl.u32 %v839, 16
      %v1109 = vrot.slane %v1107, 4
      %v1110 = vshll.u32 %v839, 16
      %v1112 = vrot.slane %v1110, 5
      %v1113 = vor.u32 %v1109, %v1112
      %v1114 = vrot.slane %v1113, 4
      %v1116 = vshll.u32 %v840, 16
      %v1118 = vrot.slane %v1116, 5
      %v1119 = vsel %vm865, %v1114, %v1118
      %v1120 = vshrl.u32 %v840, 16
      %v1122 = vrot.slane %v1120, 4
      %v1123 = vor.u32 %v1122, %v1118
      %v1124 = vrot.slane %v1123, 4
      %v1126 = vshll.u32 %v841, 16
      %v1128 = vrot.slane %v1126, 5
      %v1129 = vsel %vm865, %v1124, %v1128
      %v1131 = vshrl.u32 %v842, 16
      %v1133 = vrot.slane %v1131, 4
      %v1134 = vshll.u32 %v842, 16
      %v1136 = vrot.slane %v1134, 5
      %v1137 = vor.u32 %v1133, %v1136
      %v1138 = vrot.slane %v1137, 4
      %v1140 = vshll.u32 %v843, 16
      %v1142 = vrot.slane %v1140, 5
      %v1143 = vsel %vm865, %v1138, %v1142
      %v1144 = vshrl.u32 %v843, 16
      %v1146 = vrot.slane %v1144, 4
      %v1147 = vor.u32 %v1146, %v1142
      %v1148 = vrot.slane %v1147, 4
      %v1150 = vshll.u32 %v844, 16
      %v1152 = vrot.slane %v1150, 5
      %v1153 = vsel %vm865, %v1148, %v1152
      %v1155 = vshrl.u32 %v845, 16
      %v1157 = vrot.slane %v1155, 4
      %v1158 = vshll.u32 %v845, 16
      %v1160 = vrot.slane %v1158, 5
      %v1161 = vor.u32 %v1157, %v1160
      %v1162 = vrot.slane %v1161, 4
      %v1164 = vshll.u32 %v846, 16
      %v1166 = vrot.slane %v1164, 5
      %v1167 = vsel %vm865, %v1162, %v1166
      %v1168 = vshrl.u32 %v846, 16
      %v1170 = vrot.slane %v1168, 4
      %v1171 = vor.u32 %v1170, %v1166
      %v1172 = vrot.slane %v1171, 4
      %v1174 = vshll.u32 %v847, 16
      %v1176 = vrot.slane %v1174, 5
      %v1177 = vsel %vm865, %v1172, %v1176
      %v1179 = vshrl.u32 %v848, 16
      %v1181 = vrot.slane %v1179, 4
      %v1182 = vshll.u32 %v848, 16
      %v1184 = vrot.slane %v1182, 5
      %v1185 = vor.u32 %v1181, %v1184
      %v1186 = vrot.slane %v1185, 4
      %v1188 = vshll.u32 %v849, 16
      %v1190 = vrot.slane %v1188, 5
      %v1191 = vsel %vm865, %v1186, %v1190
      %v1192 = vshrl.u32 %v849, 16
      %v1194 = vrot.slane %v1192, 4
      %v1195 = vor.u32 %v1194, %v1190
      %v1196 = vrot.slane %v1195, 4
      %v1198 = vshll.u32 %v850, 16
      %v1200 = vrot.slane %v1198, 5
      %v1201 = vsel %vm865, %v1196, %v1200
      %v1203 = vshrl.u32 %v851, 16
      %v1205 = vrot.slane %v1203, 4
      %v1206 = vshll.u32 %v851, 16
      %v1208 = vrot.slane %v1206, 5
      %v1209 = vor.u32 %v1205, %v1208
      %v1210 = vrot.slane %v1209, 4
      %v1212 = vshll.u32 %v852, 16
      %v1214 = vrot.slane %v1212, 5
      %v1215 = vsel %vm865, %v1210, %v1214
      %v1216 = vshrl.u32 %v852, 16
      %v1218 = vrot.slane %v1216, 4
      %v1219 = vor.u32 %v1218, %v1214
      %v1220 = vrot.slane %v1219, 4
      %v1222 = vshll.u32 %v853, 16
      %v1224 = vrot.slane %v1222, 5
      %v1225 = vsel %vm865, %v1220, %v1224
      %v1227 = vshrl.u32 %v854, 16
      %v1229 = vrot.slane %v1227, 4
      %v1230 = vshll.u32 %v854, 16
      %v1232 = vrot.slane %v1230, 5
      %v1233 = vor.u32 %v1229, %v1232
      %v1234 = vrot.slane %v1233, 4
      %v1236 = vshll.u32 %v855, 16
      %v1238 = vrot.slane %v1236, 5
      %v1239 = vsel %vm865, %v1234, %v1238
      %v1240 = vshrl.u32 %v855, 16
      %v1242 = vrot.slane %v1240, 4
      %v1243 = vor.u32 %v1242, %v1238
      %v1244 = vrot.slane %v1243, 4
      %v1246 = vshll.u32 %v856, 16
      %v1248 = vrot.slane %v1246, 5
      %v1249 = vsel %vm865, %v1244, %v1248
      %vm1298 = vcmask 1042432
      %vm1299 = vcmask 1046532
      %vm1300 = vmor %vm1298, %vm1299
      %v1301 = vrot.slane %v809, 5
      %v1302 = vrot.slane %v1301, 4
      %v1303 = vrot.slane %v810, 5
      %v1304 = vsel %vm1300, %v1302, %v1303
      %v1305 = vrot.slane %v1303, 4
      %v1306 = vrot.slane %v811, 5
      %v1307 = vsel %vm1300, %v1305, %v1306
      %v1308 = vrot.slane %v812, 5
      %v1309 = vrot.slane %v1308, 4
      %v1310 = vrot.slane %v813, 5
      %v1311 = vsel %vm1300, %v1309, %v1310
      %v1312 = vrot.slane %v1310, 4
      %v1313 = vrot.slane %v814, 5
      %v1314 = vsel %vm1300, %v1312, %v1313
      %v1315 = vrot.slane %v815, 5
      %v1316 = vrot.slane %v1315, 4
      %v1317 = vrot.slane %v816, 5
      %v1318 = vsel %vm1300, %v1316, %v1317
      %v1319 = vrot.slane %v1317, 4
      %v1320 = vrot.slane %v817, 5
      %v1321 = vsel %vm1300, %v1319, %v1320
      %v1322 = vrot.slane %v818, 5
      %v1323 = vrot.slane %v1322, 4
      %v1324 = vrot.slane %v819, 5
      %v1325 = vsel %vm1300, %v1323, %v1324
      %v1326 = vrot.slane %v1324, 4
      %v1327 = vrot.slane %v820, 5
      %v1328 = vsel %vm1300, %v1326, %v1327
      %v1329 = vrot.slane %v821, 5
      %v1330 = vrot.slane %v1329, 4
      %v1331 = vrot.slane %v822, 5
      %v1332 = vsel %vm1300, %v1330, %v1331
      %v1333 = vrot.slane %v1331, 4
      %v1334 = vrot.slane %v823, 5
      %v1335 = vsel %vm1300, %v1333, %v1334
      %v1336 = vrot.slane %v824, 5
      %v1337 = vrot.slane %v1336, 4
      %v1338 = vrot.slane %v825, 5
      %v1339 = vsel %vm1300, %v1337, %v1338
      %v1340 = vrot.slane %v1338, 4
      %v1341 = vrot.slane %v826, 5
      %v1342 = vsel %vm1300, %v1340, %v1341
      %v1343 = vrot.slane %v827, 5
      %v1344 = vrot.slane %v1343, 4
      %v1345 = vrot.slane %v828, 5
      %v1346 = vsel %vm1300, %v1344, %v1345
      %v1347 = vrot.slane %v1345, 4
      %v1348 = vrot.slane %v829, 5
      %v1349 = vsel %vm1300, %v1347, %v1348
      %v1350 = vrot.slane %v830, 5
      %v1351 = vrot.slane %v1350, 4
      %v1352 = vrot.slane %v831, 5
      %v1353 = vsel %vm1300, %v1351, %v1352
      %v1354 = vrot.slane %v1352, 4
      %v1355 = vrot.slane %v832, 5
      %v1356 = vsel %vm1300, %v1354, %v1355
      %v1357 = vrot.slane %v833, 5
      %v1358 = vrot.slane %v1357, 4
      %v1359 = vrot.slane %v834, 5
      %v1360 = vsel %vm1300, %v1358, %v1359
      %v1361 = vrot.slane %v1359, 4
      %v1362 = vrot.slane %v835, 5
      %v1363 = vsel %vm1300, %v1361, %v1362
      %v1364 = vrot.slane %v836, 5
      %v1365 = vrot.slane %v1364, 4
      %v1366 = vrot.slane %v837, 5
      %v1367 = vsel %vm1300, %v1365, %v1366
      %v1368 = vrot.slane %v1366, 4
      %v1369 = vrot.slane %v838, 5
      %v1370 = vsel %vm1300, %v1368, %v1369
      %v1371 = vrot.slane %v839, 5
      %v1372 = vrot.slane %v1371, 4
      %v1373 = vrot.slane %v840, 5
      %v1374 = vsel %vm1300, %v1372, %v1373
      %v1375 = vrot.slane %v1373, 4
      %v1376 = vrot.slane %v841, 5
      %v1377 = vsel %vm1300, %v1375, %v1376
      %v1378 = vrot.slane %v842, 5
      %v1379 = vrot.slane %v1378, 4
      %v1380 = vrot.slane %v843, 5
      %v1381 = vsel %vm1300, %v1379, %v1380
      %v1382 = vrot.slane %v1380, 4
      %v1383 = vrot.slane %v844, 5
      %v1384 = vsel %vm1300, %v1382, %v1383
      %v1385 = vrot.slane %v845, 5
      %v1386 = vrot.slane %v1385, 4
      %v1387 = vrot.slane %v846, 5
      %v1388 = vsel %vm1300, %v1386, %v1387
      %v1389 = vrot.slane %v1387, 4
      %v1390 = vrot.slane %v847, 5
      %v1391 = vsel %vm1300, %v1389, %v1390
      %v1392 = vrot.slane %v848, 5
      %v1393 = vrot.slane %v1392, 4
      %v1394 = vrot.slane %v849, 5
      %v1395 = vsel %vm1300, %v1393, %v1394
      %v1396 = vrot.slane %v1394, 4
      %v1397 = vrot.slane %v850, 5
      %v1398 = vsel %vm1300, %v1396, %v1397
      %v1399 = vrot.slane %v851, 5
      %v1400 = vrot.slane %v1399, 4
      %v1401 = vrot.slane %v852, 5
      %v1402 = vsel %vm1300, %v1400, %v1401
      %v1403 = vrot.slane %v1401, 4
      %v1404 = vrot.slane %v853, 5
      %v1405 = vsel %vm1300, %v1403, %v1404
      %v1406 = vrot.slane %v854, 5
      %v1407 = vrot.slane %v1406, 4
      %v1408 = vrot.slane %v855, 5
      %v1409 = vsel %vm1300, %v1407, %v1408
      %v1410 = vrot.slane %v1408, 4
      %v1411 = vrot.slane %v856, 5
      %v1412 = vsel %vm1300, %v1410, %v1411
      %v1414 = vshrl.u32 %v857, 16
      %v1416 = vrot.slane %v1414, 4
      %v1417 = vshll.u32 %v857, 16
      %v1419 = vrot.slane %v1417, 5
      %v1420 = vor.u32 %v1416, %v1419
      %v1421 = vrot.slane %v1420, 4
      %v1423 = vshll.u32 %v858, 16
      %v1425 = vrot.slane %v1423, 5
      %v1426 = vsel %vm865, %v1421, %v1425
      %v1427 = vshrl.u32 %v858, 16
      %v1429 = vrot.slane %v1427, 4
      %v1430 = vor.u32 %v1429, %v1425
      %v1431 = vrot.slane %v1430, 4
      %v1433 = vshll.u32 %v859, 16
      %v1435 = vrot.slane %v1433, 5
      %v1436 = vsel %vm865, %v1431, %v1435
      %v1440 = vrot.slane %v857, 5
      %v1441 = vrot.slane %v1440, 4
      %v1442 = vrot.slane %v858, 5
      %v1443 = vsel %vm1300, %v1441, %v1442
      %v1444 = vrot.slane %v1442, 4
      %v1445 = vrot.slane %v859, 5
      %v1446 = vsel %vm1300, %v1444, %v1445
      %v1448 = vshrl.u32 %v860, 16
      %v1450 = vrot.slane %v1448, 4
      %v1451 = vshll.u32 %v860, 16
      %v1453 = vrot.slane %v1451, 5
      %v1454 = vor.u32 %v1450, %v1453
      %v1455 = vrot.slane %v1454, 4
      %v1457 = vshll.u32 %v861, 16
      %v1459 = vrot.slane %v1457, 5
      %v1460 = vsel %vm865, %v1455, %v1459
      %v1461 = vshrl.u32 %v861, 16
      %v1463 = vrot.slane %v1461, 4
      %v1464 = vor.u32 %v1463, %v1459
      %v1465 = vrot.slane %v1464, 4
      %v1467 = vshll.u32 %v862, 16
      %v1469 = vrot.slane %v1467, 5
      %v1470 = vsel %vm865, %v1465, %v1469
      %v1474 = vrot.slane %v860, 5
      %v1475 = vrot.slane %v1474, 4
      %v1476 = vrot.slane %v861, 5
      %v1477 = vsel %vm1300, %v1475, %v1476
      %v1478 = vrot.slane %v1476, 4
      %v1479 = vrot.slane %v862, 5
      %v1480 = vsel %vm1300, %v1478, %v1479
      %v1481 = vunpack.c.l.b16 %v809
      %v1482 = vunpack.c.l.b16 %v810
      %v1483 = vunpack.c.l.b16 %v812
      %v1484 = vunpack.c.l.b16 %v813
      %v1485 = vunpack.c.l.b16 %v815
      %v1486 = vunpack.c.l.b16 %v816
      %v1487 = vunpack.c.l.b16 %v818
      %v1488 = vunpack.c.l.b16 %v819
      %v1489 = vunpack.c.l.b16 %v821
      %v1490 = vunpack.c.l.b16 %v822
      %v1491 = vunpack.c.l.b16 %v824
      %v1492 = vunpack.c.l.b16 %v825
      %v1493 = vunpack.c.l.b16 %v827
      %v1494 = vunpack.c.l.b16 %v828
      %v1495 = vunpack.c.l.b16 %v830
      %v1496 = vunpack.c.l.b16 %v831
      %v1497 = vunpack.c.l.b16 %v833
      %v1498 = vunpack.c.l.b16 %v834
      %v1499 = vunpack.c.l.b16 %v836
      %v1500 = vunpack.c.l.b16 %v837
      %v1501 = vunpack.c.l.b16 %v839
      %v1502 = vunpack.c.l.b16 %v840
      %v1503 = vunpack.c.l.b16 %v842
      %v1504 = vunpack.c.l.b16 %v843
      %v1505 = vunpack.c.l.b16 %v845
      %v1506 = vunpack.c.l.b16 %v846
      %v1507 = vunpack.c.l.b16 %v848
      %v1508 = vunpack.c.l.b16 %v849
      %v1509 = vunpack.c.l.b16 %v851
      %v1510 = vunpack.c.l.b16 %v852
      %v1511 = vunpack.c.l.b16 %v854
      %v1512 = vunpack.c.l.b16 %v855
      %v1513 = vpack.c.b16 %v1482, %v1481
      %v1514 = vpack.c.b16 %v1484, %v1483
      %v1515 = vpack.c.b16 %v1486, %v1485
      %v1516 = vpack.c.b16 %v1488, %v1487
      %v1517 = vpack.c.b16 %v1490, %v1489
      %v1518 = vpack.c.b16 %v1492, %v1491
      %v1519 = vpack.c.b16 %v1494, %v1493
      %v1520 = vpack.c.b16 %v1496, %v1495
      %v1521 = vpack.c.b16 %v1498, %v1497
      %v1522 = vpack.c.b16 %v1500, %v1499
      %v1523 = vpack.c.b16 %v1502, %v1501
      %v1524 = vpack.c.b16 %v1504, %v1503
      %v1525 = vpack.c.b16 %v1506, %v1505
      %v1526 = vpack.c.b16 %v1508, %v1507
      %v1527 = vpack.c.b16 %v1510, %v1509
      %v1528 = vpack.c.b16 %v1512, %v1511
      %v1529 = vunpack.c.l.b16 %v879
      %v1530 = vunpack.c.l.b16 %v889
      %v1531 = vunpack.c.l.b16 %v903
      %v1532 = vunpack.c.l.b16 %v913
      %v1533 = vunpack.c.l.b16 %v927
      %v1534 = vunpack.c.l.b16 %v937
      %v1535 = vunpack.c.l.b16 %v951
      %v1536 = vunpack.c.l.b16 %v961
      %v1537 = vunpack.c.l.b16 %v975
      %v1538 = vunpack.c.l.b16 %v985
      %v1539 = vunpack.c.l.b16 %v999
      %v1540 = vunpack.c.l.b16 %v1009
      %v1541 = vunpack.c.l.b16 %v1023
      %v1542 = vunpack.c.l.b16 %v1033
      %v1543 = vunpack.c.l.b16 %v1047
      %v1544 = vunpack.c.l.b16 %v1057
      %v1545 = vunpack.c.l.b16 %v1071
      %v1546 = vunpack.c.l.b16 %v1081
      %v1547 = vunpack.c.l.b16 %v1095
      %v1548 = vunpack.c.l.b16 %v1105
      %v1549 = vunpack.c.l.b16 %v1119
      %v1550 = vunpack.c.l.b16 %v1129
      %v1551 = vunpack.c.l.b16 %v1143
      %v1552 = vunpack.c.l.b16 %v1153
      %v1553 = vunpack.c.l.b16 %v1167
      %v1554 = vunpack.c.l.b16 %v1177
      %v1555 = vunpack.c.l.b16 %v1191
      %v1556 = vunpack.c.l.b16 %v1201
      %v1557 = vunpack.c.l.b16 %v1215
      %v1558 = vunpack.c.l.b16 %v1225
      %v1559 = vunpack.c.l.b16 %v1239
      %v1560 = vunpack.c.l.b16 %v1249
      %v1561 = vpack.c.b16 %v1530, %v1529
      %v1562 = vpack.c.b16 %v1532, %v1531
      %v1563 = vpack.c.b16 %v1534, %v1533
      %v1564 = vpack.c.b16 %v1536, %v1535
      %v1565 = vpack.c.b16 %v1538, %v1537
      %v1566 = vpack.c.b16 %v1540, %v1539
      %v1567 = vpack.c.b16 %v1542, %v1541
      %v1568 = vpack.c.b16 %v1544, %v1543
      %v1569 = vpack.c.b16 %v1546, %v1545
      %v1570 = vpack.c.b16 %v1548, %v1547
      %v1571 = vpack.c.b16 %v1550, %v1549
      %v1572 = vpack.c.b16 %v1552, %v1551
      %v1573 = vpack.c.b16 %v1554, %v1553
      %v1574 = vpack.c.b16 %v1556, %v1555
      %v1575 = vpack.c.b16 %v1558, %v1557
      %v1576 = vpack.c.b16 %v1560, %v1559
      %1577 = vrot.lane.b32.xlu0 %v1561, 4
      %v1578 = vpop.permute.xlu0 %1577
      %1579 = vrot.lane.b32.xlu0 %v1562, 4
      %v1580 = vpop.permute.xlu0 %1579
      %1581 = vrot.lane.b32.xlu0 %v1563, 4
      %v1582 = vpop.permute.xlu0 %1581
      %1583 = vrot.lane.b32.xlu0 %v1564, 4
      %v1584 = vpop.permute.xlu0 %1583
      %1585 = vrot.lane.b32.xlu0 %v1565, 4
      %v1586 = vpop.permute.xlu0 %1585
      %1587 = vrot.lane.b32.xlu0 %v1566, 4
      %v1588 = vpop.permute.xlu0 %1587
      %1589 = vrot.lane.b32.xlu0 %v1567, 4
      %v1590 = vpop.permute.xlu0 %1589
      %1591 = vrot.lane.b32.xlu0 %v1568, 4
      %v1592 = vpop.permute.xlu0 %1591
      %1593 = vrot.lane.b32.xlu0 %v1569, 4
      %v1594 = vpop.permute.xlu0 %1593
      %1595 = vrot.lane.b32.xlu0 %v1570, 4
      %v1596 = vpop.permute.xlu0 %1595
      %1597 = vrot.lane.b32.xlu0 %v1571, 4
      %v1598 = vpop.permute.xlu0 %1597
      %1599 = vrot.lane.b32.xlu0 %v1572, 4
      %v1600 = vpop.permute.xlu0 %1599
      %1601 = vrot.lane.b32.xlu0 %v1573, 4
      %v1602 = vpop.permute.xlu0 %1601
      %1603 = vrot.lane.b32.xlu0 %v1574, 4
      %v1604 = vpop.permute.xlu0 %1603
      %1605 = vrot.lane.b32.xlu0 %v1575, 4
      %v1606 = vpop.permute.xlu0 %1605
      %1607 = vrot.lane.b32.xlu0 %v1576, 4
      %v1608 = vpop.permute.xlu0 %1607
      %v1609 = vunpack.c.l.b16 %v1304
      %v1610 = vunpack.c.l.b16 %v1307
      %v1611 = vunpack.c.l.b16 %v1311
      %v1612 = vunpack.c.l.b16 %v1314
      %v1613 = vunpack.c.l.b16 %v1318
      %v1614 = vunpack.c.l.b16 %v1321
      %v1615 = vunpack.c.l.b16 %v1325
      %v1616 = vunpack.c.l.b16 %v1328
      %v1617 = vunpack.c.l.b16 %v1332
      %v1618 = vunpack.c.l.b16 %v1335
      %v1619 = vunpack.c.l.b16 %v1339
      %v1620 = vunpack.c.l.b16 %v1342
      %v1621 = vunpack.c.l.b16 %v1346
      %v1622 = vunpack.c.l.b16 %v1349
      %v1623 = vunpack.c.l.b16 %v1353
      %v1624 = vunpack.c.l.b16 %v1356
      %v1625 = vunpack.c.l.b16 %v1360
      %v1626 = vunpack.c.l.b16 %v1363
      %v1627 = vunpack.c.l.b16 %v1367
      %v1628 = vunpack.c.l.b16 %v1370
      %v1629 = vunpack.c.l.b16 %v1374
      %v1630 = vunpack.c.l.b16 %v1377
      %v1631 = vunpack.c.l.b16 %v1381
      %v1632 = vunpack.c.l.b16 %v1384
      %v1633 = vunpack.c.l.b16 %v1388
      %v1634 = vunpack.c.l.b16 %v1391
      %v1635 = vunpack.c.l.b16 %v1395
      %v1636 = vunpack.c.l.b16 %v1398
      %v1637 = vunpack.c.l.b16 %v1402
      %v1638 = vunpack.c.l.b16 %v1405
      %v1639 = vunpack.c.l.b16 %v1409
      %v1640 = vunpack.c.l.b16 %v1412
      %v1641 = vpack.c.b16 %v1610, %v1609
      %v1642 = vpack.c.b16 %v1612, %v1611
      %v1643 = vpack.c.b16 %v1614, %v1613
      %v1644 = vpack.c.b16 %v1616, %v1615
      %v1645 = vpack.c.b16 %v1618, %v1617
      %v1646 = vpack.c.b16 %v1620, %v1619
      %v1647 = vpack.c.b16 %v1622, %v1621
      %v1648 = vpack.c.b16 %v1624, %v1623
      %v1649 = vpack.c.b16 %v1626, %v1625
      %v1650 = vpack.c.b16 %v1628, %v1627
      %v1651 = vpack.c.b16 %v1630, %v1629
      %v1652 = vpack.c.b16 %v1632, %v1631
      %v1653 = vpack.c.b16 %v1634, %v1633
      %v1654 = vpack.c.b16 %v1636, %v1635
      %v1655 = vpack.c.b16 %v1638, %v1637
      %v1656 = vpack.c.b16 %v1640, %v1639
      %1657 = vrot.lane.b32.xlu0 %v1641, 8
      %v1658 = vpop.permute.xlu0 %1657
      %1659 = vrot.lane.b32.xlu0 %v1642, 8
      %v1660 = vpop.permute.xlu0 %1659
      %1661 = vrot.lane.b32.xlu0 %v1643, 8
      %v1662 = vpop.permute.xlu0 %1661
      %1663 = vrot.lane.b32.xlu0 %v1644, 8
      %v1664 = vpop.permute.xlu0 %1663
      %1665 = vrot.lane.b32.xlu0 %v1645, 8
      %v1666 = vpop.permute.xlu0 %1665
      %1667 = vrot.lane.b32.xlu0 %v1646, 8
      %v1668 = vpop.permute.xlu0 %1667
      %1669 = vrot.lane.b32.xlu0 %v1647, 8
      %v1670 = vpop.permute.xlu0 %1669
      %1671 = vrot.lane.b32.xlu0 %v1648, 8
      %v1672 = vpop.permute.xlu0 %1671
      %1673 = vrot.lane.b32.xlu0 %v1649, 8
      %v1674 = vpop.permute.xlu0 %1673
      %1675 = vrot.lane.b32.xlu0 %v1650, 8
      %v1676 = vpop.permute.xlu0 %1675
      %1677 = vrot.lane.b32.xlu0 %v1651, 8
      %v1678 = vpop.permute.xlu0 %1677
      %1679 = vrot.lane.b32.xlu0 %v1652, 8
      %v1680 = vpop.permute.xlu0 %1679
      %1681 = vrot.lane.b32.xlu0 %v1653, 8
      %v1682 = vpop.permute.xlu0 %1681
      %1683 = vrot.lane.b32.xlu0 %v1654, 8
      %v1684 = vpop.permute.xlu0 %1683
      %1685 = vrot.lane.b32.xlu0 %v1655, 8
      %v1686 = vpop.permute.xlu0 %1685
      %1687 = vrot.lane.b32.xlu0 %v1656, 8
      %v1688 = vpop.permute.xlu0 %1687
      %v1689 = vunpack.c.l.b16 %v857
      %v1690 = vunpack.c.l.b16 %v858
      %v1691 = vpack.c.b16 %v1690, %v1689
      %1692 = vrot.lane.b32.xlu0 %v1514, 12
      %v1693 = vpop.permute.xlu0 %1692
      %1694 = vrot.lane.b32.xlu0 %v1515, 12
      %v1695 = vpop.permute.xlu0 %1694
      %1696 = vrot.lane.b32.xlu0 %v1516, 12
      %v1697 = vpop.permute.xlu0 %1696
      %1698 = vrot.lane.b32.xlu0 %v1517, 12
      %v1699 = vpop.permute.xlu0 %1698
      %1700 = vrot.lane.b32.xlu0 %v1518, 12
      %v1701 = vpop.permute.xlu0 %1700
      %1702 = vrot.lane.b32.xlu0 %v1519, 12
      %v1703 = vpop.permute.xlu0 %1702
      %1704 = vrot.lane.b32.xlu0 %v1520, 12
      %v1705 = vpop.permute.xlu0 %1704
      %1706 = vrot.lane.b32.xlu0 %v1521, 12
      %v1707 = vpop.permute.xlu0 %1706
      %1708 = vrot.lane.b32.xlu0 %v1522, 12
      %v1709 = vpop.permute.xlu0 %1708
      %1710 = vrot.lane.b32.xlu0 %v1523, 12
      %v1711 = vpop.permute.xlu0 %1710
      %1712 = vrot.lane.b32.xlu0 %v1524, 12
      %v1713 = vpop.permute.xlu0 %1712
      %1714 = vrot.lane.b32.xlu0 %v1525, 12
      %v1715 = vpop.permute.xlu0 %1714
      %1716 = vrot.lane.b32.xlu0 %v1526, 12
      %v1717 = vpop.permute.xlu0 %1716
      %1718 = vrot.lane.b32.xlu0 %v1527, 12
      %v1719 = vpop.permute.xlu0 %1718
      %1720 = vrot.lane.b32.xlu0 %v1528, 12
      %v1721 = vpop.permute.xlu0 %1720
      %1722 = vrot.lane.b32.xlu0 %v1691, 12
      %v1723 = vpop.permute.xlu0 %1722
      %v1724 = vunpack.c.l.b16 %v1426
      %v1725 = vunpack.c.l.b16 %v1436
      %v1726 = vpack.c.b16 %v1725, %v1724
      %1727 = vrot.lane.b32.xlu0 %v1562, 16
      %v1728 = vpop.permute.xlu0 %1727
      %1729 = vrot.lane.b32.xlu0 %v1563, 16
      %v1730 = vpop.permute.xlu0 %1729
      %1731 = vrot.lane.b32.xlu0 %v1564, 16
      %v1732 = vpop.permute.xlu0 %1731
      %1733 = vrot.lane.b32.xlu0 %v1565, 16
      %v1734 = vpop.permute.xlu0 %1733
      %1735 = vrot.lane.b32.xlu0 %v1566, 16
      %v1736 = vpop.permute.xlu0 %1735
      %1737 = vrot.lane.b32.xlu0 %v1567, 16
      %v1738 = vpop.permute.xlu0 %1737
      %1739 = vrot.lane.b32.xlu0 %v1568, 16
      %v1740 = vpop.permute.xlu0 %1739
      %1741 = vrot.lane.b32.xlu0 %v1569, 16
      %v1742 = vpop.permute.xlu0 %1741
      %1743 = vrot.lane.b32.xlu0 %v1570, 16
      %v1744 = vpop.permute.xlu0 %1743
      %1745 = vrot.lane.b32.xlu0 %v1571, 16
      %v1746 = vpop.permute.xlu0 %1745
      %1747 = vrot.lane.b32.xlu0 %v1572, 16
      %v1748 = vpop.permute.xlu0 %1747
      %1749 = vrot.lane.b32.xlu0 %v1573, 16
      %v1750 = vpop.permute.xlu0 %1749
      %1751 = vrot.lane.b32.xlu0 %v1574, 16
      %v1752 = vpop.permute.xlu0 %1751
      %1753 = vrot.lane.b32.xlu0 %v1575, 16
      %v1754 = vpop.permute.xlu0 %1753
      %1755 = vrot.lane.b32.xlu0 %v1576, 16
      %v1756 = vpop.permute.xlu0 %1755
      %1757 = vrot.lane.b32.xlu0 %v1726, 16
      %v1758 = vpop.permute.xlu0 %1757
      %v1759 = vunpack.c.l.b16 %v1443
      %v1760 = vunpack.c.l.b16 %v1446
      %v1761 = vpack.c.b16 %v1760, %v1759
      %1762 = vrot.lane.b32.xlu0 %v1642, 20
      %v1763 = vpop.permute.xlu0 %1762
      %1764 = vrot.lane.b32.xlu0 %v1643, 20
      %v1765 = vpop.permute.xlu0 %1764
      %1766 = vrot.lane.b32.xlu0 %v1644, 20
      %v1767 = vpop.permute.xlu0 %1766
      %1768 = vrot.lane.b32.xlu0 %v1645, 20
      %v1769 = vpop.permute.xlu0 %1768
      %1770 = vrot.lane.b32.xlu0 %v1646, 20
      %v1771 = vpop.permute.xlu0 %1770
      %1772 = vrot.lane.b32.xlu0 %v1647, 20
      %v1773 = vpop.permute.xlu0 %1772
      %1774 = vrot.lane.b32.xlu0 %v1648, 20
      %v1775 = vpop.permute.xlu0 %1774
      %1776 = vrot.lane.b32.xlu0 %v1649, 20
      %v1777 = vpop.permute.xlu0 %1776
      %1778 = vrot.lane.b32.xlu0 %v1650, 20
      %v1779 = vpop.permute.xlu0 %1778
      %1780 = vrot.lane.b32.xlu0 %v1651, 20
      %v1781 = vpop.permute.xlu0 %1780
      %1782 = vrot.lane.b32.xlu0 %v1652, 20
      %v1783 = vpop.permute.xlu0 %1782
      %1784 = vrot.lane.b32.xlu0 %v1653, 20
      %v1785 = vpop.permute.xlu0 %1784
      %1786 = vrot.lane.b32.xlu0 %v1654, 20
      %v1787 = vpop.permute.xlu0 %1786
      %1788 = vrot.lane.b32.xlu0 %v1655, 20
      %v1789 = vpop.permute.xlu0 %1788
      %1790 = vrot.lane.b32.xlu0 %v1656, 20
      %v1791 = vpop.permute.xlu0 %1790
      %1792 = vrot.lane.b32.xlu0 %v1761, 20
      %v1793 = vpop.permute.xlu0 %1792
      %v1794 = vunpack.c.l.b16 %v860
      %v1795 = vunpack.c.l.b16 %v861
      %v1796 = vpack.c.b16 %v1795, %v1794
      %1797 = vrot.lane.b32.xlu0 %v1515, 24
      %v1798 = vpop.permute.xlu0 %1797
      %1799 = vrot.lane.b32.xlu0 %v1516, 24
      %v1800 = vpop.permute.xlu0 %1799
      %1801 = vrot.lane.b32.xlu0 %v1517, 24
      %v1802 = vpop.permute.xlu0 %1801
      %1803 = vrot.lane.b32.xlu0 %v1518, 24
      %v1804 = vpop.permute.xlu0 %1803
      %1805 = vrot.lane.b32.xlu0 %v1519, 24
      %v1806 = vpop.permute.xlu0 %1805
      %1807 = vrot.lane.b32.xlu0 %v1520, 24
      %v1808 = vpop.permute.xlu0 %1807
      %1809 = vrot.lane.b32.xlu0 %v1521, 24
      %v1810 = vpop.permute.xlu0 %1809
      %1811 = vrot.lane.b32.xlu0 %v1522, 24
      %v1812 = vpop.permute.xlu0 %1811
      %1813 = vrot.lane.b32.xlu0 %v1523, 24
      %v1814 = vpop.permute.xlu0 %1813
      %1815 = vrot.lane.b32.xlu0 %v1524, 24
      %v1816 = vpop.permute.xlu0 %1815
      %1817 = vrot.lane.b32.xlu0 %v1525, 24
      %v1818 = vpop.permute.xlu0 %1817
      %1819 = vrot.lane.b32.xlu0 %v1526, 24
      %v1820 = vpop.permute.xlu0 %1819
      %1821 = vrot.lane.b32.xlu0 %v1527, 24
      %v1822 = vpop.permute.xlu0 %1821
      %1823 = vrot.lane.b32.xlu0 %v1528, 24
      %v1824 = vpop.permute.xlu0 %1823
      %1825 = vrot.lane.b32.xlu0 %v1691, 24
      %v1826 = vpop.permute.xlu0 %1825
      %1827 = vrot.lane.b32.xlu0 %v1796, 24
      %v1828 = vpop.permute.xlu0 %1827
      %v1829 = vunpack.c.l.b16 %v1460
      %v1830 = vunpack.c.l.b16 %v1470
      %v1831 = vpack.c.b16 %v1830, %v1829
      %1832 = vrot.lane.b32.xlu0 %v1563, 28
      %v1833 = vpop.permute.xlu0 %1832
      %1834 = vrot.lane.b32.xlu0 %v1564, 28
      %v1835 = vpop.permute.xlu0 %1834
      %1836 = vrot.lane.b32.xlu0 %v1565, 28
      %v1837 = vpop.permute.xlu0 %1836
      %1838 = vrot.lane.b32.xlu0 %v1566, 28
      %v1839 = vpop.permute.xlu0 %1838
      %1840 = vrot.lane.b32.xlu0 %v1567, 28
      %v1841 = vpop.permute.xlu0 %1840
      %1842 = vrot.lane.b32.xlu0 %v1568, 28
      %v1843 = vpop.permute.xlu0 %1842
      %1844 = vrot.lane.b32.xlu0 %v1569, 28
      %v1845 = vpop.permute.xlu0 %1844
      %1846 = vrot.lane.b32.xlu0 %v1570, 28
      %v1847 = vpop.permute.xlu0 %1846
      %1848 = vrot.lane.b32.xlu0 %v1571, 28
      %v1849 = vpop.permute.xlu0 %1848
      %1850 = vrot.lane.b32.xlu0 %v1572, 28
      %v1851 = vpop.permute.xlu0 %1850
      %1852 = vrot.lane.b32.xlu0 %v1573, 28
      %v1853 = vpop.permute.xlu0 %1852
      %1854 = vrot.lane.b32.xlu0 %v1574, 28
      %v1855 = vpop.permute.xlu0 %1854
      %1856 = vrot.lane.b32.xlu0 %v1575, 28
      %v1857 = vpop.permute.xlu0 %1856
      %1858 = vrot.lane.b32.xlu0 %v1576, 28
      %v1859 = vpop.permute.xlu0 %1858
      %1860 = vrot.lane.b32.xlu0 %v1726, 28
      %v1861 = vpop.permute.xlu0 %1860
      %1862 = vrot.lane.b32.xlu0 %v1831, 28
      %v1863 = vpop.permute.xlu0 %1862
      %v1864 = vunpack.c.l.b16 %v1477
      %v1865 = vunpack.c.l.b16 %v1480
      %v1866 = vpack.c.b16 %v1865, %v1864
      %1867 = vrot.lane.b32.xlu0 %v1643, 32
      %v1868 = vpop.permute.xlu0 %1867
      %1869 = vrot.lane.b32.xlu0 %v1644, 32
      %v1870 = vpop.permute.xlu0 %1869
      %1871 = vrot.lane.b32.xlu0 %v1645, 32
      %v1872 = vpop.permute.xlu0 %1871
      %1873 = vrot.lane.b32.xlu0 %v1646, 32
      %v1874 = vpop.permute.xlu0 %1873
      %1875 = vrot.lane.b32.xlu0 %v1647, 32
      %v1876 = vpop.permute.xlu0 %1875
      %1877 = vrot.lane.b32.xlu0 %v1648, 32
      %v1878 = vpop.permute.xlu0 %1877
      %1879 = vrot.lane.b32.xlu0 %v1649, 32
      %v1880 = vpop.permute.xlu0 %1879
      %1881 = vrot.lane.b32.xlu0 %v1650, 32
      %v1882 = vpop.permute.xlu0 %1881
      %1883 = vrot.lane.b32.xlu0 %v1651, 32
      %v1884 = vpop.permute.xlu0 %1883
      %1885 = vrot.lane.b32.xlu0 %v1652, 32
      %v1886 = vpop.permute.xlu0 %1885
      %1887 = vrot.lane.b32.xlu0 %v1653, 32
      %v1888 = vpop.permute.xlu0 %1887
      %1889 = vrot.lane.b32.xlu0 %v1654, 32
      %v1890 = vpop.permute.xlu0 %1889
      %1891 = vrot.lane.b32.xlu0 %v1655, 32
      %v1892 = vpop.permute.xlu0 %1891
      %1893 = vrot.lane.b32.xlu0 %v1656, 32
      %v1894 = vpop.permute.xlu0 %1893
      %1895 = vrot.lane.b32.xlu0 %v1761, 32
      %v1896 = vpop.permute.xlu0 %1895
      %1897 = vrot.lane.b32.xlu0 %v1866, 32
      %v1898 = vpop.permute.xlu0 %1897
      %vm1899 = vcmask 31744
      %v1902 = vsel %vm1899, %v1513, %v1578
      %v1905 = vsel %vm1899, %v1514, %v1580
      %v1908 = vsel %vm1899, %v1515, %v1582
      %v1911 = vsel %vm1899, %v1516, %v1584
      %v1914 = vsel %vm1899, %v1517, %v1586
      %v1917 = vsel %vm1899, %v1518, %v1588
      %v1920 = vsel %vm1899, %v1519, %v1590
      %v1923 = vsel %vm1899, %v1520, %v1592
      %v1926 = vsel %vm1899, %v1521, %v1594
      %v1929 = vsel %vm1899, %v1522, %v1596
      %v1932 = vsel %vm1899, %v1523, %v1598
      %v1935 = vsel %vm1899, %v1524, %v1600
      %v1938 = vsel %vm1899, %v1525, %v1602
      %v1941 = vsel %vm1899, %v1526, %v1604
      %v1944 = vsel %vm1899, %v1527, %v1606
      %v1947 = vsel %vm1899, %v1528, %v1608
      %vm1948 = vcmask 64512
      %v1950 = vsel %vm1948, %v1902, %v1658
      %v1952 = vsel %vm1948, %v1905, %v1660
      %v1954 = vsel %vm1948, %v1908, %v1662
      %v1956 = vsel %vm1948, %v1911, %v1664
      %v1958 = vsel %vm1948, %v1914, %v1666
      %v1960 = vsel %vm1948, %v1917, %v1668
      %v1962 = vsel %vm1948, %v1920, %v1670
      %v1964 = vsel %vm1948, %v1923, %v1672
      %v1966 = vsel %vm1948, %v1926, %v1674
      %v1968 = vsel %vm1948, %v1929, %v1676
      %v1970 = vsel %vm1948, %v1932, %v1678
      %v1972 = vsel %vm1948, %v1935, %v1680
      %v1974 = vsel %vm1948, %v1938, %v1682
      %v1976 = vsel %vm1948, %v1941, %v1684
      %v1978 = vsel %vm1948, %v1944, %v1686
      %v1980 = vsel %vm1948, %v1947, %v1688
      %vm1981 = vcmask 97280
      %v1983 = vsel %vm1981, %v1950, %v1693
      %v1985 = vsel %vm1981, %v1952, %v1695
      %v1987 = vsel %vm1981, %v1954, %v1697
      %v1989 = vsel %vm1981, %v1956, %v1699
      %v1991 = vsel %vm1981, %v1958, %v1701
      %v1993 = vsel %vm1981, %v1960, %v1703
      %v1995 = vsel %vm1981, %v1962, %v1705
      %v1997 = vsel %vm1981, %v1964, %v1707
      %v1999 = vsel %vm1981, %v1966, %v1709
      %v2001 = vsel %vm1981, %v1968, %v1711
      %v2003 = vsel %vm1981, %v1970, %v1713
      %v2005 = vsel %vm1981, %v1972, %v1715
      %v2007 = vsel %vm1981, %v1974, %v1717
      %v2009 = vsel %vm1981, %v1976, %v1719
      %v2011 = vsel %vm1981, %v1978, %v1721
      %v2013 = vsel %vm1981, %v1980, %v1723
      %vm2014 = vcmask 130048
      %v2016 = vsel %vm2014, %v1983, %v1728
      %v2018 = vsel %vm2014, %v1985, %v1730
      %v2020 = vsel %vm2014, %v1987, %v1732
      %v2022 = vsel %vm2014, %v1989, %v1734
      %v2024 = vsel %vm2014, %v1991, %v1736
      %v2026 = vsel %vm2014, %v1993, %v1738
      %v2028 = vsel %vm2014, %v1995, %v1740
      %v2030 = vsel %vm2014, %v1997, %v1742
      %v2032 = vsel %vm2014, %v1999, %v1744
      %v2034 = vsel %vm2014, %v2001, %v1746
      %v2036 = vsel %vm2014, %v2003, %v1748
      %v2038 = vsel %vm2014, %v2005, %v1750
      %v2040 = vsel %vm2014, %v2007, %v1752
      %v2042 = vsel %vm2014, %v2009, %v1754
      %v2044 = vsel %vm2014, %v2011, %v1756
      %v2046 = vsel %vm2014, %v2013, %v1758
      %vm2047 = vcmask 162816
      %v2049 = vsel %vm2047, %v2016, %v1763
      %v2051 = vsel %vm2047, %v2018, %v1765
      %v2053 = vsel %vm2047, %v2020, %v1767
      %v2055 = vsel %vm2047, %v2022, %v1769
      %v2057 = vsel %vm2047, %v2024, %v1771
      %v2059 = vsel %vm2047, %v2026, %v1773
      %v2061 = vsel %vm2047, %v2028, %v1775
      %v2063 = vsel %vm2047, %v2030, %v1777
      %v2065 = vsel %vm2047, %v2032, %v1779
      %v2067 = vsel %vm2047, %v2034, %v1781
      %v2069 = vsel %vm2047, %v2036, %v1783
      %v2071 = vsel %vm2047, %v2038, %v1785
      %v2073 = vsel %vm2047, %v2040, %v1787
      %v2075 = vsel %vm2047, %v2042, %v1789
      %v2077 = vsel %vm2047, %v2044, %v1791
      %v2079 = vsel %vm2047, %v2046, %v1793
      %vm2080 = vcmask 195584
      %v2082 = vsel %vm2080, %v2049, %v1798
      %v2084 = vsel %vm2080, %v2051, %v1800
      %v2086 = vsel %vm2080, %v2053, %v1802
      %v2088 = vsel %vm2080, %v2055, %v1804
      %v2090 = vsel %vm2080, %v2057, %v1806
      %v2092 = vsel %vm2080, %v2059, %v1808
      %v2094 = vsel %vm2080, %v2061, %v1810
      %v2096 = vsel %vm2080, %v2063, %v1812
      %v2098 = vsel %vm2080, %v2065, %v1814
      %v2100 = vsel %vm2080, %v2067, %v1816
      %v2102 = vsel %vm2080, %v2069, %v1818
      %v2104 = vsel %vm2080, %v2071, %v1820
      %v2106 = vsel %vm2080, %v2073, %v1822
      %v2108 = vsel %vm2080, %v2075, %v1824
      %v2110 = vsel %vm2080, %v2077, %v1826
      %v2112 = vsel %vm2080, %v2079, %v1828
      %vm2113 = vcmask 228352
      %v2115 = vsel %vm2113, %v2082, %v1833
      %v2117 = vsel %vm2113, %v2084, %v1835
      %v2119 = vsel %vm2113, %v2086, %v1837
      %v2121 = vsel %vm2113, %v2088, %v1839
      %v2123 = vsel %vm2113, %v2090, %v1841
      %v2125 = vsel %vm2113, %v2092, %v1843
      %v2127 = vsel %vm2113, %v2094, %v1845
      %v2129 = vsel %vm2113, %v2096, %v1847
      %v2131 = vsel %vm2113, %v2098, %v1849
      %v2133 = vsel %vm2113, %v2100, %v1851
      %v2135 = vsel %vm2113, %v2102, %v1853
      %v2137 = vsel %vm2113, %v2104, %v1855
      %v2139 = vsel %vm2113, %v2106, %v1857
      %v2141 = vsel %vm2113, %v2108, %v1859
      %v2143 = vsel %vm2113, %v2110, %v1861
      %v2145 = vsel %vm2113, %v2112, %v1863
      %vm2146 = vcmask 261120
      %v2148 = vsel %vm2146, %v2115, %v1868
      %v2150 = vsel %vm2146, %v2117, %v1870
      %v2152 = vsel %vm2146, %v2119, %v1872
      %v2154 = vsel %vm2146, %v2121, %v1874
      %v2156 = vsel %vm2146, %v2123, %v1876
      %v2158 = vsel %vm2146, %v2125, %v1878
      %v2160 = vsel %vm2146, %v2127, %v1880
      %v2162 = vsel %vm2146, %v2129, %v1882
      %v2164 = vsel %vm2146, %v2131, %v1884
      %v2166 = vsel %vm2146, %v2133, %v1886
      %v2168 = vsel %vm2146, %v2135, %v1888
      %v2170 = vsel %vm2146, %v2137, %v1890
      %v2172 = vsel %vm2146, %v2139, %v1892
      %v2174 = vsel %vm2146, %v2141, %v1894
      %v2176 = vsel %vm2146, %v2143, %v1896
      %v2178 = vsel %vm2146, %v2145, %v1898
      %v2179 = vld [vmem:[%s1] sm:$0xf]
      %v2180 = vld [vmem:[%s1 + $0x4] sm:$0xf]
      %v2181 = vld [vmem:[%s1 + $0x8] sm:$0xf]
      %v2182 = vld [vmem:[%s1 + $0xc] sm:$0xf]
      %v2183 = vld [vmem:[%s1 + $0x10] sm:$0x3]
      %v2184 = vld [vmem:[%s2] sm:$0x1]
      %v2186 = vperm.slane %v2184, 0
      %v2193 = vunpack.c.l.b16 %v2179
      %v2194 = vunpack.c.l.b16 %v2180
      %v2195 = vunpack.c.l.b16 %v2181
      %v2196 = vunpack.c.l.b16 %v2182
      %v2197 = vunpack.c.l.b16 %v2183
      %v2198 = vpack.c.b16 %v2194, %v2193
      %v2199 = vpack.c.b16 %v2196, %v2195
      %v2200 = vpack.c.b16 %v2197, %v2197
      %vm2203 = vcmask 293888
      %v2204 = vsel %vm2203, %v2148, 0
      %v2206 = vsel %vm2203, %v2150, 0
      %v2208 = vsel %vm2203, %v2152, 0
      %v2210 = vsel %vm2203, %v2154, 0
      %v2212 = vsel %vm2203, %v2156, 0
      %v2214 = vsel %vm2203, %v2158, 0
      %v2216 = vsel %vm2203, %v2160, 0
      %v2218 = vsel %vm2203, %v2162, 0
      %v2220 = vsel %vm2203, %v2164, 0
      %v2222 = vsel %vm2203, %v2166, 0
      %v2224 = vsel %vm2203, %v2168, 0
      %v2226 = vsel %vm2203, %v2170, 0
      %v2228 = vsel %vm2203, %v2172, 0
      %v2230 = vsel %vm2203, %v2174, 0
      %v2232 = vsel %vm2203, %v2176, 0
      %v2234 = vsel %vm2203, %v2178, 0
      %vm2236 = vcmask 1041408
      %v2238 = vsel %vm2236, %v2200, 0
      %2240 = vmatpush.bf16.msra.mxu0 0
      %2241 = vmatpush.bf16.msra.mxu0 0
      %2242 = vmatpush.bf16.msra.mxu0 0
      %2243 = vmatpush.bf16.msra.mxu0 0
      %2244 = vmatpush.bf16.msra.mxu0 0
      %2245 = vmatpush.bf16.msra.mxu0 %v2238
      %2246 = vmatpush.bf16.msra.mxu0 %v2199
      %2247 = vmatpush.bf16.msra.mxu0 %v2198
      %2248 = vmatmul.bf16.gmra.mxu0 %v2204
      %v2249 = vpop.f32.mrf.mxu0
      %v2250 = vadd.f32 %v2186, %v2249
      %v2251 = vpop.f32.mrf.mxu0
      %v2252 = vadd.f32 %v2186, %v2251
      %2253 = vmatmul.bf16.gmra.mxu0 %v2206
      %v2254 = vpop.f32.mrf.mxu0
      %v2255 = vadd.f32 %v2186, %v2254
      %v2256 = vpop.f32.mrf.mxu0
      %v2257 = vadd.f32 %v2186, %v2256
      %2258 = vmatmul.bf16.gmra.mxu0 %v2208
      %v2259 = vpop.f32.mrf.mxu0
      %v2260 = vadd.f32 %v2186, %v2259
      %v2261 = vpop.f32.mrf.mxu0
      %v2262 = vadd.f32 %v2186, %v2261
      %2263 = vmatmul.bf16.gmra.mxu0 %v2210
      %v2264 = vpop.f32.mrf.mxu0
      %v2265 = vadd.f32 %v2186, %v2264
      %v2266 = vpop.f32.mrf.mxu0
      %v2267 = vadd.f32 %v2186, %v2266
      %2268 = vmatmul.bf16.gmra.mxu0 %v2212
      %v2269 = vpop.f32.mrf.mxu0
      %v2270 = vadd.f32 %v2186, %v2269
      %v2271 = vpop.f32.mrf.mxu0
      %v2272 = vadd.f32 %v2186, %v2271
      %2273 = vmatmul.bf16.gmra.mxu0 %v2214
      %v2274 = vpop.f32.mrf.mxu0
      %v2275 = vadd.f32 %v2186, %v2274
      %v2276 = vpop.f32.mrf.mxu0
      %v2277 = vadd.f32 %v2186, %v2276
      %2278 = vmatmul.bf16.gmra.mxu0 %v2216
      %v2279 = vpop.f32.mrf.mxu0
      %v2280 = vadd.f32 %v2186, %v2279
      %v2281 = vpop.f32.mrf.mxu0
      %v2282 = vadd.f32 %v2186, %v2281
      %2283 = vmatmul.bf16.gmra.mxu0 %v2218
      %v2284 = vpop.f32.mrf.mxu0
      %v2285 = vadd.f32 %v2186, %v2284
      %v2286 = vpop.f32.mrf.mxu0
      %v2287 = vadd.f32 %v2186, %v2286
      %2288 = vmatmul.bf16.gmra.mxu0 %v2220
      %v2289 = vpop.f32.mrf.mxu0
      %v2290 = vadd.f32 %v2186, %v2289
      %v2291 = vpop.f32.mrf.mxu0
      %v2292 = vadd.f32 %v2186, %v2291
      %2293 = vmatmul.bf16.gmra.mxu0 %v2222
      %v2294 = vpop.f32.mrf.mxu0
      %v2295 = vadd.f32 %v2186, %v2294
      %v2296 = vpop.f32.mrf.mxu0
      %v2297 = vadd.f32 %v2186, %v2296
      %2298 = vmatmul.bf16.gmra.mxu0 %v2224
      %v2299 = vpop.f32.mrf.mxu0
      %v2300 = vadd.f32 %v2186, %v2299
      %v2301 = vpop.f32.mrf.mxu0
      %v2302 = vadd.f32 %v2186, %v2301
      %2303 = vmatmul.bf16.gmra.mxu0 %v2226
      %v2304 = vpop.f32.mrf.mxu0
      %v2305 = vadd.f32 %v2186, %v2304
      %v2306 = vpop.f32.mrf.mxu0
      %v2307 = vadd.f32 %v2186, %v2306
      %2308 = vmatmul.bf16.gmra.mxu0 %v2228
      %v2309 = vpop.f32.mrf.mxu0
      %v2310 = vadd.f32 %v2186, %v2309
      %v2311 = vpop.f32.mrf.mxu0
      %v2312 = vadd.f32 %v2186, %v2311
      %2313 = vmatmul.bf16.gmra.mxu0 %v2230
      %v2314 = vpop.f32.mrf.mxu0
      %v2315 = vadd.f32 %v2186, %v2314
      %v2316 = vpop.f32.mrf.mxu0
      %v2317 = vadd.f32 %v2186, %v2316
      %2318 = vmatmul.bf16.gmra.mxu0 %v2232
      %v2319 = vpop.f32.mrf.mxu0
      %v2320 = vadd.f32 %v2186, %v2319
      %v2321 = vpop.f32.mrf.mxu0
      %v2322 = vadd.f32 %v2186, %v2321
      %2323 = vmatmul.bf16.gmra.mxu0 %v2234
      %v2324 = vpop.f32.mrf.mxu0
      %v2325 = vadd.f32 %v2186, %v2324
      %v2326 = vpop.f32.mrf.mxu0
      %v2327 = vadd.f32 %v2186, %v2326
      %2328 = vdwg.mxu0
      %v2329 = vmax.f32 %v2250, 0.0
      %v2330 = vmax.f32 %v2252, 0.0
      %v2331 = vmax.f32 %v2255, 0.0
      %v2332 = vmax.f32 %v2257, 0.0
      %v2333 = vmax.f32 %v2260, 0.0
      %v2334 = vmax.f32 %v2262, 0.0
      %v2335 = vmax.f32 %v2265, 0.0
      %v2336 = vmax.f32 %v2267, 0.0
      %v2337 = vmax.f32 %v2270, 0.0
      %v2338 = vmax.f32 %v2272, 0.0
      %v2339 = vmax.f32 %v2275, 0.0
      %v2340 = vmax.f32 %v2277, 0.0
      %v2341 = vmax.f32 %v2280, 0.0
      %v2342 = vmax.f32 %v2282, 0.0
      %v2343 = vmax.f32 %v2285, 0.0
      %v2344 = vmax.f32 %v2287, 0.0
      %v2345 = vmax.f32 %v2290, 0.0
      %v2346 = vmax.f32 %v2292, 0.0
      %v2347 = vmax.f32 %v2295, 0.0
      %v2348 = vmax.f32 %v2297, 0.0
      %v2349 = vmax.f32 %v2300, 0.0
      %v2350 = vmax.f32 %v2302, 0.0
      %v2351 = vmax.f32 %v2305, 0.0
      %v2352 = vmax.f32 %v2307, 0.0
      %v2353 = vmax.f32 %v2310, 0.0
      %v2354 = vmax.f32 %v2312, 0.0
      %v2355 = vmax.f32 %v2315, 0.0
      %v2356 = vmax.f32 %v2317, 0.0
      %v2357 = vmax.f32 %v2320, 0.0
      %v2358 = vmax.f32 %v2322, 0.0
      %v2359 = vmax.f32 %v2325, 0.0
      %v2360 = vmax.f32 %v2327, 0.0
      %vm2361 = vcmask 60416
      %2362 = vst.msk [vmem:[#allocation3] sm:$0xf] %vm2361, 0
      %2363 = vst.msk [vmem:[#allocation3 + $0x4] sm:$0xf] %vm2361, 0
      %vm2364 = vcmask 57344
      %2365 = vst.msk [vmem:[#allocation3 + $0x8] sm:$0x1] %vm2364, 0
      %2366 = vst.msk [vmem:[#allocation3 + $0xc] sm:$0xf] %vm2361, 0
      %2367 = vst.msk [vmem:[#allocation3 + $0x10] sm:$0xf] %vm2361, 0
      %2368 = vst.msk [vmem:[#allocation3 + $0x14] sm:$0x1] %vm2364, 0
      %2369 = vst.msk [vmem:[#allocation3 + $0x18] sm:$0xf] %vm2361, 0
      %2370 = vst.msk [vmem:[#allocation3 + $0x1c] sm:$0xf] %vm2361, 0
      %2371 = vst.msk [vmem:[#allocation3 + $0x20] sm:$0x1] %vm2364, 0
      %2372 = vst.msk [vmem:[#allocation3 + $0x24] sm:$0xf] %vm2361, 0
      %2373 = vst.msk [vmem:[#allocation3 + $0x28] sm:$0xf] %vm2361, 0
      %2374 = vst.msk [vmem:[#allocation3 + $0x2c] sm:$0x1] %vm2364, 0
      %2375 = vst.msk [vmem:[#allocation3 + $0x30] sm:$0xf] %vm2361, 0
      %2376 = vst.msk [vmem:[#allocation3 + $0x34] sm:$0xf] %vm2361, 0
      %2377 = vst.msk [vmem:[#allocation3 + $0x38] sm:$0x1] %vm2364, 0
      %2378 = vst.msk [vmem:[#allocation3 + $0x3c] sm:$0xf] %vm2361, 0
      %2379 = vst.msk [vmem:[#allocation3 + $0x40] sm:$0xf] %vm2361, 0
      %2380 = vst.msk [vmem:[#allocation3 + $0x44] sm:$0x1] %vm2364, 0
      %2381 = vst.msk [vmem:[#allocation3 + $0x48] sm:$0xf] %vm2361, 0
      %2382 = vst.msk [vmem:[#allocation3 + $0x4c] sm:$0xf] %vm2361, 0
      %2383 = vst.msk [vmem:[#allocation3 + $0x50] sm:$0x1] %vm2364, 0
      %2384 = vst.msk [vmem:[#allocation3 + $0x54] sm:$0xf] %vm2361, 0
      %2385 = vst.msk [vmem:[#allocation3 + $0x58] sm:$0xf] %vm2361, 0
      %2386 = vst.msk [vmem:[#allocation3 + $0x5c] sm:$0x1] %vm2364, 0
      %2387 = vst.msk [vmem:[#allocation3 + $0x60] sm:$0xf] %vm2361, 0
      %2388 = vst.msk [vmem:[#allocation3 + $0x64] sm:$0xf] %vm2361, 0
      %2389 = vst.msk [vmem:[#allocation3 + $0x68] sm:$0x1] %vm2364, 0
      %2390 = vst.msk [vmem:[#allocation3 + $0x6c] sm:$0xf] %vm2361, 0
      %2391 = vst.msk [vmem:[#allocation3 + $0x70] sm:$0xf] %vm2361, 0
      %2392 = vst.msk [vmem:[#allocation3 + $0x74] sm:$0x1] %vm2364, 0
      %2393 = vst.msk [vmem:[#allocation3 + $0x78] sm:$0xf] %vm2361, 0
      %2394 = vst.msk [vmem:[#allocation3 + $0x7c] sm:$0xf] %vm2361, 0
      %2395 = vst.msk [vmem:[#allocation3 + $0x80] sm:$0x1] %vm2364, 0
      %2396 = vst.msk [vmem:[#allocation3 + $0x84] sm:$0xf] %vm2361, 0
      %2397 = vst.msk [vmem:[#allocation3 + $0x88] sm:$0xf] %vm2361, 0
      %2398 = vst.msk [vmem:[#allocation3 + $0x8c] sm:$0x1] %vm2364, 0
      %2399 = vst.msk [vmem:[#allocation3 + $0x90] sm:$0xf] %vm2361, 0
      %2400 = vst.msk [vmem:[#allocation3 + $0x94] sm:$0xf] %vm2361, 0
      %2401 = vst.msk [vmem:[#allocation3 + $0x98] sm:$0x1] %vm2364, 0
      %2402 = vst.msk [vmem:[#allocation3 + $0x9c] sm:$0xf] %vm2361, 0
      %2403 = vst.msk [vmem:[#allocation3 + $0xa0] sm:$0xf] %vm2361, 0
      %2404 = vst.msk [vmem:[#allocation3 + $0xa4] sm:$0x1] %vm2364, 0
      %2405 = vst.msk [vmem:[#allocation3 + $0xa8] sm:$0xf] %vm2361, 0
      %2406 = vst.msk [vmem:[#allocation3 + $0xac] sm:$0xf] %vm2361, 0
      %2407 = vst.msk [vmem:[#allocation3 + $0xb0] sm:$0x1] %vm2364, 0
      %2408 = vst.msk [vmem:[#allocation3 + $0xb4] sm:$0xf] %vm2361, 0
      %2409 = vst.msk [vmem:[#allocation3 + $0xb8] sm:$0xf] %vm2361, 0
      %2410 = vst.msk [vmem:[#allocation3 + $0xbc] sm:$0x1] %vm2364, 0
      %2411 = vst.msk [vmem:[#allocation3 + $0xc0] sm:$0xf] %vm2361, 0
      %2412 = vst.msk [vmem:[#allocation3 + $0xc4] sm:$0xf] %vm2361, 0
      %2413 = vst.msk [vmem:[#allocation3 + $0xc8] sm:$0x1] %vm2364, 0
      %2414 = vst.msk [vmem:[#allocation3 + $0xcc] sm:$0xf] %vm2361, 0
      %2415 = vst.msk [vmem:[#allocation3 + $0xd0] sm:$0xf] %vm2361, 0
      %2416 = vst.msk [vmem:[#allocation3 + $0xd4] sm:$0x1] %vm2364, 0
      %v2417 = vpack.c.bf16 %v2329, %v2329
      %v2418 = vpack.c.bf16 %v2330, %v2330
      %v2419 = vpack.c.bf16 %v2331, %v2331
      %v2420 = vpack.c.bf16 %v2332, %v2332
      %v2421 = vpack.c.bf16 %v2333, %v2333
      %v2422 = vpack.c.bf16 %v2334, %v2334
      %v2423 = vpack.c.bf16 %v2335, %v2335
      %v2424 = vpack.c.bf16 %v2336, %v2336
      %v2425 = vpack.c.bf16 %v2337, %v2337
      %v2426 = vpack.c.bf16 %v2338, %v2338
      %v2427 = vpack.c.bf16 %v2339, %v2339
      %v2428 = vpack.c.bf16 %v2340, %v2340
      %v2429 = vpack.c.bf16 %v2341, %v2341
      %v2430 = vpack.c.bf16 %v2342, %v2342
      %v2431 = vpack.c.bf16 %v2343, %v2343
      %v2432 = vpack.c.bf16 %v2344, %v2344
      %v2433 = vpack.c.bf16 %v2345, %v2345
      %v2434 = vpack.c.bf16 %v2346, %v2346
      %v2435 = vpack.c.bf16 %v2347, %v2347
      %v2436 = vpack.c.bf16 %v2348, %v2348
      %v2437 = vpack.c.bf16 %v2349, %v2349
      %v2438 = vpack.c.bf16 %v2350, %v2350
      %v2439 = vpack.c.bf16 %v2351, %v2351
      %v2440 = vpack.c.bf16 %v2352, %v2352
      %v2441 = vpack.c.bf16 %v2353, %v2353
      %v2442 = vpack.c.bf16 %v2354, %v2354
      %v2443 = vpack.c.bf16 %v2355, %v2355
      %v2444 = vpack.c.bf16 %v2356, %v2356
      %v2445 = vpack.c.bf16 %v2357, %v2357
      %v2446 = vpack.c.bf16 %v2358, %v2358
      %v2447 = vpack.c.bf16 %v2359, %v2359
      %v2448 = vpack.c.bf16 %v2360, %v2360
      %v2450 = vshrl.u32 %v2417, 16
      %v2452 = vrot.slane %v2450, 7
      %v2453 = vshll.u32 %v2417, 16
      %v2455 = vor.u32 %v2452, %v2453
      %v2456 = vrot.slane %v2452, 4
      %v2458 = vshrl.u32 %v2418, 16
      %v2460 = vrot.slane %v2458, 7
      %v2461 = vshll.u32 %v2418, 16
      %v2463 = vor.u32 %v2460, %v2461
      %v2464 = vsel %vm370, %v2456, %v2463
      %v2465 = vrot.slane %v2460, 4
      %v2467 = vshrl.u32 %v2419, 16
      %v2469 = vrot.slane %v2467, 7
      %v2470 = vshll.u32 %v2419, 16
      %v2472 = vor.u32 %v2469, %v2470
      %v2473 = vrot.slane %v2469, 4
      %v2475 = vshrl.u32 %v2420, 16
      %v2477 = vrot.slane %v2475, 7
      %v2478 = vshll.u32 %v2420, 16
      %v2480 = vor.u32 %v2477, %v2478
      %v2481 = vsel %vm370, %v2473, %v2480
      %v2482 = vrot.slane %v2477, 4
      %v2484 = vshrl.u32 %v2421, 16
      %v2486 = vrot.slane %v2484, 7
      %v2487 = vshll.u32 %v2421, 16
      %v2489 = vor.u32 %v2486, %v2487
      %v2490 = vrot.slane %v2486, 4
      %v2492 = vshrl.u32 %v2422, 16
      %v2494 = vrot.slane %v2492, 7
      %v2495 = vshll.u32 %v2422, 16
      %v2497 = vor.u32 %v2494, %v2495
      %v2498 = vsel %vm370, %v2490, %v2497
      %v2499 = vrot.slane %v2494, 4
      %v2501 = vshrl.u32 %v2423, 16
      %v2503 = vrot.slane %v2501, 7
      %v2504 = vshll.u32 %v2423, 16
      %v2506 = vor.u32 %v2503, %v2504
      %v2507 = vrot.slane %v2503, 4
      %v2509 = vshrl.u32 %v2424, 16
      %v2511 = vrot.slane %v2509, 7
      %v2512 = vshll.u32 %v2424, 16
      %v2514 = vor.u32 %v2511, %v2512
      %v2515 = vsel %vm370, %v2507, %v2514
      %v2516 = vrot.slane %v2511, 4
      %v2518 = vshrl.u32 %v2425, 16
      %v2520 = vrot.slane %v2518, 7
      %v2521 = vshll.u32 %v2425, 16
      %v2523 = vor.u32 %v2520, %v2521
      %v2524 = vrot.slane %v2520, 4
      %v2526 = vshrl.u32 %v2426, 16
      %v2528 = vrot.slane %v2526, 7
      %v2529 = vshll.u32 %v2426, 16
      %v2531 = vor.u32 %v2528, %v2529
      %v2532 = vsel %vm370, %v2524, %v2531
      %v2533 = vrot.slane %v2528, 4
      %v2535 = vshrl.u32 %v2427, 16
      %v2537 = vrot.slane %v2535, 7
      %v2538 = vshll.u32 %v2427, 16
      %v2540 = vor.u32 %v2537, %v2538
      %v2541 = vrot.slane %v2537, 4
      %v2543 = vshrl.u32 %v2428, 16
      %v2545 = vrot.slane %v2543, 7
      %v2546 = vshll.u32 %v2428, 16
      %v2548 = vor.u32 %v2545, %v2546
      %v2549 = vsel %vm370, %v2541, %v2548
      %v2550 = vrot.slane %v2545, 4
      %v2552 = vshrl.u32 %v2429, 16
      %v2554 = vrot.slane %v2552, 7
      %v2555 = vshll.u32 %v2429, 16
      %v2557 = vor.u32 %v2554, %v2555
      %v2558 = vrot.slane %v2554, 4
      %v2560 = vshrl.u32 %v2430, 16
      %v2562 = vrot.slane %v2560, 7
      %v2563 = vshll.u32 %v2430, 16
      %v2565 = vor.u32 %v2562, %v2563
      %v2566 = vsel %vm370, %v2558, %v2565
      %v2567 = vrot.slane %v2562, 4
      %v2569 = vshrl.u32 %v2431, 16
      %v2571 = vrot.slane %v2569, 7
      %v2572 = vshll.u32 %v2431, 16
      %v2574 = vor.u32 %v2571, %v2572
      %v2575 = vrot.slane %v2571, 4
      %v2577 = vshrl.u32 %v2432, 16
      %v2579 = vrot.slane %v2577, 7
      %v2580 = vshll.u32 %v2432, 16
      %v2582 = vor.u32 %v2579, %v2580
      %v2583 = vsel %vm370, %v2575, %v2582
      %v2584 = vrot.slane %v2579, 4
      %v2586 = vshrl.u32 %v2433, 16
      %v2588 = vrot.slane %v2586, 7
      %v2589 = vshll.u32 %v2433, 16
      %v2591 = vor.u32 %v2588, %v2589
      %v2592 = vrot.slane %v2588, 4
      %v2594 = vshrl.u32 %v2434, 16
      %v2596 = vrot.slane %v2594, 7
      %v2597 = vshll.u32 %v2434, 16
      %v2599 = vor.u32 %v2596, %v2597
      %v2600 = vsel %vm370, %v2592, %v2599
      %v2601 = vrot.slane %v2596, 4
      %v2603 = vshrl.u32 %v2435, 16
      %v2605 = vrot.slane %v2603, 7
      %v2606 = vshll.u32 %v2435, 16
      %v2608 = vor.u32 %v2605, %v2606
      %v2609 = vrot.slane %v2605, 4
      %v2611 = vshrl.u32 %v2436, 16
      %v2613 = vrot.slane %v2611, 7
      %v2614 = vshll.u32 %v2436, 16
      %v2616 = vor.u32 %v2613, %v2614
      %v2617 = vsel %vm370, %v2609, %v2616
      %v2618 = vrot.slane %v2613, 4
      %v2620 = vshrl.u32 %v2437, 16
      %v2622 = vrot.slane %v2620, 7
      %v2623 = vshll.u32 %v2437, 16
      %v2625 = vor.u32 %v2622, %v2623
      %v2626 = vrot.slane %v2622, 4
      %v2628 = vshrl.u32 %v2438, 16
      %v2630 = vrot.slane %v2628, 7
      %v2631 = vshll.u32 %v2438, 16
      %v2633 = vor.u32 %v2630, %v2631
      %v2634 = vsel %vm370, %v2626, %v2633
      %v2635 = vrot.slane %v2630, 4
      %v2637 = vshrl.u32 %v2439, 16
      %v2639 = vrot.slane %v2637, 7
      %v2640 = vshll.u32 %v2439, 16
      %v2642 = vor.u32 %v2639, %v2640
      %v2643 = vrot.slane %v2639, 4
      %v2645 = vshrl.u32 %v2440, 16
      %v2647 = vrot.slane %v2645, 7
      %v2648 = vshll.u32 %v2440, 16
      %v2650 = vor.u32 %v2647, %v2648
      %v2651 = vsel %vm370, %v2643, %v2650
      %v2652 = vrot.slane %v2647, 4
      %v2654 = vshrl.u32 %v2441, 16
      %v2656 = vrot.slane %v2654, 7
      %v2657 = vshll.u32 %v2441, 16
      %v2659 = vor.u32 %v2656, %v2657
      %v2660 = vrot.slane %v2656, 4
      %v2662 = vshrl.u32 %v2442, 16
      %v2664 = vrot.slane %v2662, 7
      %v2665 = vshll.u32 %v2442, 16
      %v2667 = vor.u32 %v2664, %v2665
      %v2668 = vsel %vm370, %v2660, %v2667
      %v2669 = vrot.slane %v2664, 4
      %v2671 = vshrl.u32 %v2443, 16
      %v2673 = vrot.slane %v2671, 7
      %v2674 = vshll.u32 %v2443, 16
      %v2676 = vor.u32 %v2673, %v2674
      %v2677 = vrot.slane %v2673, 4
      %v2679 = vshrl.u32 %v2444, 16
      %v2681 = vrot.slane %v2679, 7
      %v2682 = vshll.u32 %v2444, 16
      %v2684 = vor.u32 %v2681, %v2682
      %v2685 = vsel %vm370, %v2677, %v2684
      %v2686 = vrot.slane %v2681, 4
      %v2688 = vshrl.u32 %v2445, 16
      %v2690 = vrot.slane %v2688, 7
      %v2691 = vshll.u32 %v2445, 16
      %v2693 = vor.u32 %v2690, %v2691
      %v2694 = vrot.slane %v2690, 4
      %v2696 = vshrl.u32 %v2446, 16
      %v2698 = vrot.slane %v2696, 7
      %v2699 = vshll.u32 %v2446, 16
      %v2701 = vor.u32 %v2698, %v2699
      %v2702 = vsel %vm370, %v2694, %v2701
      %v2703 = vrot.slane %v2698, 4
      %v2705 = vshrl.u32 %v2447, 16
      %v2707 = vrot.slane %v2705, 7
      %v2708 = vshll.u32 %v2447, 16
      %v2710 = vor.u32 %v2707, %v2708
      %v2711 = vrot.slane %v2707, 4
      %v2713 = vshrl.u32 %v2448, 16
      %v2715 = vrot.slane %v2713, 7
      %v2716 = vshll.u32 %v2448, 16
      %v2718 = vor.u32 %v2715, %v2716
      %v2719 = vsel %vm370, %v2711, %v2718
      %v2720 = vrot.slane %v2715, 4
      %s2769 = scalar_lea.vmem [#allocation3], 12
      %vm2770 = vcmask 60416
      %vm2771 = vmand %vm2770, %vm693
      %v2772 = vld [vmem:[%s2769] sm:$0xf]
      %v2773 = vsel %vm2771, %v2455, %v2772
      %2774 = vst [vmem:[%s2769] sm:$0xf] %v2773
      %2775 = vst.msk [vmem:[%s2769 + $0x4] sm:$0xf] %vm2361, %v2464
      %vm2776 = vcmask 57344
      %vm2777 = vmand %vm2776, %vm368
      %v2778 = vld [vmem:[%s2769 + $0x8] sm:$0x1]
      %v2779 = vsel %vm2777, %v2465, %v2778
      %2780 = vst [vmem:[%s2769 + $0x8] sm:$0x1] %v2779
      %v2781 = vld [vmem:[%s2769 + $0xc] sm:$0xf]
      %v2782 = vsel %vm2771, %v2472, %v2781
      %2783 = vst [vmem:[%s2769 + $0xc] sm:$0xf] %v2782
      %2784 = vst.msk [vmem:[%s2769 + $0x10] sm:$0xf] %vm2361, %v2481
      %v2785 = vld [vmem:[%s2769 + $0x14] sm:$0x1]
      %v2786 = vsel %vm2777, %v2482, %v2785
      %2787 = vst [vmem:[%s2769 + $0x14] sm:$0x1] %v2786
      %v2788 = vld [vmem:[%s2769 + $0x18] sm:$0xf]
      %v2789 = vsel %vm2771, %v2489, %v2788
      %2790 = vst [vmem:[%s2769 + $0x18] sm:$0xf] %v2789
      %2791 = vst.msk [vmem:[%s2769 + $0x1c] sm:$0xf] %vm2361, %v2498
      %v2792 = vld [vmem:[%s2769 + $0x20] sm:$0x1]
      %v2793 = vsel %vm2777, %v2499, %v2792
      %2794 = vst [vmem:[%s2769 + $0x20] sm:$0x1] %v2793
      %v2795 = vld [vmem:[%s2769 + $0x24] sm:$0xf]
      %v2796 = vsel %vm2771, %v2506, %v2795
      %2797 = vst [vmem:[%s2769 + $0x24] sm:$0xf] %v2796
      %2798 = vst.msk [vmem:[%s2769 + $0x28] sm:$0xf] %vm2361, %v2515
      %v2799 = vld [vmem:[%s2769 + $0x2c] sm:$0x1]
      %v2800 = vsel %vm2777, %v2516, %v2799
      %2801 = vst [vmem:[%s2769 + $0x2c] sm:$0x1] %v2800
      %v2802 = vld [vmem:[%s2769 + $0x30] sm:$0xf]
      %v2803 = vsel %vm2771, %v2523, %v2802
      %2804 = vst [vmem:[%s2769 + $0x30] sm:$0xf] %v2803
      %2805 = vst.msk [vmem:[%s2769 + $0x34] sm:$0xf] %vm2361, %v2532
      %v2806 = vld [vmem:[%s2769 + $0x38] sm:$0x1]
      %v2807 = vsel %vm2777, %v2533, %v2806
      %2808 = vst [vmem:[%s2769 + $0x38] sm:$0x1] %v2807
      %v2809 = vld [vmem:[%s2769 + $0x3c] sm:$0xf]
      %v2810 = vsel %vm2771, %v2540, %v2809
      %2811 = vst [vmem:[%s2769 + $0x3c] sm:$0xf] %v2810
      %2812 = vst.msk [vmem:[%s2769 + $0x40] sm:$0xf] %vm2361, %v2549
      %v2813 = vld [vmem:[%s2769 + $0x44] sm:$0x1]
      %v2814 = vsel %vm2777, %v2550, %v2813
      %2815 = vst [vmem:[%s2769 + $0x44] sm:$0x1] %v2814
      %v2816 = vld [vmem:[%s2769 + $0x48] sm:$0xf]
      %v2817 = vsel %vm2771, %v2557, %v2816
      %2818 = vst [vmem:[%s2769 + $0x48] sm:$0xf] %v2817
      %2819 = vst.msk [vmem:[%s2769 + $0x4c] sm:$0xf] %vm2361, %v2566
      %v2820 = vld [vmem:[%s2769 + $0x50] sm:$0x1]
      %v2821 = vsel %vm2777, %v2567, %v2820
      %2822 = vst [vmem:[%s2769 + $0x50] sm:$0x1] %v2821
      %v2823 = vld [vmem:[%s2769 + $0x54] sm:$0xf]
      %v2824 = vsel %vm2771, %v2574, %v2823
      %2825 = vst [vmem:[%s2769 + $0x54] sm:$0xf] %v2824
      %2826 = vst.msk [vmem:[%s2769 + $0x58] sm:$0xf] %vm2361, %v2583
      %v2827 = vld [vmem:[%s2769 + $0x5c] sm:$0x1]
      %v2828 = vsel %vm2777, %v2584, %v2827
      %2829 = vst [vmem:[%s2769 + $0x5c] sm:$0x1] %v2828
      %v2830 = vld [vmem:[%s2769 + $0x60] sm:$0xf]
      %v2831 = vsel %vm2771, %v2591, %v2830
      %2832 = vst [vmem:[%s2769 + $0x60] sm:$0xf] %v2831
      %2833 = vst.msk [vmem:[%s2769 + $0x64] sm:$0xf] %vm2361, %v2600
      %v2834 = vld [vmem:[%s2769 + $0x68] sm:$0x1]
      %v2835 = vsel %vm2777, %v2601, %v2834
      %2836 = vst [vmem:[%s2769 + $0x68] sm:$0x1] %v2835
      %v2837 = vld [vmem:[%s2769 + $0x6c] sm:$0xf]
      %v2838 = vsel %vm2771, %v2608, %v2837
      %2839 = vst [vmem:[%s2769 + $0x6c] sm:$0xf] %v2838
      %2840 = vst.msk [vmem:[%s2769 + $0x70] sm:$0xf] %vm2361, %v2617
      %v2841 = vld [vmem:[%s2769 + $0x74] sm:$0x1]
      %v2842 = vsel %vm2777, %v2618, %v2841
      %2843 = vst [vmem:[%s2769 + $0x74] sm:$0x1] %v2842
      %v2844 = vld [vmem:[%s2769 + $0x78] sm:$0xf]
      %v2845 = vsel %vm2771, %v2625, %v2844
      %2846 = vst [vmem:[%s2769 + $0x78] sm:$0xf] %v2845
      %2847 = vst.msk [vmem:[%s2769 + $0x7c] sm:$0xf] %vm2361, %v2634
      %v2848 = vld [vmem:[%s2769 + $0x80] sm:$0x1]
      %v2849 = vsel %vm2777, %v2635, %v2848
      %2850 = vst [vmem:[%s2769 + $0x80] sm:$0x1] %v2849
      %v2851 = vld [vmem:[%s2769 + $0x84] sm:$0xf]
      %v2852 = vsel %vm2771, %v2642, %v2851
      %2853 = vst [vmem:[%s2769 + $0x84] sm:$0xf] %v2852
      %2854 = vst.msk [vmem:[%s2769 + $0x88] sm:$0xf] %vm2361, %v2651
      %v2855 = vld [vmem:[%s2769 + $0x8c] sm:$0x1]
      %v2856 = vsel %vm2777, %v2652, %v2855
      %2857 = vst [vmem:[%s2769 + $0x8c] sm:$0x1] %v2856
      %v2858 = vld [vmem:[%s2769 + $0x90] sm:$0xf]
      %v2859 = vsel %vm2771, %v2659, %v2858
      %2860 = vst [vmem:[%s2769 + $0x90] sm:$0xf] %v2859
      %2861 = vst.msk [vmem:[%s2769 + $0x94] sm:$0xf] %vm2361, %v2668
      %v2862 = vld [vmem:[%s2769 + $0x98] sm:$0x1]
      %v2863 = vsel %vm2777, %v2669, %v2862
      %2864 = vst [vmem:[%s2769 + $0x98] sm:$0x1] %v2863
      %v2865 = vld [vmem:[%s2769 + $0x9c] sm:$0xf]
      %v2866 = vsel %vm2771, %v2676, %v2865
      %2867 = vst [vmem:[%s2769 + $0x9c] sm:$0xf] %v2866
      %2868 = vst.msk [vmem:[%s2769 + $0xa0] sm:$0xf] %vm2361, %v2685
      %v2869 = vld [vmem:[%s2769 + $0xa4] sm:$0x1]
      %v2870 = vsel %vm2777, %v2686, %v2869
      %2871 = vst [vmem:[%s2769 + $0xa4] sm:$0x1] %v2870
      %v2872 = vld [vmem:[%s2769 + $0xa8] sm:$0xf]
      %v2873 = vsel %vm2771, %v2693, %v2872
      %2874 = vst [vmem:[%s2769 + $0xa8] sm:$0xf] %v2873
      %2875 = vst.msk [vmem:[%s2769 + $0xac] sm:$0xf] %vm2361, %v2702
      %v2876 = vld [vmem:[%s2769 + $0xb0] sm:$0x1]
      %v2877 = vsel %vm2777, %v2703, %v2876
      %2878 = vst [vmem:[%s2769 + $0xb0] sm:$0x1] %v2877
      %v2879 = vld [vmem:[%s2769 + $0xb4] sm:$0xf]
      %v2880 = vsel %vm2771, %v2710, %v2879
      %2881 = vst [vmem:[%s2769 + $0xb4] sm:$0xf] %v2880
      %2882 = vst.msk [vmem:[%s2769 + $0xb8] sm:$0xf] %vm2361, %v2719
      %v2883 = vld [vmem:[%s2769 + $0xbc] sm:$0x1]
      %v2884 = vsel %vm2777, %v2720, %v2883
      %2885 = vst [vmem:[%s2769 + $0xbc] sm:$0x1] %v2884
      %v2886 = vld [vmem:[#allocation3] sm:$0xf]
      %v2887 = vld [vmem:[#allocation3 + $0x4] sm:$0xf]
      %v2888 = vld [vmem:[#allocation3 + $0x8] sm:$0x1]
      %v2889 = vld [vmem:[#allocation3 + $0xc] sm:$0xf]
      %v2890 = vld [vmem:[#allocation3 + $0x10] sm:$0xf]
      %v2891 = vld [vmem:[#allocation3 + $0x14] sm:$0x1]
      %v2892 = vld [vmem:[#allocation3 + $0x18] sm:$0xf]
      %v2893 = vld [vmem:[#allocation3 + $0x1c] sm:$0xf]
      %v2894 = vld [vmem:[#allocation3 + $0x20] sm:$0x1]
      %v2895 = vld [vmem:[#allocation3 + $0x24] sm:$0xf]
      %v2896 = vld [vmem:[#allocation3 + $0x28] sm:$0xf]
      %v2897 = vld [vmem:[#allocation3 + $0x2c] sm:$0x1]
      %v2898 = vld [vmem:[#allocation3 + $0x30] sm:$0xf]
      %v2899 = vld [vmem:[#allocation3 + $0x34] sm:$0xf]
      %v2900 = vld [vmem:[#allocation3 + $0x38] sm:$0x1]
      %v2901 = vld [vmem:[#allocation3 + $0x3c] sm:$0xf]
      %v2902 = vld [vmem:[#allocation3 + $0x40] sm:$0xf]
      %v2903 = vld [vmem:[#allocation3 + $0x44] sm:$0x1]
      %v2904 = vld [vmem:[#allocation3 + $0x48] sm:$0xf]
      %v2905 = vld [vmem:[#allocation3 + $0x4c] sm:$0xf]
      %v2906 = vld [vmem:[#allocation3 + $0x50] sm:$0x1]
      %v2907 = vld [vmem:[#allocation3 + $0x54] sm:$0xf]
      %v2908 = vld [vmem:[#allocation3 + $0x58] sm:$0xf]
      %v2909 = vld [vmem:[#allocation3 + $0x5c] sm:$0x1]
      %v2910 = vld [vmem:[#allocation3 + $0x60] sm:$0xf]
      %v2911 = vld [vmem:[#allocation3 + $0x64] sm:$0xf]
      %v2912 = vld [vmem:[#allocation3 + $0x68] sm:$0x1]
      %v2913 = vld [vmem:[#allocation3 + $0x6c] sm:$0xf]
      %v2914 = vld [vmem:[#allocation3 + $0x70] sm:$0xf]
      %v2915 = vld [vmem:[#allocation3 + $0x74] sm:$0x1]
      %v2916 = vld [vmem:[#allocation3 + $0x78] sm:$0xf]
      %v2917 = vld [vmem:[#allocation3 + $0x7c] sm:$0xf]
      %v2918 = vld [vmem:[#allocation3 + $0x80] sm:$0x1]
      %v2919 = vld [vmem:[#allocation3 + $0x84] sm:$0xf]
      %v2920 = vld [vmem:[#allocation3 + $0x88] sm:$0xf]
      %v2921 = vld [vmem:[#allocation3 + $0x8c] sm:$0x1]
      %v2922 = vld [vmem:[#allocation3 + $0x90] sm:$0xf]
      %v2923 = vld [vmem:[#allocation3 + $0x94] sm:$0xf]
      %v2924 = vld [vmem:[#allocation3 + $0x98] sm:$0x1]
      %v2925 = vld [vmem:[#allocation3 + $0x9c] sm:$0xf]
      %v2926 = vld [vmem:[#allocation3 + $0xa0] sm:$0xf]
      %v2927 = vld [vmem:[#allocation3 + $0xa4] sm:$0x1]
      %v2928 = vld [vmem:[#allocation3 + $0xa8] sm:$0xf]
      %v2929 = vld [vmem:[#allocation3 + $0xac] sm:$0xf]
      %v2930 = vld [vmem:[#allocation3 + $0xb0] sm:$0x1]
      %v2931 = vld [vmem:[#allocation3 + $0xb4] sm:$0xf]
      %v2932 = vld [vmem:[#allocation3 + $0xb8] sm:$0xf]
      %v2933 = vld [vmem:[#allocation3 + $0xbc] sm:$0x1]
      %v2934 = vld [vmem:[#allocation3 + $0xc0] sm:$0xf]
      %v2935 = vld [vmem:[#allocation3 + $0xc4] sm:$0xf]
      %v2936 = vld [vmem:[#allocation3 + $0xc8] sm:$0x1]
      %v2937 = vld [vmem:[#allocation3 + $0xcc] sm:$0xf]
      %v2938 = vld [vmem:[#allocation3 + $0xd0] sm:$0xf]
      %v2939 = vld [vmem:[#allocation3 + $0xd4] sm:$0x1]
      %v2941 = vshrl.u32 %v2886, 16
      %v2943 = vrot.slane %v2941, 4
      %v2944 = vshll.u32 %v2886, 16
      %v2946 = vrot.slane %v2944, 5
      %v2947 = vor.u32 %v2943, %v2946
      %v2948 = vrot.slane %v2947, 4
      %v2950 = vshll.u32 %v2887, 16
      %v2952 = vrot.slane %v2950, 5
      %v2953 = vsel %vm865, %v2948, %v2952
      %v2954 = vshrl.u32 %v2887, 16
      %v2956 = vrot.slane %v2954, 4
      %v2957 = vor.u32 %v2956, %v2952
      %v2958 = vrot.slane %v2957, 4
      %v2960 = vshll.u32 %v2888, 16
      %v2962 = vrot.slane %v2960, 5
      %v2963 = vsel %vm865, %v2958, %v2962
      %v2965 = vshrl.u32 %v2889, 16
      %v2967 = vrot.slane %v2965, 4
      %v2968 = vshll.u32 %v2889, 16
      %v2970 = vrot.slane %v2968, 5
      %v2971 = vor.u32 %v2967, %v2970
      %v2972 = vrot.slane %v2971, 4
      %v2974 = vshll.u32 %v2890, 16
      %v2976 = vrot.slane %v2974, 5
      %v2977 = vsel %vm865, %v2972, %v2976
      %v2978 = vshrl.u32 %v2890, 16
      %v2980 = vrot.slane %v2978, 4
      %v2981 = vor.u32 %v2980, %v2976
      %v2982 = vrot.slane %v2981, 4
      %v2984 = vshll.u32 %v2891, 16
      %v2986 = vrot.slane %v2984, 5
      %v2987 = vsel %vm865, %v2982, %v2986
      %v2989 = vshrl.u32 %v2892, 16
      %v2991 = vrot.slane %v2989, 4
      %v2992 = vshll.u32 %v2892, 16
      %v2994 = vrot.slane %v2992, 5
      %v2995 = vor.u32 %v2991, %v2994
      %v2996 = vrot.slane %v2995, 4
      %v2998 = vshll.u32 %v2893, 16
      %v3000 = vrot.slane %v2998, 5
      %v3001 = vsel %vm865, %v2996, %v3000
      %v3002 = vshrl.u32 %v2893, 16
      %v3004 = vrot.slane %v3002, 4
      %v3005 = vor.u32 %v3004, %v3000
      %v3006 = vrot.slane %v3005, 4
      %v3008 = vshll.u32 %v2894, 16
      %v3010 = vrot.slane %v3008, 5
      %v3011 = vsel %vm865, %v3006, %v3010
      %v3013 = vshrl.u32 %v2895, 16
      %v3015 = vrot.slane %v3013, 4
      %v3016 = vshll.u32 %v2895, 16
      %v3018 = vrot.slane %v3016, 5
      %v3019 = vor.u32 %v3015, %v3018
      %v3020 = vrot.slane %v3019, 4
      %v3022 = vshll.u32 %v2896, 16
      %v3024 = vrot.slane %v3022, 5
      %v3025 = vsel %vm865, %v3020, %v3024
      %v3026 = vshrl.u32 %v2896, 16
      %v3028 = vrot.slane %v3026, 4
      %v3029 = vor.u32 %v3028, %v3024
      %v3030 = vrot.slane %v3029, 4
      %v3032 = vshll.u32 %v2897, 16
      %v3034 = vrot.slane %v3032, 5
      %v3035 = vsel %vm865, %v3030, %v3034
      %v3037 = vshrl.u32 %v2898, 16
      %v3039 = vrot.slane %v3037, 4
      %v3040 = vshll.u32 %v2898, 16
      %v3042 = vrot.slane %v3040, 5
      %v3043 = vor.u32 %v3039, %v3042
      %v3044 = vrot.slane %v3043, 4
      %v3046 = vshll.u32 %v2899, 16
      %v3048 = vrot.slane %v3046, 5
      %v3049 = vsel %vm865, %v3044, %v3048
      %v3050 = vshrl.u32 %v2899, 16
      %v3052 = vrot.slane %v3050, 4
      %v3053 = vor.u32 %v3052, %v3048
      %v3054 = vrot.slane %v3053, 4
      %v3056 = vshll.u32 %v2900, 16
      %v3058 = vrot.slane %v3056, 5
      %v3059 = vsel %vm865, %v3054, %v3058
      %v3061 = vshrl.u32 %v2901, 16
      %v3063 = vrot.slane %v3061, 4
      %v3064 = vshll.u32 %v2901, 16
      %v3066 = vrot.slane %v3064, 5
      %v3067 = vor.u32 %v3063, %v3066
      %v3068 = vrot.slane %v3067, 4
      %v3070 = vshll.u32 %v2902, 16
      %v3072 = vrot.slane %v3070, 5
      %v3073 = vsel %vm865, %v3068, %v3072
      %v3074 = vshrl.u32 %v2902, 16
      %v3076 = vrot.slane %v3074, 4
      %v3077 = vor.u32 %v3076, %v3072
      %v3078 = vrot.slane %v3077, 4
      %v3080 = vshll.u32 %v2903, 16
      %v3082 = vrot.slane %v3080, 5
      %v3083 = vsel %vm865, %v3078, %v3082
      %v3085 = vshrl.u32 %v2904, 16
      %v3087 = vrot.slane %v3085, 4
      %v3088 = vshll.u32 %v2904, 16
      %v3090 = vrot.slane %v3088, 5
      %v3091 = vor.u32 %v3087, %v3090
      %v3092 = vrot.slane %v3091, 4
      %v3094 = vshll.u32 %v2905, 16
      %v3096 = vrot.slane %v3094, 5
      %v3097 = vsel %vm865, %v3092, %v3096
      %v3098 = vshrl.u32 %v2905, 16
      %v3100 = vrot.slane %v3098, 4
      %v3101 = vor.u32 %v3100, %v3096
      %v3102 = vrot.slane %v3101, 4
      %v3104 = vshll.u32 %v2906, 16
      %v3106 = vrot.slane %v3104, 5
      %v3107 = vsel %vm865, %v3102, %v3106
      %v3109 = vshrl.u32 %v2907, 16
      %v3111 = vrot.slane %v3109, 4
      %v3112 = vshll.u32 %v2907, 16
      %v3114 = vrot.slane %v3112, 5
      %v3115 = vor.u32 %v3111, %v3114
      %v3116 = vrot.slane %v3115, 4
      %v3118 = vshll.u32 %v2908, 16
      %v3120 = vrot.slane %v3118, 5
      %v3121 = vsel %vm865, %v3116, %v3120
      %v3122 = vshrl.u32 %v2908, 16
      %v3124 = vrot.slane %v3122, 4
      %v3125 = vor.u32 %v3124, %v3120
      %v3126 = vrot.slane %v3125, 4
      %v3128 = vshll.u32 %v2909, 16
      %v3130 = vrot.slane %v3128, 5
      %v3131 = vsel %vm865, %v3126, %v3130
      %v3133 = vshrl.u32 %v2910, 16
      %v3135 = vrot.slane %v3133, 4
      %v3136 = vshll.u32 %v2910, 16
      %v3138 = vrot.slane %v3136, 5
      %v3139 = vor.u32 %v3135, %v3138
      %v3140 = vrot.slane %v3139, 4
      %v3142 = vshll.u32 %v2911, 16
      %v3144 = vrot.slane %v3142, 5
      %v3145 = vsel %vm865, %v3140, %v3144
      %v3146 = vshrl.u32 %v2911, 16
      %v3148 = vrot.slane %v3146, 4
      %v3149 = vor.u32 %v3148, %v3144
      %v3150 = vrot.slane %v3149, 4
      %v3152 = vshll.u32 %v2912, 16
      %v3154 = vrot.slane %v3152, 5
      %v3155 = vsel %vm865, %v3150, %v3154
      %v3157 = vshrl.u32 %v2913, 16
      %v3159 = vrot.slane %v3157, 4
      %v3160 = vshll.u32 %v2913, 16
      %v3162 = vrot.slane %v3160, 5
      %v3163 = vor.u32 %v3159, %v3162
      %v3164 = vrot.slane %v3163, 4
      %v3166 = vshll.u32 %v2914, 16
      %v3168 = vrot.slane %v3166, 5
      %v3169 = vsel %vm865, %v3164, %v3168
      %v3170 = vshrl.u32 %v2914, 16
      %v3172 = vrot.slane %v3170, 4
      %v3173 = vor.u32 %v3172, %v3168
      %v3174 = vrot.slane %v3173, 4
      %v3176 = vshll.u32 %v2915, 16
      %v3178 = vrot.slane %v3176, 5
      %v3179 = vsel %vm865, %v3174, %v3178
      %v3181 = vshrl.u32 %v2916, 16
      %v3183 = vrot.slane %v3181, 4
      %v3184 = vshll.u32 %v2916, 16
      %v3186 = vrot.slane %v3184, 5
      %v3187 = vor.u32 %v3183, %v3186
      %v3188 = vrot.slane %v3187, 4
      %v3190 = vshll.u32 %v2917, 16
      %v3192 = vrot.slane %v3190, 5
      %v3193 = vsel %vm865, %v3188, %v3192
      %v3194 = vshrl.u32 %v2917, 16
      %v3196 = vrot.slane %v3194, 4
      %v3197 = vor.u32 %v3196, %v3192
      %v3198 = vrot.slane %v3197, 4
      %v3200 = vshll.u32 %v2918, 16
      %v3202 = vrot.slane %v3200, 5
      %v3203 = vsel %vm865, %v3198, %v3202
      %v3205 = vshrl.u32 %v2919, 16
      %v3207 = vrot.slane %v3205, 4
      %v3208 = vshll.u32 %v2919, 16
      %v3210 = vrot.slane %v3208, 5
      %v3211 = vor.u32 %v3207, %v3210
      %v3212 = vrot.slane %v3211, 4
      %v3214 = vshll.u32 %v2920, 16
      %v3216 = vrot.slane %v3214, 5
      %v3217 = vsel %vm865, %v3212, %v3216
      %v3218 = vshrl.u32 %v2920, 16
      %v3220 = vrot.slane %v3218, 4
      %v3221 = vor.u32 %v3220, %v3216
      %v3222 = vrot.slane %v3221, 4
      %v3224 = vshll.u32 %v2921, 16
      %v3226 = vrot.slane %v3224, 5
      %v3227 = vsel %vm865, %v3222, %v3226
      %v3229 = vshrl.u32 %v2922, 16
      %v3231 = vrot.slane %v3229, 4
      %v3232 = vshll.u32 %v2922, 16
      %v3234 = vrot.slane %v3232, 5
      %v3235 = vor.u32 %v3231, %v3234
      %v3236 = vrot.slane %v3235, 4
      %v3238 = vshll.u32 %v2923, 16
      %v3240 = vrot.slane %v3238, 5
      %v3241 = vsel %vm865, %v3236, %v3240
      %v3242 = vshrl.u32 %v2923, 16
      %v3244 = vrot.slane %v3242, 4
      %v3245 = vor.u32 %v3244, %v3240
      %v3246 = vrot.slane %v3245, 4
      %v3248 = vshll.u32 %v2924, 16
      %v3250 = vrot.slane %v3248, 5
      %v3251 = vsel %vm865, %v3246, %v3250
      %v3253 = vshrl.u32 %v2925, 16
      %v3255 = vrot.slane %v3253, 4
      %v3256 = vshll.u32 %v2925, 16
      %v3258 = vrot.slane %v3256, 5
      %v3259 = vor.u32 %v3255, %v3258
      %v3260 = vrot.slane %v3259, 4
      %v3262 = vshll.u32 %v2926, 16
      %v3264 = vrot.slane %v3262, 5
      %v3265 = vsel %vm865, %v3260, %v3264
      %v3266 = vshrl.u32 %v2926, 16
      %v3268 = vrot.slane %v3266, 4
      %v3269 = vor.u32 %v3268, %v3264
      %v3270 = vrot.slane %v3269, 4
      %v3272 = vshll.u32 %v2927, 16
      %v3274 = vrot.slane %v3272, 5
      %v3275 = vsel %vm865, %v3270, %v3274
      %v3277 = vshrl.u32 %v2928, 16
      %v3279 = vrot.slane %v3277, 4
      %v3280 = vshll.u32 %v2928, 16
      %v3282 = vrot.slane %v3280, 5
      %v3283 = vor.u32 %v3279, %v3282
      %v3284 = vrot.slane %v3283, 4
      %v3286 = vshll.u32 %v2929, 16
      %v3288 = vrot.slane %v3286, 5
      %v3289 = vsel %vm865, %v3284, %v3288
      %v3290 = vshrl.u32 %v2929, 16
      %v3292 = vrot.slane %v3290, 4
      %v3293 = vor.u32 %v3292, %v3288
      %v3294 = vrot.slane %v3293, 4
      %v3296 = vshll.u32 %v2930, 16
      %v3298 = vrot.slane %v3296, 5
      %v3299 = vsel %vm865, %v3294, %v3298
      %v3301 = vshrl.u32 %v2931, 16
      %v3303 = vrot.slane %v3301, 4
      %v3304 = vshll.u32 %v2931, 16
      %v3306 = vrot.slane %v3304, 5
      %v3307 = vor.u32 %v3303, %v3306
      %v3308 = vrot.slane %v3307, 4
      %v3310 = vshll.u32 %v2932, 16
      %v3312 = vrot.slane %v3310, 5
      %v3313 = vsel %vm865, %v3308, %v3312
      %v3314 = vshrl.u32 %v2932, 16
      %v3316 = vrot.slane %v3314, 4
      %v3317 = vor.u32 %v3316, %v3312
      %v3318 = vrot.slane %v3317, 4
      %v3320 = vshll.u32 %v2933, 16
      %v3322 = vrot.slane %v3320, 5
      %v3323 = vsel %vm865, %v3318, %v3322
      %v3372 = vrot.slane %v2886, 5
      %v3373 = vrot.slane %v3372, 4
      %v3374 = vrot.slane %v2887, 5
      %v3375 = vsel %vm1300, %v3373, %v3374
      %v3376 = vrot.slane %v3374, 4
      %v3377 = vrot.slane %v2888, 5
      %v3378 = vsel %vm1300, %v3376, %v3377
      %v3379 = vrot.slane %v2889, 5
      %v3380 = vrot.slane %v3379, 4
      %v3381 = vrot.slane %v2890, 5
      %v3382 = vsel %vm1300, %v3380, %v3381
      %v3383 = vrot.slane %v3381, 4
      %v3384 = vrot.slane %v2891, 5
      %v3385 = vsel %vm1300, %v3383, %v3384
      %v3386 = vrot.slane %v2892, 5
      %v3387 = vrot.slane %v3386, 4
      %v3388 = vrot.slane %v2893, 5
      %v3389 = vsel %vm1300, %v3387, %v3388
      %v3390 = vrot.slane %v3388, 4
      %v3391 = vrot.slane %v2894, 5
      %v3392 = vsel %vm1300, %v3390, %v3391
      %v3393 = vrot.slane %v2895, 5
      %v3394 = vrot.slane %v3393, 4
      %v3395 = vrot.slane %v2896, 5
      %v3396 = vsel %vm1300, %v3394, %v3395
      %v3397 = vrot.slane %v3395, 4
      %v3398 = vrot.slane %v2897, 5
      %v3399 = vsel %vm1300, %v3397, %v3398
      %v3400 = vrot.slane %v2898, 5
      %v3401 = vrot.slane %v3400, 4
      %v3402 = vrot.slane %v2899, 5
      %v3403 = vsel %vm1300, %v3401, %v3402
      %v3404 = vrot.slane %v3402, 4
      %v3405 = vrot.slane %v2900, 5
      %v3406 = vsel %vm1300, %v3404, %v3405
      %v3407 = vrot.slane %v2901, 5
      %v3408 = vrot.slane %v3407, 4
      %v3409 = vrot.slane %v2902, 5
      %v3410 = vsel %vm1300, %v3408, %v3409
      %v3411 = vrot.slane %v3409, 4
      %v3412 = vrot.slane %v2903, 5
      %v3413 = vsel %vm1300, %v3411, %v3412
      %v3414 = vrot.slane %v2904, 5
      %v3415 = vrot.slane %v3414, 4
      %v3416 = vrot.slane %v2905, 5
      %v3417 = vsel %vm1300, %v3415, %v3416
      %v3418 = vrot.slane %v3416, 4
      %v3419 = vrot.slane %v2906, 5
      %v3420 = vsel %vm1300, %v3418, %v3419
      %v3421 = vrot.slane %v2907, 5
      %v3422 = vrot.slane %v3421, 4
      %v3423 = vrot.slane %v2908, 5
      %v3424 = vsel %vm1300, %v3422, %v3423
      %v3425 = vrot.slane %v3423, 4
      %v3426 = vrot.slane %v2909, 5
      %v3427 = vsel %vm1300, %v3425, %v3426
      %v3428 = vrot.slane %v2910, 5
      %v3429 = vrot.slane %v3428, 4
      %v3430 = vrot.slane %v2911, 5
      %v3431 = vsel %vm1300, %v3429, %v3430
      %v3432 = vrot.slane %v3430, 4
      %v3433 = vrot.slane %v2912, 5
      %v3434 = vsel %vm1300, %v3432, %v3433
      %v3435 = vrot.slane %v2913, 5
      %v3436 = vrot.slane %v3435, 4
      %v3437 = vrot.slane %v2914, 5
      %v3438 = vsel %vm1300, %v3436, %v3437
      %v3439 = vrot.slane %v3437, 4
      %v3440 = vrot.slane %v2915, 5
      %v3441 = vsel %vm1300, %v3439, %v3440
      %v3442 = vrot.slane %v2916, 5
      %v3443 = vrot.slane %v3442, 4
      %v3444 = vrot.slane %v2917, 5
      %v3445 = vsel %vm1300, %v3443, %v3444
      %v3446 = vrot.slane %v3444, 4
      %v3447 = vrot.slane %v2918, 5
      %v3448 = vsel %vm1300, %v3446, %v3447
      %v3449 = vrot.slane %v2919, 5
      %v3450 = vrot.slane %v3449, 4
      %v3451 = vrot.slane %v2920, 5
      %v3452 = vsel %vm1300, %v3450, %v3451
      %v3453 = vrot.slane %v3451, 4
      %v3454 = vrot.slane %v2921, 5
      %v3455 = vsel %vm1300, %v3453, %v3454
      %v3456 = vrot.slane %v2922, 5
      %v3457 = vrot.slane %v3456, 4
      %v3458 = vrot.slane %v2923, 5
      %v3459 = vsel %vm1300, %v3457, %v3458
      %v3460 = vrot.slane %v3458, 4
      %v3461 = vrot.slane %v2924, 5
      %v3462 = vsel %vm1300, %v3460, %v3461
      %v3463 = vrot.slane %v2925, 5
      %v3464 = vrot.slane %v3463, 4
      %v3465 = vrot.slane %v2926, 5
      %v3466 = vsel %vm1300, %v3464, %v3465
      %v3467 = vrot.slane %v3465, 4
      %v3468 = vrot.slane %v2927, 5
      %v3469 = vsel %vm1300, %v3467, %v3468
      %v3470 = vrot.slane %v2928, 5
      %v3471 = vrot.slane %v3470, 4
      %v3472 = vrot.slane %v2929, 5
      %v3473 = vsel %vm1300, %v3471, %v3472
      %v3474 = vrot.slane %v3472, 4
      %v3475 = vrot.slane %v2930, 5
      %v3476 = vsel %vm1300, %v3474, %v3475
      %v3477 = vrot.slane %v2931, 5
      %v3478 = vrot.slane %v3477, 4
      %v3479 = vrot.slane %v2932, 5
      %v3480 = vsel %vm1300, %v3478, %v3479
      %v3481 = vrot.slane %v3479, 4
      %v3482 = vrot.slane %v2933, 5
      %v3483 = vsel %vm1300, %v3481, %v3482
      %v3485 = vshrl.u32 %v2934, 16
      %v3487 = vrot.slane %v3485, 4
      %v3488 = vshll.u32 %v2934, 16
      %v3490 = vrot.slane %v3488, 5
      %v3491 = vor.u32 %v3487, %v3490
      %v3492 = vrot.slane %v3491, 4
      %v3494 = vshll.u32 %v2935, 16
      %v3496 = vrot.slane %v3494, 5
      %v3497 = vsel %vm865, %v3492, %v3496
      %v3498 = vshrl.u32 %v2935, 16
      %v3500 = vrot.slane %v3498, 4
      %v3501 = vor.u32 %v3500, %v3496
      %v3502 = vrot.slane %v3501, 4
      %v3504 = vshll.u32 %v2936, 16
      %v3506 = vrot.slane %v3504, 5
      %v3507 = vsel %vm865, %v3502, %v3506
      %v3511 = vrot.slane %v2934, 5
      %v3512 = vrot.slane %v3511, 4
      %v3513 = vrot.slane %v2935, 5
      %v3514 = vsel %vm1300, %v3512, %v3513
      %v3515 = vrot.slane %v3513, 4
      %v3516 = vrot.slane %v2936, 5
      %v3517 = vsel %vm1300, %v3515, %v3516
      %v3519 = vshrl.u32 %v2937, 16
      %v3521 = vrot.slane %v3519, 4
      %v3522 = vshll.u32 %v2937, 16
      %v3524 = vrot.slane %v3522, 5
      %v3525 = vor.u32 %v3521, %v3524
      %v3526 = vrot.slane %v3525, 4
      %v3528 = vshll.u32 %v2938, 16
      %v3530 = vrot.slane %v3528, 5
      %v3531 = vsel %vm865, %v3526, %v3530
      %v3532 = vshrl.u32 %v2938, 16
      %v3534 = vrot.slane %v3532, 4
      %v3535 = vor.u32 %v3534, %v3530
      %v3536 = vrot.slane %v3535, 4
      %v3538 = vshll.u32 %v2939, 16
      %v3540 = vrot.slane %v3538, 5
      %v3541 = vsel %vm865, %v3536, %v3540
      %v3545 = vrot.slane %v2937, 5
      %v3546 = vrot.slane %v3545, 4
      %v3547 = vrot.slane %v2938, 5
      %v3548 = vsel %vm1300, %v3546, %v3547
      %v3549 = vrot.slane %v3547, 4
      %v3550 = vrot.slane %v2939, 5
      %v3551 = vsel %vm1300, %v3549, %v3550
      %v3552 = vunpack.c.l.b16 %v2886
      %v3553 = vunpack.c.l.b16 %v2887
      %v3554 = vunpack.c.l.b16 %v2889
      %v3555 = vunpack.c.l.b16 %v2890
      %v3556 = vunpack.c.l.b16 %v2892
      %v3557 = vunpack.c.l.b16 %v2893
      %v3558 = vunpack.c.l.b16 %v2895
      %v3559 = vunpack.c.l.b16 %v2896
      %v3560 = vunpack.c.l.b16 %v2898
      %v3561 = vunpack.c.l.b16 %v2899
      %v3562 = vunpack.c.l.b16 %v2901
      %v3563 = vunpack.c.l.b16 %v2902
      %v3564 = vunpack.c.l.b16 %v2904
      %v3565 = vunpack.c.l.b16 %v2905
      %v3566 = vunpack.c.l.b16 %v2907
      %v3567 = vunpack.c.l.b16 %v2908
      %v3568 = vunpack.c.l.b16 %v2910
      %v3569 = vunpack.c.l.b16 %v2911
      %v3570 = vunpack.c.l.b16 %v2913
      %v3571 = vunpack.c.l.b16 %v2914
      %v3572 = vunpack.c.l.b16 %v2916
      %v3573 = vunpack.c.l.b16 %v2917
      %v3574 = vunpack.c.l.b16 %v2919
      %v3575 = vunpack.c.l.b16 %v2920
      %v3576 = vunpack.c.l.b16 %v2922
      %v3577 = vunpack.c.l.b16 %v2923
      %v3578 = vunpack.c.l.b16 %v2925
      %v3579 = vunpack.c.l.b16 %v2926
      %v3580 = vunpack.c.l.b16 %v2928
      %v3581 = vunpack.c.l.b16 %v2929
      %v3582 = vunpack.c.l.b16 %v2931
      %v3583 = vunpack.c.l.b16 %v2932
      %v3584 = vpack.c.b16 %v3553, %v3552
      %v3585 = vpack.c.b16 %v3555, %v3554
      %v3586 = vpack.c.b16 %v3557, %v3556
      %v3587 = vpack.c.b16 %v3559, %v3558
      %v3588 = vpack.c.b16 %v3561, %v3560
      %v3589 = vpack.c.b16 %v3563, %v3562
      %v3590 = vpack.c.b16 %v3565, %v3564
      %v3591 = vpack.c.b16 %v3567, %v3566
      %v3592 = vpack.c.b16 %v3569, %v3568
      %v3593 = vpack.c.b16 %v3571, %v3570
      %v3594 = vpack.c.b16 %v3573, %v3572
      %v3595 = vpack.c.b16 %v3575, %v3574
      %v3596 = vpack.c.b16 %v3577, %v3576
      %v3597 = vpack.c.b16 %v3579, %v3578
      %v3598 = vpack.c.b16 %v3581, %v3580
      %v3599 = vpack.c.b16 %v3583, %v3582
      %v3600 = vunpack.c.l.b16 %v2953
      %v3601 = vunpack.c.l.b16 %v2963
      %v3602 = vunpack.c.l.b16 %v2977
      %v3603 = vunpack.c.l.b16 %v2987
      %v3604 = vunpack.c.l.b16 %v3001
      %v3605 = vunpack.c.l.b16 %v3011
      %v3606 = vunpack.c.l.b16 %v3025
      %v3607 = vunpack.c.l.b16 %v3035
      %v3608 = vunpack.c.l.b16 %v3049
      %v3609 = vunpack.c.l.b16 %v3059
      %v3610 = vunpack.c.l.b16 %v3073
      %v3611 = vunpack.c.l.b16 %v3083
      %v3612 = vunpack.c.l.b16 %v3097
      %v3613 = vunpack.c.l.b16 %v3107
      %v3614 = vunpack.c.l.b16 %v3121
      %v3615 = vunpack.c.l.b16 %v3131
      %v3616 = vunpack.c.l.b16 %v3145
      %v3617 = vunpack.c.l.b16 %v3155
      %v3618 = vunpack.c.l.b16 %v3169
      %v3619 = vunpack.c.l.b16 %v3179
      %v3620 = vunpack.c.l.b16 %v3193
      %v3621 = vunpack.c.l.b16 %v3203
      %v3622 = vunpack.c.l.b16 %v3217
      %v3623 = vunpack.c.l.b16 %v3227
      %v3624 = vunpack.c.l.b16 %v3241
      %v3625 = vunpack.c.l.b16 %v3251
      %v3626 = vunpack.c.l.b16 %v3265
      %v3627 = vunpack.c.l.b16 %v3275
      %v3628 = vunpack.c.l.b16 %v3289
      %v3629 = vunpack.c.l.b16 %v3299
      %v3630 = vunpack.c.l.b16 %v3313
      %v3631 = vunpack.c.l.b16 %v3323
      %v3632 = vpack.c.b16 %v3601, %v3600
      %v3633 = vpack.c.b16 %v3603, %v3602
      %v3634 = vpack.c.b16 %v3605, %v3604
      %v3635 = vpack.c.b16 %v3607, %v3606
      %v3636 = vpack.c.b16 %v3609, %v3608
      %v3637 = vpack.c.b16 %v3611, %v3610
      %v3638 = vpack.c.b16 %v3613, %v3612
      %v3639 = vpack.c.b16 %v3615, %v3614
      %v3640 = vpack.c.b16 %v3617, %v3616
      %v3641 = vpack.c.b16 %v3619, %v3618
      %v3642 = vpack.c.b16 %v3621, %v3620
      %v3643 = vpack.c.b16 %v3623, %v3622
      %v3644 = vpack.c.b16 %v3625, %v3624
      %v3645 = vpack.c.b16 %v3627, %v3626
      %v3646 = vpack.c.b16 %v3629, %v3628
      %v3647 = vpack.c.b16 %v3631, %v3630
      %3648 = vrot.lane.b32.xlu0 %v3632, 8
      %v3649 = vpop.permute.xlu0 %3648
      %3650 = vrot.lane.b32.xlu0 %v3633, 8
      %v3651 = vpop.permute.xlu0 %3650
      %3652 = vrot.lane.b32.xlu0 %v3634, 8
      %v3653 = vpop.permute.xlu0 %3652
      %3654 = vrot.lane.b32.xlu0 %v3635, 8
      %v3655 = vpop.permute.xlu0 %3654
      %3656 = vrot.lane.b32.xlu0 %v3636, 8
      %v3657 = vpop.permute.xlu0 %3656
      %3658 = vrot.lane.b32.xlu0 %v3637, 8
      %v3659 = vpop.permute.xlu0 %3658
      %3660 = vrot.lane.b32.xlu0 %v3638, 8
      %v3661 = vpop.permute.xlu0 %3660
      %3662 = vrot.lane.b32.xlu0 %v3639, 8
      %v3663 = vpop.permute.xlu0 %3662
      %3664 = vrot.lane.b32.xlu0 %v3640, 8
      %v3665 = vpop.permute.xlu0 %3664
      %3666 = vrot.lane.b32.xlu0 %v3641, 8
      %v3667 = vpop.permute.xlu0 %3666
      %3668 = vrot.lane.b32.xlu0 %v3642, 8
      %v3669 = vpop.permute.xlu0 %3668
      %3670 = vrot.lane.b32.xlu0 %v3643, 8
      %v3671 = vpop.permute.xlu0 %3670
      %3672 = vrot.lane.b32.xlu0 %v3644, 8
      %v3673 = vpop.permute.xlu0 %3672
      %3674 = vrot.lane.b32.xlu0 %v3645, 8
      %v3675 = vpop.permute.xlu0 %3674
      %3676 = vrot.lane.b32.xlu0 %v3646, 8
      %v3677 = vpop.permute.xlu0 %3676
      %3678 = vrot.lane.b32.xlu0 %v3647, 8
      %v3679 = vpop.permute.xlu0 %3678
      %v3680 = vunpack.c.l.b16 %v3375
      %v3681 = vunpack.c.l.b16 %v3378
      %v3682 = vunpack.c.l.b16 %v3382
      %v3683 = vunpack.c.l.b16 %v3385
      %v3684 = vunpack.c.l.b16 %v3389
      %v3685 = vunpack.c.l.b16 %v3392
      %v3686 = vunpack.c.l.b16 %v3396
      %v3687 = vunpack.c.l.b16 %v3399
      %v3688 = vunpack.c.l.b16 %v3403
      %v3689 = vunpack.c.l.b16 %v3406
      %v3690 = vunpack.c.l.b16 %v3410
      %v3691 = vunpack.c.l.b16 %v3413
      %v3692 = vunpack.c.l.b16 %v3417
      %v3693 = vunpack.c.l.b16 %v3420
      %v3694 = vunpack.c.l.b16 %v3424
      %v3695 = vunpack.c.l.b16 %v3427
      %v3696 = vunpack.c.l.b16 %v3431
      %v3697 = vunpack.c.l.b16 %v3434
      %v3698 = vunpack.c.l.b16 %v3438
      %v3699 = vunpack.c.l.b16 %v3441
      %v3700 = vunpack.c.l.b16 %v3445
      %v3701 = vunpack.c.l.b16 %v3448
      %v3702 = vunpack.c.l.b16 %v3452
      %v3703 = vunpack.c.l.b16 %v3455
      %v3704 = vunpack.c.l.b16 %v3459
      %v3705 = vunpack.c.l.b16 %v3462
      %v3706 = vunpack.c.l.b16 %v3466
      %v3707 = vunpack.c.l.b16 %v3469
      %v3708 = vunpack.c.l.b16 %v3473
      %v3709 = vunpack.c.l.b16 %v3476
      %v3710 = vunpack.c.l.b16 %v3480
      %v3711 = vunpack.c.l.b16 %v3483
      %v3712 = vpack.c.b16 %v3681, %v3680
      %v3713 = vpack.c.b16 %v3683, %v3682
      %v3714 = vpack.c.b16 %v3685, %v3684
      %v3715 = vpack.c.b16 %v3687, %v3686
      %v3716 = vpack.c.b16 %v3689, %v3688
      %v3717 = vpack.c.b16 %v3691, %v3690
      %v3718 = vpack.c.b16 %v3693, %v3692
      %v3719 = vpack.c.b16 %v3695, %v3694
      %v3720 = vpack.c.b16 %v3697, %v3696
      %v3721 = vpack.c.b16 %v3699, %v3698
      %v3722 = vpack.c.b16 %v3701, %v3700
      %v3723 = vpack.c.b16 %v3703, %v3702
      %v3724 = vpack.c.b16 %v3705, %v3704
      %v3725 = vpack.c.b16 %v3707, %v3706
      %v3726 = vpack.c.b16 %v3709, %v3708
      %v3727 = vpack.c.b16 %v3711, %v3710
      %3728 = vrot.lane.b32.xlu0 %v3712, 16
      %v3729 = vpop.permute.xlu0 %3728
      %3730 = vrot.lane.b32.xlu0 %v3713, 16
      %v3731 = vpop.permute.xlu0 %3730
      %3732 = vrot.lane.b32.xlu0 %v3714, 16
      %v3733 = vpop.permute.xlu0 %3732
      %3734 = vrot.lane.b32.xlu0 %v3715, 16
      %v3735 = vpop.permute.xlu0 %3734
      %3736 = vrot.lane.b32.xlu0 %v3716, 16
      %v3737 = vpop.permute.xlu0 %3736
      %3738 = vrot.lane.b32.xlu0 %v3717, 16
      %v3739 = vpop.permute.xlu0 %3738
      %3740 = vrot.lane.b32.xlu0 %v3718, 16
      %v3741 = vpop.permute.xlu0 %3740
      %3742 = vrot.lane.b32.xlu0 %v3719, 16
      %v3743 = vpop.permute.xlu0 %3742
      %3744 = vrot.lane.b32.xlu0 %v3720, 16
      %v3745 = vpop.permute.xlu0 %3744
      %3746 = vrot.lane.b32.xlu0 %v3721, 16
      %v3747 = vpop.permute.xlu0 %3746
      %3748 = vrot.lane.b32.xlu0 %v3722, 16
      %v3749 = vpop.permute.xlu0 %3748
      %3750 = vrot.lane.b32.xlu0 %v3723, 16
      %v3751 = vpop.permute.xlu0 %3750
      %3752 = vrot.lane.b32.xlu0 %v3724, 16
      %v3753 = vpop.permute.xlu0 %3752
      %3754 = vrot.lane.b32.xlu0 %v3725, 16
      %v3755 = vpop.permute.xlu0 %3754
      %3756 = vrot.lane.b32.xlu0 %v3726, 16
      %v3757 = vpop.permute.xlu0 %3756
      %3758 = vrot.lane.b32.xlu0 %v3727, 16
      %v3759 = vpop.permute.xlu0 %3758
      %v3760 = vunpack.c.l.b16 %v2934
      %v3761 = vunpack.c.l.b16 %v2935
      %v3762 = vpack.c.b16 %v3761, %v3760
      %3763 = vrot.lane.b32.xlu0 %v3585, 24
      %v3764 = vpop.permute.xlu0 %3763
      %3765 = vrot.lane.b32.xlu0 %v3586, 24
      %v3766 = vpop.permute.xlu0 %3765
      %3767 = vrot.lane.b32.xlu0 %v3587, 24
      %v3768 = vpop.permute.xlu0 %3767
      %3769 = vrot.lane.b32.xlu0 %v3588, 24
      %v3770 = vpop.permute.xlu0 %3769
      %3771 = vrot.lane.b32.xlu0 %v3589, 24
      %v3772 = vpop.permute.xlu0 %3771
      %3773 = vrot.lane.b32.xlu0 %v3590, 24
      %v3774 = vpop.permute.xlu0 %3773
      %3775 = vrot.lane.b32.xlu0 %v3591, 24
      %v3776 = vpop.permute.xlu0 %3775
      %3777 = vrot.lane.b32.xlu0 %v3592, 24
      %v3778 = vpop.permute.xlu0 %3777
      %3779 = vrot.lane.b32.xlu0 %v3593, 24
      %v3780 = vpop.permute.xlu0 %3779
      %3781 = vrot.lane.b32.xlu0 %v3594, 24
      %v3782 = vpop.permute.xlu0 %3781
      %3783 = vrot.lane.b32.xlu0 %v3595, 24
      %v3784 = vpop.permute.xlu0 %3783
      %3785 = vrot.lane.b32.xlu0 %v3596, 24
      %v3786 = vpop.permute.xlu0 %3785
      %3787 = vrot.lane.b32.xlu0 %v3597, 24
      %v3788 = vpop.permute.xlu0 %3787
      %3789 = vrot.lane.b32.xlu0 %v3598, 24
      %v3790 = vpop.permute.xlu0 %3789
      %3791 = vrot.lane.b32.xlu0 %v3599, 24
      %v3792 = vpop.permute.xlu0 %3791
      %3793 = vrot.lane.b32.xlu0 %v3762, 24
      %v3794 = vpop.permute.xlu0 %3793
      %v3795 = vunpack.c.l.b16 %v3497
      %v3796 = vunpack.c.l.b16 %v3507
      %v3797 = vpack.c.b16 %v3796, %v3795
      %3798 = vrot.lane.b32.xlu0 %v3633, 32
      %v3799 = vpop.permute.xlu0 %3798
      %3800 = vrot.lane.b32.xlu0 %v3634, 32
      %v3801 = vpop.permute.xlu0 %3800
      %3802 = vrot.lane.b32.xlu0 %v3635, 32
      %v3803 = vpop.permute.xlu0 %3802
      %3804 = vrot.lane.b32.xlu0 %v3636, 32
      %v3805 = vpop.permute.xlu0 %3804
      %3806 = vrot.lane.b32.xlu0 %v3637, 32
      %v3807 = vpop.permute.xlu0 %3806
      %3808 = vrot.lane.b32.xlu0 %v3638, 32
      %v3809 = vpop.permute.xlu0 %3808
      %3810 = vrot.lane.b32.xlu0 %v3639, 32
      %v3811 = vpop.permute.xlu0 %3810
      %3812 = vrot.lane.b32.xlu0 %v3640, 32
      %v3813 = vpop.permute.xlu0 %3812
      %3814 = vrot.lane.b32.xlu0 %v3641, 32
      %v3815 = vpop.permute.xlu0 %3814
      %3816 = vrot.lane.b32.xlu0 %v3642, 32
      %v3817 = vpop.permute.xlu0 %3816
      %3818 = vrot.lane.b32.xlu0 %v3643, 32
      %v3819 = vpop.permute.xlu0 %3818
      %3820 = vrot.lane.b32.xlu0 %v3644, 32
      %v3821 = vpop.permute.xlu0 %3820
      %3822 = vrot.lane.b32.xlu0 %v3645, 32
      %v3823 = vpop.permute.xlu0 %3822
      %3824 = vrot.lane.b32.xlu0 %v3646, 32
      %v3825 = vpop.permute.xlu0 %3824
      %3826 = vrot.lane.b32.xlu0 %v3647, 32
      %v3827 = vpop.permute.xlu0 %3826
      %3828 = vrot.lane.b32.xlu0 %v3797, 32
      %v3829 = vpop.permute.xlu0 %3828
      %v3830 = vunpack.c.l.b16 %v3514
      %v3831 = vunpack.c.l.b16 %v3517
      %v3832 = vpack.c.b16 %v3831, %v3830
      %3833 = vrot.lane.b32.xlu0 %v3713, 40
      %v3834 = vpop.permute.xlu0 %3833
      %3835 = vrot.lane.b32.xlu0 %v3714, 40
      %v3836 = vpop.permute.xlu0 %3835
      %3837 = vrot.lane.b32.xlu0 %v3715, 40
      %v3838 = vpop.permute.xlu0 %3837
      %3839 = vrot.lane.b32.xlu0 %v3716, 40
      %v3840 = vpop.permute.xlu0 %3839
      %3841 = vrot.lane.b32.xlu0 %v3717, 40
      %v3842 = vpop.permute.xlu0 %3841
      %3843 = vrot.lane.b32.xlu0 %v3718, 40
      %v3844 = vpop.permute.xlu0 %3843
      %3845 = vrot.lane.b32.xlu0 %v3719, 40
      %v3846 = vpop.permute.xlu0 %3845
      %3847 = vrot.lane.b32.xlu0 %v3720, 40
      %v3848 = vpop.permute.xlu0 %3847
      %3849 = vrot.lane.b32.xlu0 %v3721, 40
      %v3850 = vpop.permute.xlu0 %3849
      %3851 = vrot.lane.b32.xlu0 %v3722, 40
      %v3852 = vpop.permute.xlu0 %3851
      %3853 = vrot.lane.b32.xlu0 %v3723, 40
      %v3854 = vpop.permute.xlu0 %3853
      %3855 = vrot.lane.b32.xlu0 %v3724, 40
      %v3856 = vpop.permute.xlu0 %3855
      %3857 = vrot.lane.b32.xlu0 %v3725, 40
      %v3858 = vpop.permute.xlu0 %3857
      %3859 = vrot.lane.b32.xlu0 %v3726, 40
      %v3860 = vpop.permute.xlu0 %3859
      %3861 = vrot.lane.b32.xlu0 %v3727, 40
      %v3862 = vpop.permute.xlu0 %3861
      %3863 = vrot.lane.b32.xlu0 %v3832, 40
      %v3864 = vpop.permute.xlu0 %3863
      %v3865 = vunpack.c.l.b16 %v2937
      %v3866 = vunpack.c.l.b16 %v2938
      %v3867 = vpack.c.b16 %v3866, %v3865
      %3868 = vrot.lane.b32.xlu0 %v3586, 48
      %v3869 = vpop.permute.xlu0 %3868
      %3870 = vrot.lane.b32.xlu0 %v3587, 48
      %v3871 = vpop.permute.xlu0 %3870
      %3872 = vrot.lane.b32.xlu0 %v3588, 48
      %v3873 = vpop.permute.xlu0 %3872
      %3874 = vrot.lane.b32.xlu0 %v3589, 48
      %v3875 = vpop.permute.xlu0 %3874
      %3876 = vrot.lane.b32.xlu0 %v3590, 48
      %v3877 = vpop.permute.xlu0 %3876
      %3878 = vrot.lane.b32.xlu0 %v3591, 48
      %v3879 = vpop.permute.xlu0 %3878
      %3880 = vrot.lane.b32.xlu0 %v3592, 48
      %v3881 = vpop.permute.xlu0 %3880
      %3882 = vrot.lane.b32.xlu0 %v3593, 48
      %v3883 = vpop.permute.xlu0 %3882
      %3884 = vrot.lane.b32.xlu0 %v3594, 48
      %v3885 = vpop.permute.xlu0 %3884
      %3886 = vrot.lane.b32.xlu0 %v3595, 48
      %v3887 = vpop.permute.xlu0 %3886
      %3888 = vrot.lane.b32.xlu0 %v3596, 48
      %v3889 = vpop.permute.xlu0 %3888
      %3890 = vrot.lane.b32.xlu0 %v3597, 48
      %v3891 = vpop.permute.xlu0 %3890
      %3892 = vrot.lane.b32.xlu0 %v3598, 48
      %v3893 = vpop.permute.xlu0 %3892
      %3894 = vrot.lane.b32.xlu0 %v3599, 48
      %v3895 = vpop.permute.xlu0 %3894
      %3896 = vrot.lane.b32.xlu0 %v3762, 48
      %v3897 = vpop.permute.xlu0 %3896
      %3898 = vrot.lane.b32.xlu0 %v3867, 48
      %v3899 = vpop.permute.xlu0 %3898
      %v3900 = vunpack.c.l.b16 %v3531
      %v3901 = vunpack.c.l.b16 %v3541
      %v3902 = vpack.c.b16 %v3901, %v3900
      %3903 = vrot.lane.b32.xlu0 %v3634, 56
      %v3904 = vpop.permute.xlu0 %3903
      %3905 = vrot.lane.b32.xlu0 %v3635, 56
      %v3906 = vpop.permute.xlu0 %3905
      %3907 = vrot.lane.b32.xlu0 %v3636, 56
      %v3908 = vpop.permute.xlu0 %3907
      %3909 = vrot.lane.b32.xlu0 %v3637, 56
      %v3910 = vpop.permute.xlu0 %3909
      %3911 = vrot.lane.b32.xlu0 %v3638, 56
      %v3912 = vpop.permute.xlu0 %3911
      %3913 = vrot.lane.b32.xlu0 %v3639, 56
      %v3914 = vpop.permute.xlu0 %3913
      %3915 = vrot.lane.b32.xlu0 %v3640, 56
      %v3916 = vpop.permute.xlu0 %3915
      %3917 = vrot.lane.b32.xlu0 %v3641, 56
      %v3918 = vpop.permute.xlu0 %3917
      %3919 = vrot.lane.b32.xlu0 %v3642, 56
      %v3920 = vpop.permute.xlu0 %3919
      %3921 = vrot.lane.b32.xlu0 %v3643, 56
      %v3922 = vpop.permute.xlu0 %3921
      %3923 = vrot.lane.b32.xlu0 %v3644, 56
      %v3924 = vpop.permute.xlu0 %3923
      %3925 = vrot.lane.b32.xlu0 %v3645, 56
      %v3926 = vpop.permute.xlu0 %3925
      %3927 = vrot.lane.b32.xlu0 %v3646, 56
      %v3928 = vpop.permute.xlu0 %3927
      %3929 = vrot.lane.b32.xlu0 %v3647, 56
      %v3930 = vpop.permute.xlu0 %3929
      %3931 = vrot.lane.b32.xlu0 %v3797, 56
      %v3932 = vpop.permute.xlu0 %3931
      %3933 = vrot.lane.b32.xlu0 %v3902, 56
      %v3934 = vpop.permute.xlu0 %3933
      %v3935 = vunpack.c.l.b16 %v3548
      %v3936 = vunpack.c.l.b16 %v3551
      %v3937 = vpack.c.b16 %v3936, %v3935
      %3938 = vrot.lane.b32.xlu0 %v3714, 64
      %v3939 = vpop.permute.xlu0 %3938
      %3940 = vrot.lane.b32.xlu0 %v3715, 64
      %v3941 = vpop.permute.xlu0 %3940
      %3942 = vrot.lane.b32.xlu0 %v3716, 64
      %v3943 = vpop.permute.xlu0 %3942
      %3944 = vrot.lane.b32.xlu0 %v3717, 64
      %v3945 = vpop.permute.xlu0 %3944
      %3946 = vrot.lane.b32.xlu0 %v3718, 64
      %v3947 = vpop.permute.xlu0 %3946
      %3948 = vrot.lane.b32.xlu0 %v3719, 64
      %v3949 = vpop.permute.xlu0 %3948
      %3950 = vrot.lane.b32.xlu0 %v3720, 64
      %v3951 = vpop.permute.xlu0 %3950
      %3952 = vrot.lane.b32.xlu0 %v3721, 64
      %v3953 = vpop.permute.xlu0 %3952
      %3954 = vrot.lane.b32.xlu0 %v3722, 64
      %v3955 = vpop.permute.xlu0 %3954
      %3956 = vrot.lane.b32.xlu0 %v3723, 64
      %v3957 = vpop.permute.xlu0 %3956
      %3958 = vrot.lane.b32.xlu0 %v3724, 64
      %v3959 = vpop.permute.xlu0 %3958
      %3960 = vrot.lane.b32.xlu0 %v3725, 64
      %v3961 = vpop.permute.xlu0 %3960
      %3962 = vrot.lane.b32.xlu0 %v3726, 64
      %v3963 = vpop.permute.xlu0 %3962
      %3964 = vrot.lane.b32.xlu0 %v3727, 64
      %v3965 = vpop.permute.xlu0 %3964
      %3966 = vrot.lane.b32.xlu0 %v3832, 64
      %v3967 = vpop.permute.xlu0 %3966
      %3968 = vrot.lane.b32.xlu0 %v3937, 64
      %v3969 = vpop.permute.xlu0 %3968
      %v3972 = vsel %vm1948, %v3584, %v3649
      %v3975 = vsel %vm1948, %v3585, %v3651
      %v3978 = vsel %vm1948, %v3586, %v3653
      %v3981 = vsel %vm1948, %v3587, %v3655
      %v3984 = vsel %vm1948, %v3588, %v3657
      %v3987 = vsel %vm1948, %v3589, %v3659
      %v3990 = vsel %vm1948, %v3590, %v3661
      %v3993 = vsel %vm1948, %v3591, %v3663
      %v3996 = vsel %vm1948, %v3592, %v3665
      %v3999 = vsel %vm1948, %v3593, %v3667
      %v4002 = vsel %vm1948, %v3594, %v3669
      %v4005 = vsel %vm1948, %v3595, %v3671
      %v4008 = vsel %vm1948, %v3596, %v3673
      %v4011 = vsel %vm1948, %v3597, %v3675
      %v4014 = vsel %vm1948, %v3598, %v3677
      %v4017 = vsel %vm1948, %v3599, %v3679
      %v4019 = vsel %vm2014, %v3972, %v3729
      %v4021 = vsel %vm2014, %v3975, %v3731
      %v4023 = vsel %vm2014, %v3978, %v3733
      %v4025 = vsel %vm2014, %v3981, %v3735
      %v4027 = vsel %vm2014, %v3984, %v3737
      %v4029 = vsel %vm2014, %v3987, %v3739
      %v4031 = vsel %vm2014, %v3990, %v3741
      %v4033 = vsel %vm2014, %v3993, %v3743
      %v4035 = vsel %vm2014, %v3996, %v3745
      %v4037 = vsel %vm2014, %v3999, %v3747
      %v4039 = vsel %vm2014, %v4002, %v3749
      %v4041 = vsel %vm2014, %v4005, %v3751
      %v4043 = vsel %vm2014, %v4008, %v3753
      %v4045 = vsel %vm2014, %v4011, %v3755
      %v4047 = vsel %vm2014, %v4014, %v3757
      %v4049 = vsel %vm2014, %v4017, %v3759
      %v4051 = vsel %vm2080, %v4019, %v3764
      %v4053 = vsel %vm2080, %v4021, %v3766
      %v4055 = vsel %vm2080, %v4023, %v3768
      %v4057 = vsel %vm2080, %v4025, %v3770
      %v4059 = vsel %vm2080, %v4027, %v3772
      %v4061 = vsel %vm2080, %v4029, %v3774
      %v4063 = vsel %vm2080, %v4031, %v3776
      %v4065 = vsel %vm2080, %v4033, %v3778
      %v4067 = vsel %vm2080, %v4035, %v3780
      %v4069 = vsel %vm2080, %v4037, %v3782
      %v4071 = vsel %vm2080, %v4039, %v3784
      %v4073 = vsel %vm2080, %v4041, %v3786
      %v4075 = vsel %vm2080, %v4043, %v3788
      %v4077 = vsel %vm2080, %v4045, %v3790
      %v4079 = vsel %vm2080, %v4047, %v3792
      %v4081 = vsel %vm2080, %v4049, %v3794
      %v4083 = vsel %vm2146, %v4051, %v3799
      %v4085 = vsel %vm2146, %v4053, %v3801
      %v4087 = vsel %vm2146, %v4055, %v3803
      %v4089 = vsel %vm2146, %v4057, %v3805
      %v4091 = vsel %vm2146, %v4059, %v3807
      %v4093 = vsel %vm2146, %v4061, %v3809
      %v4095 = vsel %vm2146, %v4063, %v3811
      %v4097 = vsel %vm2146, %v4065, %v3813
      %v4099 = vsel %vm2146, %v4067, %v3815
      %v4101 = vsel %vm2146, %v4069, %v3817
      %v4103 = vsel %vm2146, %v4071, %v3819
      %v4105 = vsel %vm2146, %v4073, %v3821
      %v4107 = vsel %vm2146, %v4075, %v3823
      %v4109 = vsel %vm2146, %v4077, %v3825
      %v4111 = vsel %vm2146, %v4079, %v3827
      %v4113 = vsel %vm2146, %v4081, %v3829
      %vm4114 = vcmask 326656
      %v4116 = vsel %vm4114, %v4083, %v3834
      %v4118 = vsel %vm4114, %v4085, %v3836
      %v4120 = vsel %vm4114, %v4087, %v3838
      %v4122 = vsel %vm4114, %v4089, %v3840
      %v4124 = vsel %vm4114, %v4091, %v3842
      %v4126 = vsel %vm4114, %v4093, %v3844
      %v4128 = vsel %vm4114, %v4095, %v3846
      %v4130 = vsel %vm4114, %v4097, %v3848
      %v4132 = vsel %vm4114, %v4099, %v3850
      %v4134 = vsel %vm4114, %v4101, %v3852
      %v4136 = vsel %vm4114, %v4103, %v3854
      %v4138 = vsel %vm4114, %v4105, %v3856
      %v4140 = vsel %vm4114, %v4107, %v3858
      %v4142 = vsel %vm4114, %v4109, %v3860
      %v4144 = vsel %vm4114, %v4111, %v3862
      %v4146 = vsel %vm4114, %v4113, %v3864
      %vm4147 = vcmask 392192
      %v4149 = vsel %vm4147, %v4116, %v3869
      %v4151 = vsel %vm4147, %v4118, %v3871
      %v4153 = vsel %vm4147, %v4120, %v3873
      %v4155 = vsel %vm4147, %v4122, %v3875
      %v4157 = vsel %vm4147, %v4124, %v3877
      %v4159 = vsel %vm4147, %v4126, %v3879
      %v4161 = vsel %vm4147, %v4128, %v3881
      %v4163 = vsel %vm4147, %v4130, %v3883
      %v4165 = vsel %vm4147, %v4132, %v3885
      %v4167 = vsel %vm4147, %v4134, %v3887
      %v4169 = vsel %vm4147, %v4136, %v3889
      %v4171 = vsel %vm4147, %v4138, %v3891
      %v4173 = vsel %vm4147, %v4140, %v3893
      %v4175 = vsel %vm4147, %v4142, %v3895
      %v4177 = vsel %vm4147, %v4144, %v3897
      %v4179 = vsel %vm4147, %v4146, %v3899
      %vm4180 = vcmask 457728
      %v4182 = vsel %vm4180, %v4149, %v3904
      %v4184 = vsel %vm4180, %v4151, %v3906
      %v4186 = vsel %vm4180, %v4153, %v3908
      %v4188 = vsel %vm4180, %v4155, %v3910
      %v4190 = vsel %vm4180, %v4157, %v3912
      %v4192 = vsel %vm4180, %v4159, %v3914
      %v4194 = vsel %vm4180, %v4161, %v3916
      %v4196 = vsel %vm4180, %v4163, %v3918
      %v4198 = vsel %vm4180, %v4165, %v3920
      %v4200 = vsel %vm4180, %v4167, %v3922
      %v4202 = vsel %vm4180, %v4169, %v3924
      %v4204 = vsel %vm4180, %v4171, %v3926
      %v4206 = vsel %vm4180, %v4173, %v3928
      %v4208 = vsel %vm4180, %v4175, %v3930
      %v4210 = vsel %vm4180, %v4177, %v3932
      %v4212 = vsel %vm4180, %v4179, %v3934
      %vm4213 = vcmask 523264
      %v4215 = vsel %vm4213, %v4182, %v3939
      %v4217 = vsel %vm4213, %v4184, %v3941
      %v4219 = vsel %vm4213, %v4186, %v3943
      %v4221 = vsel %vm4213, %v4188, %v3945
      %v4223 = vsel %vm4213, %v4190, %v3947
      %v4225 = vsel %vm4213, %v4192, %v3949
      %v4227 = vsel %vm4213, %v4194, %v3951
      %v4229 = vsel %vm4213, %v4196, %v3953
      %v4231 = vsel %vm4213, %v4198, %v3955
      %v4233 = vsel %vm4213, %v4200, %v3957
      %v4235 = vsel %vm4213, %v4202, %v3959
      %v4237 = vsel %vm4213, %v4204, %v3961
      %v4239 = vsel %vm4213, %v4206, %v3963
      %v4241 = vsel %vm4213, %v4208, %v3965
      %v4243 = vsel %vm4213, %v4210, %v3967
      %v4245 = vsel %vm4213, %v4212, %v3969
      %v4246 = vld [vmem:[%s3] sm:$0xf]
      %v4247 = vld [vmem:[%s3 + $0x4] sm:$0xf]
      %v4248 = vld [vmem:[%s3 + $0x8] sm:$0xf]
      %v4249 = vld [vmem:[%s3 + $0xc] sm:$0xf]
      %v4250 = vld [vmem:[%s3 + $0x10] sm:$0xf]
      %v4251 = vld [vmem:[%s3 + $0x14] sm:$0xf]
      %v4252 = vld [vmem:[%s3 + $0x18] sm:$0xf]
      %v4253 = vld [vmem:[%s3 + $0x1c] sm:$0xf]
      %v4254 = vld [vmem:[%s3 + $0x20] sm:$0xf]
      %v4255 = vld [vmem:[%s4] sm:$0x1]
      %v4257 = vperm.slane %v4255, 0
      %v4268 = vunpack.c.l.b16 %v4246
      %v4269 = vunpack.c.l.b16 %v4247
      %v4270 = vunpack.c.l.b16 %v4248
      %v4271 = vunpack.c.l.b16 %v4249
      %v4272 = vunpack.c.l.b16 %v4250
      %v4273 = vunpack.c.l.b16 %v4251
      %v4274 = vunpack.c.l.b16 %v4252
      %v4275 = vunpack.c.l.b16 %v4253
      %v4276 = vunpack.c.l.b16 %v4254
      %v4277 = vpack.c.b16 %v4269, %v4268
      %v4278 = vpack.c.b16 %v4271, %v4270
      %v4279 = vpack.c.b16 %v4273, %v4272
      %v4280 = vpack.c.b16 %v4275, %v4274
      %v4281 = vpack.c.b16 %v4276, %v4276
      %vm4286 = vcmask 588800
      %v4287 = vsel %vm4286, %v4215, 0
      %v4289 = vsel %vm4286, %v4217, 0
      %v4291 = vsel %vm4286, %v4219, 0
      %v4293 = vsel %vm4286, %v4221, 0
      %v4295 = vsel %vm4286, %v4223, 0
      %v4297 = vsel %vm4286, %v4225, 0
      %v4299 = vsel %vm4286, %v4227, 0
      %v4301 = vsel %vm4286, %v4229, 0
      %v4303 = vsel %vm4286, %v4231, 0
      %v4305 = vsel %vm4286, %v4233, 0
      %v4307 = vsel %vm4286, %v4235, 0
      %v4309 = vsel %vm4286, %v4237, 0
      %v4311 = vsel %vm4286, %v4239, 0
      %v4313 = vsel %vm4286, %v4241, 0
      %v4315 = vsel %vm4286, %v4243, 0
      %v4317 = vsel %vm4286, %v4245, 0
      %vm4319 = vcmask 1043456
      %v4321 = vsel %vm4319, %v4281, 0
      %4323 = vmatpush.bf16.msra.mxu0 0
      %4324 = vmatpush.bf16.msra.mxu0 0
      %4325 = vmatpush.bf16.msra.mxu0 0
      %4326 = vmatpush.bf16.msra.mxu0 %v4321
      %4327 = vmatpush.bf16.msra.mxu0 %v4280
      %4328 = vmatpush.bf16.msra.mxu0 %v4279
      %4329 = vmatpush.bf16.msra.mxu0 %v4278
      %4330 = vmatpush.bf16.msra.mxu0 %v4277
      %4331 = vmatmul.bf16.gmra.mxu0 %v4287
      %v4332 = vpop.f32.mrf.mxu0
      %v4333 = vadd.f32 %v4257, %v4332
      %v4334 = vpop.f32.mrf.mxu0
      %v4335 = vadd.f32 %v4257, %v4334
      %4336 = vmatmul.bf16.gmra.mxu0 %v4289
      %v4337 = vpop.f32.mrf.mxu0
      %v4338 = vadd.f32 %v4257, %v4337
      %v4339 = vpop.f32.mrf.mxu0
      %v4340 = vadd.f32 %v4257, %v4339
      %4341 = vmatmul.bf16.gmra.mxu0 %v4291
      %v4342 = vpop.f32.mrf.mxu0
      %v4343 = vadd.f32 %v4257, %v4342
      %v4344 = vpop.f32.mrf.mxu0
      %v4345 = vadd.f32 %v4257, %v4344
      %4346 = vmatmul.bf16.gmra.mxu0 %v4293
      %v4347 = vpop.f32.mrf.mxu0
      %v4348 = vadd.f32 %v4257, %v4347
      %v4349 = vpop.f32.mrf.mxu0
      %v4350 = vadd.f32 %v4257, %v4349
      %4351 = vmatmul.bf16.gmra.mxu0 %v4295
      %v4352 = vpop.f32.mrf.mxu0
      %v4353 = vadd.f32 %v4257, %v4352
      %v4354 = vpop.f32.mrf.mxu0
      %v4355 = vadd.f32 %v4257, %v4354
      %4356 = vmatmul.bf16.gmra.mxu0 %v4297
      %v4357 = vpop.f32.mrf.mxu0
      %v4358 = vadd.f32 %v4257, %v4357
      %v4359 = vpop.f32.mrf.mxu0
      %v4360 = vadd.f32 %v4257, %v4359
      %4361 = vmatmul.bf16.gmra.mxu0 %v4299
      %v4362 = vpop.f32.mrf.mxu0
      %v4363 = vadd.f32 %v4257, %v4362
      %v4364 = vpop.f32.mrf.mxu0
      %v4365 = vadd.f32 %v4257, %v4364
      %4366 = vmatmul.bf16.gmra.mxu0 %v4301
      %v4367 = vpop.f32.mrf.mxu0
      %v4368 = vadd.f32 %v4257, %v4367
      %v4369 = vpop.f32.mrf.mxu0
      %v4370 = vadd.f32 %v4257, %v4369
      %4371 = vmatmul.bf16.gmra.mxu0 %v4303
      %v4372 = vpop.f32.mrf.mxu0
      %v4373 = vadd.f32 %v4257, %v4372
      %v4374 = vpop.f32.mrf.mxu0
      %v4375 = vadd.f32 %v4257, %v4374
      %4376 = vmatmul.bf16.gmra.mxu0 %v4305
      %v4377 = vpop.f32.mrf.mxu0
      %v4378 = vadd.f32 %v4257, %v4377
      %v4379 = vpop.f32.mrf.mxu0
      %v4380 = vadd.f32 %v4257, %v4379
      %4381 = vmatmul.bf16.gmra.mxu0 %v4307
      %v4382 = vpop.f32.mrf.mxu0
      %v4383 = vadd.f32 %v4257, %v4382
      %v4384 = vpop.f32.mrf.mxu0
      %v4385 = vadd.f32 %v4257, %v4384
      %4386 = vmatmul.bf16.gmra.mxu0 %v4309
      %v4387 = vpop.f32.mrf.mxu0
      %v4388 = vadd.f32 %v4257, %v4387
      %v4389 = vpop.f32.mrf.mxu0
      %v4390 = vadd.f32 %v4257, %v4389
      %4391 = vmatmul.bf16.gmra.mxu0 %v4311
      %v4392 = vpop.f32.mrf.mxu0
      %v4393 = vadd.f32 %v4257, %v4392
      %v4394 = vpop.f32.mrf.mxu0
      %v4395 = vadd.f32 %v4257, %v4394
      %4396 = vmatmul.bf16.gmra.mxu0 %v4313
      %v4397 = vpop.f32.mrf.mxu0
      %v4398 = vadd.f32 %v4257, %v4397
      %v4399 = vpop.f32.mrf.mxu0
      %v4400 = vadd.f32 %v4257, %v4399
      %4401 = vmatmul.bf16.gmra.mxu0 %v4315
      %v4402 = vpop.f32.mrf.mxu0
      %v4403 = vadd.f32 %v4257, %v4402
      %v4404 = vpop.f32.mrf.mxu0
      %v4405 = vadd.f32 %v4257, %v4404
      %4406 = vmatmul.bf16.gmra.mxu0 %v4317
      %v4407 = vpop.f32.mrf.mxu0
      %v4408 = vadd.f32 %v4257, %v4407
      %v4409 = vpop.f32.mrf.mxu0
      %v4410 = vadd.f32 %v4257, %v4409
      %4411 = vdwg.mxu0
      %v4412 = vld [vmem:[%s5] sm:$0x3]
      %v4413 = vld [vmem:[%s6] sm:$0x1]
      %v4415 = vperm.slane %v4413, 0
      %v4449 = vunpack.c.l.b16 %v280
      %v4450 = vunpack.c.l.b16 %v281
      %v4451 = vunpack.c.l.b16 %v282
      %v4452 = vunpack.c.l.b16 %v283
      %v4453 = vunpack.c.l.b16 %v284
      %v4454 = vunpack.c.l.b16 %v285
      %v4455 = vunpack.c.l.b16 %v286
      %v4456 = vunpack.c.l.b16 %v287
      %v4457 = vunpack.c.l.b16 %v288
      %v4458 = vunpack.c.l.b16 %v289
      %v4459 = vunpack.c.l.b16 %v290
      %v4460 = vunpack.c.l.b16 %v291
      %v4461 = vunpack.c.l.b16 %v292
      %v4462 = vunpack.c.l.b16 %v293
      %v4463 = vunpack.c.l.b16 %v294
      %v4464 = vunpack.c.l.b16 %v295
      %v4465 = vunpack.c.l.b16 %v296
      %v4466 = vunpack.c.l.b16 %v297
      %v4467 = vunpack.c.l.b16 %v298
      %v4468 = vunpack.c.l.b16 %v299
      %v4469 = vunpack.c.l.b16 %v300
      %v4470 = vunpack.c.l.b16 %v301
      %v4471 = vunpack.c.l.b16 %v302
      %v4472 = vunpack.c.l.b16 %v303
      %v4473 = vunpack.c.l.b16 %v304
      %v4474 = vunpack.c.l.b16 %v305
      %v4475 = vunpack.c.l.b16 %v306
      %v4476 = vunpack.c.l.b16 %v307
      %v4477 = vunpack.c.l.b16 %v308
      %v4478 = vunpack.c.l.b16 %v309
      %v4479 = vunpack.c.l.b16 %v310
      %v4480 = vunpack.c.l.b16 %v311
      %v4481 = vpack.c.b16 %v4450, %v4449
      %v4482 = vpack.c.b16 %v4452, %v4451
      %v4483 = vpack.c.b16 %v4454, %v4453
      %v4484 = vpack.c.b16 %v4456, %v4455
      %v4485 = vpack.c.b16 %v4458, %v4457
      %v4486 = vpack.c.b16 %v4460, %v4459
      %v4487 = vpack.c.b16 %v4462, %v4461
      %v4488 = vpack.c.b16 %v4464, %v4463
      %v4489 = vpack.c.b16 %v4466, %v4465
      %v4490 = vpack.c.b16 %v4468, %v4467
      %v4491 = vpack.c.b16 %v4470, %v4469
      %v4492 = vpack.c.b16 %v4472, %v4471
      %v4493 = vpack.c.b16 %v4474, %v4473
      %v4494 = vpack.c.b16 %v4476, %v4475
      %v4495 = vpack.c.b16 %v4478, %v4477
      %v4496 = vpack.c.b16 %v4480, %v4479
      %v4498 = vsel %vm1899, %v4481, 0
      %v4501 = vsel %vm1899, %v4482, 0
      %v4504 = vsel %vm1899, %v4483, 0
      %v4507 = vsel %vm1899, %v4484, 0
      %v4510 = vsel %vm1899, %v4485, 0
      %v4513 = vsel %vm1899, %v4486, 0
      %v4516 = vsel %vm1899, %v4487, 0
      %v4519 = vsel %vm1899, %v4488, 0
      %v4522 = vsel %vm1899, %v4489, 0
      %v4525 = vsel %vm1899, %v4490, 0
      %v4528 = vsel %vm1899, %v4491, 0
      %v4531 = vsel %vm1899, %v4492, 0
      %v4534 = vsel %vm1899, %v4493, 0
      %v4537 = vsel %vm1899, %v4494, 0
      %v4540 = vsel %vm1899, %v4495, 0
      %v4543 = vsel %vm1899, %v4496, 0
      %v4546 = vsel %vm2236, %v4412, 0
      %4548 = vmatpush.bf16.msra.mxu0 0
      %4549 = vmatpush.bf16.msra.mxu0 0
      %4550 = vmatpush.bf16.msra.mxu0 0
      %4551 = vmatpush.bf16.msra.mxu0 0
      %4552 = vmatpush.bf16.msra.mxu0 0
      %4553 = vmatpush.bf16.msra.mxu0 0
      %4554 = vmatpush.bf16.msra.mxu0 0
      %4555 = vmatpush.bf16.msra.mxu0 %v4546
      %4556 = vmatmul.bf16.gmra.mxu0 %v4498
      %v4557 = vpop.f32.mrf.mxu0
      %v4558 = vadd.f32 %v4415, %v4557
      %v4559 = vpop.f32.mrf.mxu0
      %v4560 = vadd.f32 %v4415, %v4559
      %4561 = vmatmul.bf16.gmra.mxu0 %v4501
      %v4562 = vpop.f32.mrf.mxu0
      %v4563 = vadd.f32 %v4415, %v4562
      %v4564 = vpop.f32.mrf.mxu0
      %v4565 = vadd.f32 %v4415, %v4564
      %4566 = vmatmul.bf16.gmra.mxu0 %v4504
      %v4567 = vpop.f32.mrf.mxu0
      %v4568 = vadd.f32 %v4415, %v4567
      %v4569 = vpop.f32.mrf.mxu0
      %v4570 = vadd.f32 %v4415, %v4569
      %4571 = vmatmul.bf16.gmra.mxu0 %v4507
      %v4572 = vpop.f32.mrf.mxu0
      %v4573 = vadd.f32 %v4415, %v4572
      %v4574 = vpop.f32.mrf.mxu0
      %v4575 = vadd.f32 %v4415, %v4574
      %4576 = vmatmul.bf16.gmra.mxu0 %v4510
      %v4577 = vpop.f32.mrf.mxu0
      %v4578 = vadd.f32 %v4415, %v4577
      %v4579 = vpop.f32.mrf.mxu0
      %v4580 = vadd.f32 %v4415, %v4579
      %4581 = vmatmul.bf16.gmra.mxu0 %v4513
      %v4582 = vpop.f32.mrf.mxu0
      %v4583 = vadd.f32 %v4415, %v4582
      %v4584 = vpop.f32.mrf.mxu0
      %v4585 = vadd.f32 %v4415, %v4584
      %4586 = vmatmul.bf16.gmra.mxu0 %v4516
      %v4587 = vpop.f32.mrf.mxu0
      %v4588 = vadd.f32 %v4415, %v4587
      %v4589 = vpop.f32.mrf.mxu0
      %v4590 = vadd.f32 %v4415, %v4589
      %4591 = vmatmul.bf16.gmra.mxu0 %v4519
      %v4592 = vpop.f32.mrf.mxu0
      %v4593 = vadd.f32 %v4415, %v4592
      %v4594 = vpop.f32.mrf.mxu0
      %v4595 = vadd.f32 %v4415, %v4594
      %4596 = vmatmul.bf16.gmra.mxu0 %v4522
      %v4597 = vpop.f32.mrf.mxu0
      %v4598 = vadd.f32 %v4415, %v4597
      %v4599 = vpop.f32.mrf.mxu0
      %v4600 = vadd.f32 %v4415, %v4599
      %4601 = vmatmul.bf16.gmra.mxu0 %v4525
      %v4602 = vpop.f32.mrf.mxu0
      %v4603 = vadd.f32 %v4415, %v4602
      %v4604 = vpop.f32.mrf.mxu0
      %v4605 = vadd.f32 %v4415, %v4604
      %4606 = vmatmul.bf16.gmra.mxu0 %v4528
      %v4607 = vpop.f32.mrf.mxu0
      %v4608 = vadd.f32 %v4415, %v4607
      %v4609 = vpop.f32.mrf.mxu0
      %v4610 = vadd.f32 %v4415, %v4609
      %4611 = vmatmul.bf16.gmra.mxu0 %v4531
      %v4612 = vpop.f32.mrf.mxu0
      %v4613 = vadd.f32 %v4415, %v4612
      %v4614 = vpop.f32.mrf.mxu0
      %v4615 = vadd.f32 %v4415, %v4614
      %4616 = vmatmul.bf16.gmra.mxu0 %v4534
      %v4617 = vpop.f32.mrf.mxu0
      %v4618 = vadd.f32 %v4415, %v4617
      %v4619 = vpop.f32.mrf.mxu0
      %v4620 = vadd.f32 %v4415, %v4619
      %4621 = vmatmul.bf16.gmra.mxu0 %v4537
      %v4622 = vpop.f32.mrf.mxu0
      %v4623 = vadd.f32 %v4415, %v4622
      %v4624 = vpop.f32.mrf.mxu0
      %v4625 = vadd.f32 %v4415, %v4624
      %4626 = vmatmul.bf16.gmra.mxu0 %v4540
      %v4627 = vpop.f32.mrf.mxu0
      %v4628 = vadd.f32 %v4415, %v4627
      %v4629 = vpop.f32.mrf.mxu0
      %v4630 = vadd.f32 %v4415, %v4629
      %4631 = vmatmul.bf16.gmra.mxu0 %v4543
      %v4632 = vpop.f32.mrf.mxu0
      %v4633 = vadd.f32 %v4415, %v4632
      %v4634 = vpop.f32.mrf.mxu0
      %v4635 = vadd.f32 %v4415, %v4634
      %4636 = vdwg.mxu0
      %v4637 = vadd.f32 %v4333, %v4558
      %v4638 = vadd.f32 %v4335, %v4560
      %v4639 = vadd.f32 %v4338, %v4563
      %v4640 = vadd.f32 %v4340, %v4565
      %v4641 = vadd.f32 %v4343, %v4568
      %v4642 = vadd.f32 %v4345, %v4570
      %v4643 = vadd.f32 %v4348, %v4573
      %v4644 = vadd.f32 %v4350, %v4575
      %v4645 = vadd.f32 %v4353, %v4578
      %v4646 = vadd.f32 %v4355, %v4580
      %v4647 = vadd.f32 %v4358, %v4583
      %v4648 = vadd.f32 %v4360, %v4585
      %v4649 = vadd.f32 %v4363, %v4588
      %v4650 = vadd.f32 %v4365, %v4590
      %v4651 = vadd.f32 %v4368, %v4593
      %v4652 = vadd.f32 %v4370, %v4595
      %v4653 = vadd.f32 %v4373, %v4598
      %v4654 = vadd.f32 %v4375, %v4600
      %v4655 = vadd.f32 %v4378, %v4603
      %v4656 = vadd.f32 %v4380, %v4605
      %v4657 = vadd.f32 %v4383, %v4608
      %v4658 = vadd.f32 %v4385, %v4610
      %v4659 = vadd.f32 %v4388, %v4613
      %v4660 = vadd.f32 %v4390, %v4615
      %v4661 = vadd.f32 %v4393, %v4618
      %v4662 = vadd.f32 %v4395, %v4620
      %v4663 = vadd.f32 %v4398, %v4623
      %v4664 = vadd.f32 %v4400, %v4625
      %v4665 = vadd.f32 %v4403, %v4628
      %v4666 = vadd.f32 %v4405, %v4630
      %v4667 = vadd.f32 %v4408, %v4633
      %v4668 = vadd.f32 %v4410, %v4635
      %v4669 = vmax.f32 %v4637, 0.0
      %v4670 = vmax.f32 %v4638, 0.0
      %v4671 = vmax.f32 %v4639, 0.0
      %v4672 = vmax.f32 %v4640, 0.0
      %v4673 = vmax.f32 %v4641, 0.0
      %v4674 = vmax.f32 %v4642, 0.0
      %v4675 = vmax.f32 %v4643, 0.0
      %v4676 = vmax.f32 %v4644, 0.0
      %v4677 = vmax.f32 %v4645, 0.0
      %v4678 = vmax.f32 %v4646, 0.0
      %v4679 = vmax.f32 %v4647, 0.0
      %v4680 = vmax.f32 %v4648, 0.0
      %v4681 = vmax.f32 %v4649, 0.0
      %v4682 = vmax.f32 %v4650, 0.0
      %v4683 = vmax.f32 %v4651, 0.0
      %v4684 = vmax.f32 %v4652, 0.0
      %v4685 = vmax.f32 %v4653, 0.0
      %v4686 = vmax.f32 %v4654, 0.0
      %v4687 = vmax.f32 %v4655, 0.0
      %v4688 = vmax.f32 %v4656, 0.0
      %v4689 = vmax.f32 %v4657, 0.0
      %v4690 = vmax.f32 %v4658, 0.0
      %v4691 = vmax.f32 %v4659, 0.0
      %v4692 = vmax.f32 %v4660, 0.0
      %v4693 = vmax.f32 %v4661, 0.0
      %v4694 = vmax.f32 %v4662, 0.0
      %v4695 = vmax.f32 %v4663, 0.0
      %v4696 = vmax.f32 %v4664, 0.0
      %v4697 = vmax.f32 %v4665, 0.0
      %v4698 = vmax.f32 %v4666, 0.0
      %v4699 = vmax.f32 %v4667, 0.0
      %v4700 = vmax.f32 %v4668, 0.0
      %v4701 = vpack.c.bf16 %v4669, %v4669
      %v4702 = vpack.c.bf16 %v4670, %v4670
      %v4703 = vpack.c.bf16 %v4671, %v4671
      %v4704 = vpack.c.bf16 %v4672, %v4672
      %v4705 = vpack.c.bf16 %v4673, %v4673
      %v4706 = vpack.c.bf16 %v4674, %v4674
      %v4707 = vpack.c.bf16 %v4675, %v4675
      %v4708 = vpack.c.bf16 %v4676, %v4676
      %v4709 = vpack.c.bf16 %v4677, %v4677
      %v4710 = vpack.c.bf16 %v4678, %v4678
      %v4711 = vpack.c.bf16 %v4679, %v4679
      %v4712 = vpack.c.bf16 %v4680, %v4680
      %v4713 = vpack.c.bf16 %v4681, %v4681
      %v4714 = vpack.c.bf16 %v4682, %v4682
      %v4715 = vpack.c.bf16 %v4683, %v4683
      %v4716 = vpack.c.bf16 %v4684, %v4684
      %v4717 = vpack.c.bf16 %v4685, %v4685
      %v4718 = vpack.c.bf16 %v4686, %v4686
      %v4719 = vpack.c.bf16 %v4687, %v4687
      %v4720 = vpack.c.bf16 %v4688, %v4688
      %v4721 = vpack.c.bf16 %v4689, %v4689
      %v4722 = vpack.c.bf16 %v4690, %v4690
      %v4723 = vpack.c.bf16 %v4691, %v4691
      %v4724 = vpack.c.bf16 %v4692, %v4692
      %v4725 = vpack.c.bf16 %v4693, %v4693
      %v4726 = vpack.c.bf16 %v4694, %v4694
      %v4727 = vpack.c.bf16 %v4695, %v4695
      %v4728 = vpack.c.bf16 %v4696, %v4696
      %v4729 = vpack.c.bf16 %v4697, %v4697
      %v4730 = vpack.c.bf16 %v4698, %v4698
      %v4731 = vpack.c.bf16 %v4699, %v4699
      %v4732 = vpack.c.bf16 %v4700, %v4700
      %4733 = vst.msk [vmem:[%s278] sm:$0xf] %vm2361, %v4701
      %4734 = vst.msk [vmem:[%s278 + $0x4] sm:$0xf] %vm2361, %v4702
      %4735 = vst.msk [vmem:[%s278 + $0x8] sm:$0xf] %vm2361, %v4703
      %4736 = vst.msk [vmem:[%s278 + $0xc] sm:$0xf] %vm2361, %v4704
      %4737 = vst.msk [vmem:[%s278 + $0x10] sm:$0xf] %vm2361, %v4705
      %4738 = vst.msk [vmem:[%s278 + $0x14] sm:$0xf] %vm2361, %v4706
      %4739 = vst.msk [vmem:[%s278 + $0x18] sm:$0xf] %vm2361, %v4707
      %4740 = vst.msk [vmem:[%s278 + $0x1c] sm:$0xf] %vm2361, %v4708
      %4741 = vst.msk [vmem:[%s278 + $0x20] sm:$0xf] %vm2361, %v4709
      %4742 = vst.msk [vmem:[%s278 + $0x24] sm:$0xf] %vm2361, %v4710
      %4743 = vst.msk [vmem:[%s278 + $0x28] sm:$0xf] %vm2361, %v4711
      %4744 = vst.msk [vmem:[%s278 + $0x2c] sm:$0xf] %vm2361, %v4712
      %4745 = vst.msk [vmem:[%s278 + $0x30] sm:$0xf] %vm2361, %v4713
      %4746 = vst.msk [vmem:[%s278 + $0x34] sm:$0xf] %vm2361, %v4714
      %4747 = vst.msk [vmem:[%s278 + $0x38] sm:$0xf] %vm2361, %v4715
      %4748 = vst.msk [vmem:[%s278 + $0x3c] sm:$0xf] %vm2361, %v4716
      %4749 = vst.msk [vmem:[%s278 + $0x40] sm:$0xf] %vm2361, %v4717
      %4750 = vst.msk [vmem:[%s278 + $0x44] sm:$0xf] %vm2361, %v4718
      %4751 = vst.msk [vmem:[%s278 + $0x48] sm:$0xf] %vm2361, %v4719
      %4752 = vst.msk [vmem:[%s278 + $0x4c] sm:$0xf] %vm2361, %v4720
      %4753 = vst.msk [vmem:[%s278 + $0x50] sm:$0xf] %vm2361, %v4721
      %4754 = vst.msk [vmem:[%s278 + $0x54] sm:$0xf] %vm2361, %v4722
      %4755 = vst.msk [vmem:[%s278 + $0x58] sm:$0xf] %vm2361, %v4723
      %4756 = vst.msk [vmem:[%s278 + $0x5c] sm:$0xf] %vm2361, %v4724
      %4757 = vst.msk [vmem:[%s278 + $0x60] sm:$0xf] %vm2361, %v4725
      %4758 = vst.msk [vmem:[%s278 + $0x64] sm:$0xf] %vm2361, %v4726
      %4759 = vst.msk [vmem:[%s278 + $0x68] sm:$0xf] %vm2361, %v4727
      %4760 = vst.msk [vmem:[%s278 + $0x6c] sm:$0xf] %vm2361, %v4728
      %4761 = vst.msk [vmem:[%s278 + $0x70] sm:$0xf] %vm2361, %v4729
      %4762 = vst.msk [vmem:[%s278 + $0x74] sm:$0xf] %vm2361, %v4730
      %4763 = vst.msk [vmem:[%s278 + $0x78] sm:$0xf] %vm2361, %v4731
      %4764 = vst.msk [vmem:[%s278 + $0x7c] sm:$0xf] %vm2361, %v4732
      %p4765 = scmp.lt.s32.totalorder %s18, 1
      %s4766 = scalar_select %p4765, %s18, 1
      %s4767 = smul.addr %s4766, 32
      %s4768 = smul.addr %s4767, 4
      %s4769 = scalar_lea.vmem %s7, %s4768
      // Predicated region
      $region49: #{tpu_custom_call.1} parent=47 // pred_check
        %p4770 = pneg %p188
      $region50: #{tpu_custom_call.1} parent=47 // pred_check_branch
        %4772 = sbr.rel (%p4770) target = $region52
      $region51: #{tpu_custom_call.1} parent=47 // pred_region
        _
      $region52: #{tpu_custom_call.1} parent=47 // pred_fallthru
        _
    $region48: #{tpu_custom_call.1} parent=5 // pred_fallthru
      _
    %p4773 = scmp.le.s32.totalorder 2, %s13
    // Predicated region
    $region53: #{tpu_custom_call.1} parent=5 // pred_check
      %p4774 = pneg %p4773
    $region54: #{tpu_custom_call.1} parent=5 // pred_check_branch
      %4776 = sbr.rel (%p4774) target = $region56
    $region55: #{tpu_custom_call.1} parent=5 // pred_region
      %s4777 = ssub.s32 %s13, 2
      // Predicated region
      $region57: #{tpu_custom_call.1} parent=55 // pred_check
        %p4778 = pneg %p194
      $region58: #{tpu_custom_call.1} parent=55 // pred_check_branch
        %4780 = sbr.rel (%p4778) target = $region60
      $region59: #{tpu_custom_call.1} parent=55 // pred_region
        %p4781 = scmp.lt.s32.totalorder %s19, 1
        %s4782 = scalar_select %p4781, %s19, 1
        %s4783 = smul.addr %s4782, 32
        %s4784 = smul.addr %s4783, 4
        %s4785 = scalar_lea.vmem %s7, %s4784
      $region60: #{tpu_custom_call.1} parent=55 // pred_fallthru
        _
    $region56: #{tpu_custom_call.1} parent=5 // pred_fallthru
      _
  $region6: #{tpu_custom_call.1} parent=0 // loop_footer
    %s17 = sadd.s32 1, %s13
  $region7: #{tpu_custom_call.1} parent=0 // loop_footer_branch
    %12 = sbr.rel target = $region3
  $region8: #{tpu_custom_call.1} parent=0 // loop_exit
    _

</llo_original>
